<compile_context>
chip_gen: v7x
topology: tpu7x:2x2x1
jax: 0.10.0
libtpu: 0.0.40
codegen_flags: <defaults>
</compile_context>

<pallas_src>
import jax
import jax.numpy as jnp
from jax import lax
from jax.experimental import pallas as pl
from jax.experimental.pallas import tpu as pltpu

EXPANSION = 4


def bottleneck_kernel(x_ref, w1_ref, b1_ref, w2_ref, b2_ref, w3_ref, b3_ref,
                      o_ref, pad_ref, col_ref):
    """One batch element per grid step (whole image resident in VMEM).

    x_ref  : (1, H, W, Cin)  bf16   Cin == 4*P
    w1_ref : (Cin, P)        bf16   conv1 weight, BN1 scale folded in
    b1_ref : (1, P)          f32    BN1 bias
    w2_ref : (9*P, P)        bf16   conv2 3x3 weight in im2col layout, BN2 scale folded
    b2_ref : (1, P)          f32    BN2 bias
    w3_ref : (P, 4*P)        bf16   conv3 weight, BN3 scale folded in
    b3_ref : (1, 4*P)        f32    BN3 bias
    o_ref  : (1, H, W, Cin)  bf16
    pad_ref: (H+2, W+2, P)   bf16   zero-padded h1 scratch
    col_ref: (H*W, 9*P)      bf16   im2col scratch
    """
    _, H, W, Cin = x_ref.shape
    P = w1_ref.shape[1]
    HW = H * W

    x = x_ref[0].reshape(HW, Cin)                       # bf16 (HW, Cin)
    residual = x.astype(jnp.float32)                    # residual add kept in f32

    # ---- conv1 (1x1) + folded-BN1 bias + ReLU (bf16 MXU, f32 accumulate) ----
    h1 = jnp.dot(x, w1_ref[...], preferred_element_type=jnp.float32)
    h1 = jnp.maximum(h1 + b1_ref[...], 0.0)             # (HW, P) f32

    # ---- conv2 (3x3, stride 1, pad 1) via im2col + one K=9P matmul ----------
    # Only the 1-pixel border of the pad scratch needs to be zero; the interior
    # is fully overwritten below.  Re-zeroing just the border each step is cheap
    # and correct even when the batch axis is sharded across TensorCores.
    zrow = jnp.zeros((1, W + 2, P), pad_ref.dtype)
    zcol = jnp.zeros((H + 2, 1, P), pad_ref.dtype)
    pad_ref[pl.ds(0, 1), :, :] = zrow
    pad_ref[pl.ds(H + 1, 1), :, :] = zrow
    pad_ref[:, pl.ds(0, 1), :] = zcol
    pad_ref[:, pl.ds(W + 1, 1), :] = zcol
    pad_ref[pl.ds(1, H), pl.ds(1, W), :] = h1.reshape(H, W, P).astype(pad_ref.dtype)

    for dy in range(3):
        for dx in range(3):
            t = dy * 3 + dx
            col_ref[:, pl.ds(t * P, P)] = (
                pad_ref[pl.ds(dy, H), pl.ds(dx, W), :].reshape(HW, P))

    h2 = jnp.dot(col_ref[...], w2_ref[...], preferred_element_type=jnp.float32)
    h2 = jnp.maximum(h2 + b2_ref[...], 0.0)             # (HW, P) f32

    # ---- conv3 (1x1) + folded-BN3 bias + residual + ReLU --------------------
    h3 = jnp.dot(h2.astype(w3_ref.dtype), w3_ref[...],
                 preferred_element_type=jnp.float32)
    out = jnp.maximum(h3 + b3_ref[...] + residual, 0.0)
    o_ref[0] = out.reshape(H, W, Cin).astype(o_ref.dtype)


def bottleneck_forward_nhwc(x_nhwc, kparams):
    """x_nhwc: (N, H, W, Cin) bf16 with Cin == planes*EXPANSION. Returns NHWC bf16."""
    w1, b1, w2, b2, w3, b3 = kparams
    N, H, W, Cin = x_nhwc.shape
    P = w1.shape[1]
    assert Cin == P * EXPANSION, "identity-residual Bottleneck needs inplanes == planes*4"

    return pl.pallas_call(
        bottleneck_kernel,
        out_shape=jax.ShapeDtypeStruct((N, H, W, Cin), x_nhwc.dtype),
        grid_spec=pltpu.PrefetchScalarGridSpec(
            num_scalar_prefetch=0,
            # TODO(synk): add a spatial row-block (+1-row halo) grid axis for large
            # feature maps; at these sizes one whole image per grid step fits VMEM.
            grid=(N,),
            in_specs=[
                pl.BlockSpec((1, H, W, Cin), lambda n: (n, 0, 0, 0)),
                pl.BlockSpec((Cin, P), lambda n: (0, 0)),
                pl.BlockSpec((1, P), lambda n: (0, 0)),
                pl.BlockSpec((9 * P, P), lambda n: (0, 0)),
                pl.BlockSpec((1, P), lambda n: (0, 0)),
                pl.BlockSpec((P, EXPANSION * P), lambda n: (0, 0)),
                pl.BlockSpec((1, EXPANSION * P), lambda n: (0, 0)),
            ],
            out_specs=pl.BlockSpec((1, H, W, Cin), lambda n: (n, 0, 0, 0)),
            scratch_shapes=[
                pltpu.VMEM((H + 2, W + 2, P), jnp.bfloat16),   # padded h1
                pltpu.VMEM((H * W, 9 * P), jnp.bfloat16),      # im2col buffer
            ],
        ),
        compiler_params=pltpu.CompilerParams(
            dimension_semantics=("parallel",),
            vmem_limit_bytes=32 * 1024 * 1024,
        ),
    )(x_nhwc, w1, b1, w2, b2, w3, b3)


def bottleneck_forward(x_nchw, kparams):
    """NCHW interface matching the PyTorch module (single transpose in / out)."""
    x = jnp.transpose(x_nchw, (0, 2, 3, 1)).astype(jnp.bfloat16)
    out = bottleneck_forward_nhwc(x, kparams)
    return jnp.transpose(out, (0, 3, 1, 2))


def make_torch_params(key, inplanes, planes):
    """Deterministic synthetic parameters in PyTorch layouts (OIHW convs, BN vectors)."""
    outp = planes * EXPANSION
    ks = jax.random.split(key, 6)
    w1 = 0.2 * jax.random.normal(ks[0], (planes, inplanes, 1, 1), jnp.float32)
    w2 = 0.2 * jax.random.normal(ks[1], (planes, planes, 3, 3), jnp.float32)
    w3 = 0.2 * jax.random.normal(ks[2], (outp, planes, 1, 1), jnp.float32)

    def bn(k, c):
        kg, kb, km, kv = jax.random.split(k, 4)
        gamma = 0.5 + jax.random.uniform(kg, (c,), jnp.float32)
        beta = 0.1 * jax.random.normal(kb, (c,), jnp.float32)
        mean = 0.1 * jax.random.normal(km, (c,), jnp.float32)
        var = 0.5 + jax.random.uniform(kv, (c,), jnp.float32)
        return gamma, beta, mean, var

    return w1, w2, w3, bn(ks[3], planes), bn(ks[4], planes), bn(ks[5], outp)


def prepare_kernel_params(w1, w2, w3, bn1, bn2, bn3, eps=1e-5):
    """Fold eval-mode BN scales into the conv weights; stage weights as bf16."""
    def fold(gamma, beta, mean, var):
        scale = gamma / jnp.sqrt(var + eps)
        return scale, beta - mean * scale

    s1, b1 = fold(*bn1)
    s2, b2 = fold(*bn2)
    s3, b3 = fold(*bn3)
    P = w1.shape[0]

    # conv1: OIHW (P, Cin, 1, 1) -> (Cin, P); scale per out channel.
    w1k = (w1[:, :, 0, 0].T * s1[None, :]).astype(jnp.bfloat16)
    # conv2: OIHW (P, P, 3, 3) -> HWIO (3, 3, Pin, Pout) -> im2col (9*Pin, Pout).
    w2hwio = jnp.transpose(w2, (2, 3, 1, 0)) * s2[None, None, None, :]
    w2k = w2hwio.reshape(9 * P, P).astype(jnp.bfloat16)
    # conv3: OIHW (4P, P, 1, 1) -> (P, 4P).
    w3k = (w3[:, :, 0, 0].T * s3[None, :]).astype(jnp.bfloat16)

    kparams = (w1k, b1[None, :].astype(jnp.float32),
               w2k, b2[None, :].astype(jnp.float32),
               w3k, b3[None, :].astype(jnp.float32))
    return kparams, w2hwio.astype(jnp.bfloat16)


def ref_forward_nhwc(x_bf16, kparams, w2hwio_bf16):
    """Pure-JAX NHWC reference mirroring the kernel's bf16 staging (f32 math)."""
    w1, b1, _, b2, w3, b3 = kparams
    f32 = jnp.float32
    hi = lax.Precision.HIGHEST
    x = x_bf16.astype(f32)
    h1 = jnp.maximum(jnp.einsum('nhwc,cp->nhwp', x, w1.astype(f32), precision=hi) + b1, 0.0)
    h1 = h1.astype(jnp.bfloat16).astype(f32)            # kernel stages h1 in bf16
    h2 = lax.conv_general_dilated(h1, w2hwio_bf16.astype(f32),
                                  window_strides=(1, 1), padding='SAME',
                                  dimension_numbers=('NHWC', 'HWIO', 'NHWC'),
                                  precision=hi)
    h2 = jnp.maximum(h2 + b2, 0.0)
    h2 = h2.astype(jnp.bfloat16).astype(f32)            # kernel feeds conv3 in bf16
    h3 = jnp.einsum('nhwp,pq->nhwq', h2, w3.astype(f32), precision=hi) + b3
    return jnp.maximum(h3 + x, 0.0)


if __name__ == "__main__":
    key = jax.random.PRNGKey(0)
    k_x, k_p = jax.random.split(key)

    # Small but lane-friendly shapes: planes=32 -> Cin = 128 (one full lane tile).
    N, planes, H, W = 2, 32, 16, 16
    inplanes = planes * EXPANSION               # identity residual => inplanes == planes*4
    x_nchw = jax.random.normal(k_x, (N, inplanes, H, W), jnp.float32)

    torch_params = make_torch_params(k_p, inplanes, planes)
    kparams, w2hwio = prepare_kernel_params(*torch_params)

    out_nchw = bottleneck_forward(x_nchw, kparams)
    out_nchw = jax.block_until_ready(out_nchw)
    assert out_nchw.shape == x_nchw.shape

    # Correctness check against a pure-JAX reference using the same bf16-staged params.
    x_nhwc_bf16 = jnp.transpose(x_nchw, (0, 2, 3, 1)).astype(jnp.bfloat16)
    ref_nhwc = ref_forward_nhwc(x_nhwc_bf16, kparams, w2hwio)
    ref_nchw = jnp.transpose(ref_nhwc, (0, 3, 1, 2))
    assert jnp.allclose(out_nchw.astype(jnp.float32), ref_nchw,
                        rtol=5e-2, atol=5e-2), "mismatch vs reference"

    print("KERNEL_OK")
</pallas_src>

<mosaic_0001>
module attributes {stable_mosaic.version = 11 : i64} {
  func.func @bottleneck_kernel(%arg0: i32, %arg1: memref<1x16x16x128xbf16, #tpu.memory_space<vmem>>, %arg2: memref<128x32xbf16, #tpu.memory_space<vmem>>, %arg3: memref<1x32xf32, #tpu.memory_space<vmem>>, %arg4: memref<288x32xbf16, #tpu.memory_space<vmem>>, %arg5: memref<1x32xf32, #tpu.memory_space<vmem>>, %arg6: memref<32x128xbf16, #tpu.memory_space<vmem>>, %arg7: memref<1x128xf32, #tpu.memory_space<vmem>>, %arg8: memref<1x16x16x128xbf16, #tpu.memory_space<vmem>>, %arg9: memref<18x18x32xbf16, #tpu.memory_space<vmem>>, %arg10: memref<256x288xbf16, #tpu.memory_space<vmem>>) attributes {dimension_semantics = [#tpu.dimension_semantics<parallel>], iteration_bounds = array<i64: 2>, scalar_prefetch = 0 : i64, scratch_operands = 2 : i64, tpu.core_type = #tpu.core_type<tc>, window_params = [{transform_indices = @transform_0, window_bounds = array<i64: 1, 16, 16, 128>}, {pipeline_mode = #tpu.pipeline_mode<synchronous>, transform_indices = @transform_1, window_bounds = array<i64: 128, 32>}, {pipeline_mode = #tpu.pipeline_mode<synchronous>, transform_indices = @transform_2, window_bounds = array<i64: 1, 32>}, {pipeline_mode = #tpu.pipeline_mode<synchronous>, transform_indices = @transform_3, window_bounds = array<i64: 288, 32>}, {pipeline_mode = #tpu.pipeline_mode<synchronous>, transform_indices = @transform_4, window_bounds = array<i64: 1, 32>}, {pipeline_mode = #tpu.pipeline_mode<synchronous>, transform_indices = @transform_5, window_bounds = array<i64: 32, 128>}, {pipeline_mode = #tpu.pipeline_mode<synchronous>, transform_indices = @transform_6, window_bounds = array<i64: 1, 128>}, {transform_indices = @transform_7, window_bounds = array<i64: 1, 16, 16, 128>}]} {
    %c0 = arith.constant 0 : index
    %c0_0 = arith.constant 0 : index
    %c0_1 = arith.constant 0 : index
    %c0_2 = arith.constant 0 : index
    %0 = vector.load %arg1[%c0, %c0_0, %c0_1, %c0_2] : memref<1x16x16x128xbf16, #tpu.memory_space<vmem>>, vector<1x16x16x128xbf16>
    %1 = vector.shape_cast %0 : vector<1x16x16x128xbf16> to vector<16x16x128xbf16>
    %2 = vector.shape_cast %1 : vector<16x16x128xbf16> to vector<256x128xbf16>
    %3 = arith.extf %2 : vector<256x128xbf16> to vector<256x128xf32>
    %c0_3 = arith.constant 0 : index
    %c0_4 = arith.constant 0 : index
    %4 = vector.load %arg2[%c0_3, %c0_4] : memref<128x32xbf16, #tpu.memory_space<vmem>>, vector<128x32xbf16>
    %cst = arith.constant dense<0.000000e+00> : vector<256x32xf32>
    %5 = tpu.matmul %2, %4, %cst {dimension_numbers = #tpu.dot_dimension_numbers<[1], [0], [0], [1], [0, 0, 1, 1], [], []>} : vector<256x128xbf16>, vector<128x32xbf16>, vector<256x32xf32> -> vector<256x32xf32>
    %c0_5 = arith.constant 0 : index
    %c0_6 = arith.constant 0 : index
    %6 = vector.load %arg3[%c0_5, %c0_6] : memref<1x32xf32, #tpu.memory_space<vmem>>, vector<1x32xf32>
    %7 = vector.broadcast %6 : vector<1x32xf32> to vector<256x32xf32>
    %8 = arith.addf %5, %7 : vector<256x32xf32>
    %cst_7 = arith.constant 0.000000e+00 : f32
    %9 = vector.broadcast %cst_7 : f32 to vector<256x32xf32>
    %10 = arith.maximumf %8, %9 : vector<256x32xf32>
    %cst_8 = arith.constant 0.000000e+00 : bf16
    %11 = vector.broadcast %cst_8 : bf16 to vector<1x18x32xbf16>
    %cst_9 = arith.constant 0.000000e+00 : bf16
    %12 = vector.broadcast %cst_9 : bf16 to vector<18x1x32xbf16>
    %c0_10 = arith.constant 0 : index
    %c0_11 = arith.constant 0 : index
    %c0_12 = arith.constant 0 : index
    %13 = vector.load %arg9[%c0_10, %c0_11, %c0_12] : memref<18x18x32xbf16, #tpu.memory_space<vmem>>, vector<1x18x32xbf16>
    tpu.vector_store %arg9[%c0_10, %c0_11, %c0_12], %11 {strides = array<i32>} : memref<18x18x32xbf16, #tpu.memory_space<vmem>>, vector<1x18x32xbf16>,
    %c17 = arith.constant 17 : index
    %c0_13 = arith.constant 0 : index
    %c0_14 = arith.constant 0 : index
    %14 = vector.load %arg9[%c17, %c0_13, %c0_14] : memref<18x18x32xbf16, #tpu.memory_space<vmem>>, vector<1x18x32xbf16>
    tpu.vector_store %arg9[%c17, %c0_13, %c0_14], %11 {strides = array<i32>} : memref<18x18x32xbf16, #tpu.memory_space<vmem>>, vector<1x18x32xbf16>,
    %c0_15 = arith.constant 0 : index
    %c0_16 = arith.constant 0 : index
    %c0_17 = arith.constant 0 : index
    %15 = vector.load %arg9[%c0_15, %c0_16, %c0_17] : memref<18x18x32xbf16, #tpu.memory_space<vmem>>, vector<18x1x32xbf16>
    tpu.vector_store %arg9[%c0_15, %c0_16, %c0_17], %12 {strides = array<i32>} : memref<18x18x32xbf16, #tpu.memory_space<vmem>>, vector<18x1x32xbf16>,
    %c0_18 = arith.constant 0 : index
    %c17_19 = arith.constant 17 : index
    %c0_20 = arith.constant 0 : index
    %16 = vector.load %arg9[%c0_18, %c17_19, %c0_20] : memref<18x18x32xbf16, #tpu.memory_space<vmem>>, vector<18x1x32xbf16>
    tpu.vector_store %arg9[%c0_18, %c17_19, %c0_20], %12 {strides = array<i32>} : memref<18x18x32xbf16, #tpu.memory_space<vmem>>, vector<18x1x32xbf16>,
    %17 = vector.shape_cast %10 : vector<256x32xf32> to vector<16x16x32xf32>
    %18 = arith.truncf %17 : vector<16x16x32xf32> to vector<16x16x32xbf16>
    %c1 = arith.constant 1 : index
    %c1_21 = arith.constant 1 : index
    %c0_22 = arith.constant 0 : index
    %19 = vector.load %arg9[%c1, %c1_21, %c0_22] : memref<18x18x32xbf16, #tpu.memory_space<vmem>>, vector<16x16x32xbf16>
    tpu.vector_store %arg9[%c1, %c1_21, %c0_22], %18 {strides = array<i32>} : memref<18x18x32xbf16, #tpu.memory_space<vmem>>, vector<16x16x32xbf16>,
    %c0_23 = arith.constant 0 : index
    %c0_24 = arith.constant 0 : index
    %c0_25 = arith.constant 0 : index
    %20 = vector.load %arg9[%c0_23, %c0_24, %c0_25] : memref<18x18x32xbf16, #tpu.memory_space<vmem>>, vector<16x16x32xbf16>
    %21 = vector.shape_cast %20 : vector<16x16x32xbf16> to vector<256x32xbf16>
    %c0_26 = arith.constant 0 : index
    %c0_27 = arith.constant 0 : index
    %22 = vector.load %arg10[%c0_26, %c0_27] : memref<256x288xbf16, #tpu.memory_space<vmem>>, vector<256x32xbf16>
    tpu.vector_store %arg10[%c0_26, %c0_27], %21 {strides = array<i32>} : memref<256x288xbf16, #tpu.memory_space<vmem>>, vector<256x32xbf16>,
    %c0_28 = arith.constant 0 : index
    %c1_29 = arith.constant 1 : index
    %c0_30 = arith.constant 0 : index
    %23 = vector.load %arg9[%c0_28, %c1_29, %c0_30] : memref<18x18x32xbf16, #tpu.memory_space<vmem>>, vector<16x16x32xbf16>
    %24 = vector.shape_cast %23 : vector<16x16x32xbf16> to vector<256x32xbf16>
    %c0_31 = arith.constant 0 : index
    %c32 = arith.constant 32 : index
    %25 = vector.load %arg10[%c0_31, %c32] : memref<256x288xbf16, #tpu.memory_space<vmem>>, vector<256x32xbf16>
    tpu.vector_store %arg10[%c0_31, %c32], %24 {strides = array<i32>} : memref<256x288xbf16, #tpu.memory_space<vmem>>, vector<256x32xbf16>,
    %c0_32 = arith.constant 0 : index
    %c2 = arith.constant 2 : index
    %c0_33 = arith.constant 0 : index
    %26 = vector.load %arg9[%c0_32, %c2, %c0_33] : memref<18x18x32xbf16, #tpu.memory_space<vmem>>, vector<16x16x32xbf16>
    %27 = vector.shape_cast %26 : vector<16x16x32xbf16> to vector<256x32xbf16>
    %c0_34 = arith.constant 0 : index
    %c64 = arith.constant 64 : index
    %28 = vector.load %arg10[%c0_34, %c64] : memref<256x288xbf16, #tpu.memory_space<vmem>>, vector<256x32xbf16>
    tpu.vector_store %arg10[%c0_34, %c64], %27 {strides = array<i32>} : memref<256x288xbf16, #tpu.memory_space<vmem>>, vector<256x32xbf16>,
    %c1_35 = arith.constant 1 : index
    %c0_36 = arith.constant 0 : index
    %c0_37 = arith.constant 0 : index
    %29 = vector.load %arg9[%c1_35, %c0_36, %c0_37] : memref<18x18x32xbf16, #tpu.memory_space<vmem>>, vector<16x16x32xbf16>
    %30 = vector.shape_cast %29 : vector<16x16x32xbf16> to vector<256x32xbf16>
    %c0_38 = arith.constant 0 : index
    %c96 = arith.constant 96 : index
    %31 = vector.load %arg10[%c0_38, %c96] : memref<256x288xbf16, #tpu.memory_space<vmem>>, vector<256x32xbf16>
    tpu.vector_store %arg10[%c0_38, %c96], %30 {strides = array<i32>} : memref<256x288xbf16, #tpu.memory_space<vmem>>, vector<256x32xbf16>,
    %c1_39 = arith.constant 1 : index
    %c1_40 = arith.constant 1 : index
    %c0_41 = arith.constant 0 : index
    %32 = vector.load %arg9[%c1_39, %c1_40, %c0_41] : memref<18x18x32xbf16, #tpu.memory_space<vmem>>, vector<16x16x32xbf16>
    %33 = vector.shape_cast %32 : vector<16x16x32xbf16> to vector<256x32xbf16>
    %c0_42 = arith.constant 0 : index
    %c128 = arith.constant 128 : index
    %34 = vector.load %arg10[%c0_42, %c128] : memref<256x288xbf16, #tpu.memory_space<vmem>>, vector<256x32xbf16>
    tpu.vector_store %arg10[%c0_42, %c128], %33 {strides = array<i32>} : memref<256x288xbf16, #tpu.memory_space<vmem>>, vector<256x32xbf16>,
    %c1_43 = arith.constant 1 : index
    %c2_44 = arith.constant 2 : index
    %c0_45 = arith.constant 0 : index
    %35 = vector.load %arg9[%c1_43, %c2_44, %c0_45] : memref<18x18x32xbf16, #tpu.memory_space<vmem>>, vector<16x16x32xbf16>
    %36 = vector.shape_cast %35 : vector<16x16x32xbf16> to vector<256x32xbf16>
    %c0_46 = arith.constant 0 : index
    %c160 = arith.constant 160 : index
    %37 = vector.load %arg10[%c0_46, %c160] : memref<256x288xbf16, #tpu.memory_space<vmem>>, vector<256x32xbf16>
    tpu.vector_store %arg10[%c0_46, %c160], %36 {strides = array<i32>} : memref<256x288xbf16, #tpu.memory_space<vmem>>, vector<256x32xbf16>,
    %c2_47 = arith.constant 2 : index
    %c0_48 = arith.constant 0 : index
    %c0_49 = arith.constant 0 : index
    %38 = vector.load %arg9[%c2_47, %c0_48, %c0_49] : memref<18x18x32xbf16, #tpu.memory_space<vmem>>, vector<16x16x32xbf16>
    %39 = vector.shape_cast %38 : vector<16x16x32xbf16> to vector<256x32xbf16>
    %c0_50 = arith.constant 0 : index
    %c192 = arith.constant 192 : index
    %40 = vector.load %arg10[%c0_50, %c192] : memref<256x288xbf16, #tpu.memory_space<vmem>>, vector<256x32xbf16>
    tpu.vector_store %arg10[%c0_50, %c192], %39 {strides = array<i32>} : memref<256x288xbf16, #tpu.memory_space<vmem>>, vector<256x32xbf16>,
    %c2_51 = arith.constant 2 : index
    %c1_52 = arith.constant 1 : index
    %c0_53 = arith.constant 0 : index
    %41 = vector.load %arg9[%c2_51, %c1_52, %c0_53] : memref<18x18x32xbf16, #tpu.memory_space<vmem>>, vector<16x16x32xbf16>
    %42 = vector.shape_cast %41 : vector<16x16x32xbf16> to vector<256x32xbf16>
    %c0_54 = arith.constant 0 : index
    %c224 = arith.constant 224 : index
    %43 = vector.load %arg10[%c0_54, %c224] : memref<256x288xbf16, #tpu.memory_space<vmem>>, vector<256x32xbf16>
    tpu.vector_store %arg10[%c0_54, %c224], %42 {strides = array<i32>} : memref<256x288xbf16, #tpu.memory_space<vmem>>, vector<256x32xbf16>,
    %c2_55 = arith.constant 2 : index
    %c2_56 = arith.constant 2 : index
    %c0_57 = arith.constant 0 : index
    %44 = vector.load %arg9[%c2_55, %c2_56, %c0_57] : memref<18x18x32xbf16, #tpu.memory_space<vmem>>, vector<16x16x32xbf16>
    %45 = vector.shape_cast %44 : vector<16x16x32xbf16> to vector<256x32xbf16>
    %c0_58 = arith.constant 0 : index
    %c256 = arith.constant 256 : index
    %46 = vector.load %arg10[%c0_58, %c256] : memref<256x288xbf16, #tpu.memory_space<vmem>>, vector<256x32xbf16>
    tpu.vector_store %arg10[%c0_58, %c256], %45 {strides = array<i32>} : memref<256x288xbf16, #tpu.memory_space<vmem>>, vector<256x32xbf16>,
    %c0_59 = arith.constant 0 : index
    %c0_60 = arith.constant 0 : index
    %47 = vector.load %arg10[%c0_59, %c0_60] : memref<256x288xbf16, #tpu.memory_space<vmem>>, vector<256x288xbf16>
    %c0_61 = arith.constant 0 : index
    %c0_62 = arith.constant 0 : index
    %48 = vector.load %arg4[%c0_61, %c0_62] : memref<288x32xbf16, #tpu.memory_space<vmem>>, vector<288x32xbf16>
    %cst_63 = arith.constant dense<0.000000e+00> : vector<256x32xf32>
    %49 = tpu.matmul %47, %48, %cst_63 {dimension_numbers = #tpu.dot_dimension_numbers<[1], [0], [0], [1], [0, 0, 1, 1], [], []>} : vector<256x288xbf16>, vector<288x32xbf16>, vector<256x32xf32> -> vector<256x32xf32>
    %c0_64 = arith.constant 0 : index
    %c0_65 = arith.constant 0 : index
    %50 = vector.load %arg5[%c0_64, %c0_65] : memref<1x32xf32, #tpu.memory_space<vmem>>, vector<1x32xf32>
    %51 = vector.broadcast %50 : vector<1x32xf32> to vector<256x32xf32>
    %52 = arith.addf %49, %51 : vector<256x32xf32>
    %cst_66 = arith.constant 0.000000e+00 : f32
    %53 = vector.broadcast %cst_66 : f32 to vector<256x32xf32>
    %54 = arith.maximumf %52, %53 : vector<256x32xf32>
    %55 = arith.truncf %54 : vector<256x32xf32> to vector<256x32xbf16>
    %c0_67 = arith.constant 0 : index
    %c0_68 = arith.constant 0 : index
    %56 = vector.load %arg6[%c0_67, %c0_68] : memref<32x128xbf16, #tpu.memory_space<vmem>>, vector<32x128xbf16>
    %cst_69 = arith.constant dense<0.000000e+00> : vector<256x128xf32>
    %57 = tpu.matmul %55, %56, %cst_69 {dimension_numbers = #tpu.dot_dimension_numbers<[1], [0], [0], [1], [0, 0, 1, 1], [], []>} : vector<256x32xbf16>, vector<32x128xbf16>, vector<256x128xf32> -> vector<256x128xf32>
    %c0_70 = arith.constant 0 : index
    %c0_71 = arith.constant 0 : index
    %58 = vector.load %arg7[%c0_70, %c0_71] : memref<1x128xf32, #tpu.memory_space<vmem>>, vector<1x128xf32>
    %59 = vector.broadcast %58 : vector<1x128xf32> to vector<256x128xf32>
    %60 = arith.addf %57, %59 : vector<256x128xf32>
    %61 = arith.addf %60, %3 : vector<256x128xf32>
    %cst_72 = arith.constant 0.000000e+00 : f32
    %62 = vector.broadcast %cst_72 : f32 to vector<256x128xf32>
    %63 = arith.maximumf %61, %62 : vector<256x128xf32>
    %64 = vector.shape_cast %63 : vector<256x128xf32> to vector<16x16x128xf32>
    %65 = arith.truncf %64 : vector<16x16x128xf32> to vector<16x16x128xbf16>
    %c0_73 = arith.constant 0 : index
    %c0_74 = arith.constant 0 : index
    %c0_75 = arith.constant 0 : index
    %c0_76 = arith.constant 0 : index
    %66 = vector.load %arg8[%c0_73, %c0_74, %c0_75, %c0_76] : memref<1x16x16x128xbf16, #tpu.memory_space<vmem>>, vector<1x16x16x128xbf16>
    %67 = vector.shape_cast %66 : vector<1x16x16x128xbf16> to vector<16x16x128xbf16>
    %68 = vector.shape_cast %65 : vector<16x16x128xbf16> to vector<1x16x16x128xbf16>
    tpu.vector_store %arg8[%c0_73, %c0_74, %c0_75, %c0_76], %68 {strides = array<i32>} : memref<1x16x16x128xbf16, #tpu.memory_space<vmem>>, vector<1x16x16x128xbf16>,
    return
  }
  func.func @transform_0(%arg0: i32) -> (i32, i32, i32, i32) {
    %c0_i32 = arith.constant 0 : i32
    %c0_i32_0 = arith.constant 0 : i32
    %c0_i32_1 = arith.constant 0 : i32
    %c0_i32_2 = arith.constant 0 : i32
    return %arg0, %c0_i32, %c0_i32_0, %c0_i32_1 : i32, i32, i32, i32
  }
  func.func @transform_1(%arg0: i32) -> (i32, i32) {
    %c0_i32 = arith.constant 0 : i32
    %c0_i32_0 = arith.constant 0 : i32
    %c0_i32_1 = arith.constant 0 : i32
    return %c0_i32, %c0_i32_0 : i32, i32
  }
  func.func @transform_2(%arg0: i32) -> (i32, i32) {
    %c0_i32 = arith.constant 0 : i32
    %c0_i32_0 = arith.constant 0 : i32
    %c0_i32_1 = arith.constant 0 : i32
    return %c0_i32, %c0_i32_0 : i32, i32
  }
  func.func @transform_3(%arg0: i32) -> (i32, i32) {
    %c0_i32 = arith.constant 0 : i32
    %c0_i32_0 = arith.constant 0 : i32
    %c0_i32_1 = arith.constant 0 : i32
    return %c0_i32, %c0_i32_0 : i32, i32
  }
  func.func @transform_4(%arg0: i32) -> (i32, i32) {
    %c0_i32 = arith.constant 0 : i32
    %c0_i32_0 = arith.constant 0 : i32
    %c0_i32_1 = arith.constant 0 : i32
    return %c0_i32, %c0_i32_0 : i32, i32
  }
  func.func @transform_5(%arg0: i32) -> (i32, i32) {
    %c0_i32 = arith.constant 0 : i32
    %c0_i32_0 = arith.constant 0 : i32
    %c0_i32_1 = arith.constant 0 : i32
    return %c0_i32, %c0_i32_0 : i32, i32
  }
  func.func @transform_6(%arg0: i32) -> (i32, i32) {
    %c0_i32 = arith.constant 0 : i32
    %c0_i32_0 = arith.constant 0 : i32
    %c0_i32_1 = arith.constant 0 : i32
    return %c0_i32, %c0_i32_0 : i32, i32
  }
  func.func @transform_7(%arg0: i32) -> (i32, i32, i32, i32) {
    %c0_i32 = arith.constant 0 : i32
    %c0_i32_0 = arith.constant 0 : i32
    %c0_i32_1 = arith.constant 0 : i32
    %c0_i32_2 = arith.constant 0 : i32
    return %arg0, %c0_i32, %c0_i32_0, %c0_i32_1 : i32, i32, i32, i32
  }
}

</mosaic_0001>

<llo_original>
// kernel: tpu_custom_call.1
$region0: #{tpu_custom_call.1}
  #allocation0 [shape = 'u32[]', space=smem, size = 0x4, offset = 0x4, fixed_abs, tag = 'smem constant byte address 0x4 - core index']
  #allocation1 [shape = 'u32[144,128]{1,0:T(1,128)}', space=vmem, size = 0x12000, scoped, tag = 'internal scratch']
  #allocation2 [shape = 'bf16[18,18,32]{2,1,0:T(8,128)(2,1)}', space=vmem, size = 0x1b000, scoped, tag = 'scratch operand']
  #allocation3 [shape = 'bf16[256,288]{1,0:T(16,128)(2,1)}', space=vmem, size = 0x30000, scoped, tag = 'scratch operand']
  %s0 = inlined_call_operand.vmem [shape: bf16[2,16,16,128], index: 0, kind: input, shape index: {}]
  %s1 = inlined_call_operand.vmem [shape: bf16[128,32], index: 1, kind: input, shape index: {}]
  %s2 = inlined_call_operand.vmem [shape: f32[1,32], index: 2, kind: input, shape index: {}]
  %s3 = inlined_call_operand.vmem [shape: bf16[288,32], index: 3, kind: input, shape index: {}]
  %s4 = inlined_call_operand.vmem [shape: f32[1,32], index: 4, kind: input, shape index: {}]
  %s5 = inlined_call_operand.vmem [shape: bf16[32,128], index: 5, kind: input, shape index: {}]
  %s6 = inlined_call_operand.vmem [shape: f32[1,128], index: 6, kind: input, shape index: {}]
  %s7 = inlined_call_operand.hbm [shape: bf16[2,16,16,128], index: 7, kind: output, shape index: {}]
  %s8 = sld [smem:[#allocation0]]
  $region61: #{tpu_custom_call.1} parent=0
    _
  %s10 = ssub.s32 1, %s8
  %s11 = scalar_select 0, %s10, %s8
  $region1: #{tpu_custom_call.1} parent=0
    #allocation4 [shape = 'u8[131072]{0}', space=vmem, size = 0x20000, scoped, tag = 'output window, operand 0']
    #allocation5 [shape = 's32[2]{0}', space=sflag, size = 0x8, scoped, tag = 'scoped memory for tpu_custom_call.1']
    %12 = vsyncpa [#allocation5], 0
    %s13 = scalar_lea.sflag [#allocation5], 1
    %14 = vsyncpa %s13, 0
    loop: start=0, step=1, limit=4
    $region2: #{tpu_custom_call.1} parent=1 // loop_pre_header
      _
    $region3: #{tpu_custom_call.1} parent=1 // loop_header
      %s16 = sphi 0, %s20
      %p17 = scmp.ge.s32.totalorder %s16, 4
      %s26 = sphi 0, %s28
      %s29 = sphi 0, %s26
      %s30 = sphi 0, %s29
      %s46 = sphi 0, %s30
      %s50 = sphi 0, %s50
      %s52 = sphi 0, %s50
      %s53 = sphi 0, %s52
      %s67 = sphi 0, %s53
      %s71 = sphi 0, %s71
      %s73 = sphi 0, %s71
      %s74 = sphi 0, %s73
      %s88 = sphi 0, %s74
      %s92 = sphi 0, %s92
      %s94 = sphi 0, %s92
      %s95 = sphi 0, %s94
      %s109 = sphi 0, %s95
      %s113 = sphi 0, %s113
      %s115 = sphi 0, %s113
      %s116 = sphi 0, %s115
      %s130 = sphi 0, %s116
      %s134 = sphi 0, %s134
      %s136 = sphi 0, %s134
      %s137 = sphi 0, %s136
      %s151 = sphi 0, %s137
      %s155 = sphi 0, %s155
      %s157 = sphi 0, %s155
      %s158 = sphi 0, %s157
      %s172 = sphi 0, %s158
      %s178 = sphi 0, %s180
      %s181 = sphi 0, %s178
      %s182 = sphi 0, %s181
      %s198 = sphi 0, %s182
    $region4: #{tpu_custom_call.1} parent=1 // loop_header_branch
      %19 = sbr.rel (%p17) target = $region8
    $region5: #{tpu_custom_call.1} parent=1 // loop_body
      %s21 = ssub.s32 %s16, 1
      %s22 = ssub.s32 %s16, 2
      %s23 = sadd.s32 %s16, 1
      %s24 = ssub.s32 %s16, %s23
      %p25 = scmp.eq.s32.totalorder %s24, 0
      %s27 = sadd.s32 %s26, 1
      %s28 = scalar_select %p25, %s26, %s27
      %p31 = pneg %p25
      %p32 = scmp.eq.s32.totalorder %s16, 1
      %p33 = por %p31, %p32
      %p34 = scmp.ne.s32.totalorder %s26, %s29
      %p35 = scmp.eq.s32.totalorder %s16, 0
      %p36 = por %p34, %p35
      %p37 = scmp.ne.s32.totalorder %s26, %s29
      %p38 = scmp.eq.s32.totalorder %s21, 1
      %p39 = por %p37, %p38
      %p40 = scmp.ne.s32.totalorder %s29, %s30
      %p41 = scmp.eq.s32.totalorder %s21, 0
      %p42 = por %p40, %p41
      %p43 = scmp.ne.s32.totalorder %s29, %s30
      %p44 = scmp.eq.s32.totalorder %s22, 1
      %p45 = por %p43, %p44
      %p47 = scmp.ne.s32.totalorder %s30, %s46
      %p48 = scmp.eq.s32.totalorder %s22, 0
      %p49 = por %p47, %p48
      %s51 = sadd.s32 %s50, 1
      %p54 = scmp.eq.s32.totalorder %s16, 1
      %p55 = scmp.ne.s32.totalorder %s50, %s52
      %p56 = scmp.eq.s32.totalorder %s16, 0
      %p57 = por %p55, %p56
      %p58 = scmp.ne.s32.totalorder %s50, %s52
      %p59 = scmp.eq.s32.totalorder %s21, 1
      %p60 = por %p58, %p59
      %p61 = scmp.ne.s32.totalorder %s52, %s53
      %p62 = scmp.eq.s32.totalorder %s21, 0
      %p63 = por %p61, %p62
      %p64 = scmp.ne.s32.totalorder %s52, %s53
      %p65 = scmp.eq.s32.totalorder %s22, 1
      %p66 = por %p64, %p65
      %p68 = scmp.ne.s32.totalorder %s53, %s67
      %p69 = scmp.eq.s32.totalorder %s22, 0
      %p70 = por %p68, %p69
      %s72 = sadd.s32 %s71, 1
      %p75 = scmp.eq.s32.totalorder %s16, 1
      %p76 = scmp.ne.s32.totalorder %s71, %s73
      %p77 = scmp.eq.s32.totalorder %s16, 0
      %p78 = por %p76, %p77
      %p79 = scmp.ne.s32.totalorder %s71, %s73
      %p80 = scmp.eq.s32.totalorder %s21, 1
      %p81 = por %p79, %p80
      %p82 = scmp.ne.s32.totalorder %s73, %s74
      %p83 = scmp.eq.s32.totalorder %s21, 0
      %p84 = por %p82, %p83
      %p85 = scmp.ne.s32.totalorder %s73, %s74
      %p86 = scmp.eq.s32.totalorder %s22, 1
      %p87 = por %p85, %p86
      %p89 = scmp.ne.s32.totalorder %s74, %s88
      %p90 = scmp.eq.s32.totalorder %s22, 0
      %p91 = por %p89, %p90
      %s93 = sadd.s32 %s92, 1
      %p96 = scmp.eq.s32.totalorder %s16, 1
      %p97 = scmp.ne.s32.totalorder %s92, %s94
      %p98 = scmp.eq.s32.totalorder %s16, 0
      %p99 = por %p97, %p98
      %p100 = scmp.ne.s32.totalorder %s92, %s94
      %p101 = scmp.eq.s32.totalorder %s21, 1
      %p102 = por %p100, %p101
      %p103 = scmp.ne.s32.totalorder %s94, %s95
      %p104 = scmp.eq.s32.totalorder %s21, 0
      %p105 = por %p103, %p104
      %p106 = scmp.ne.s32.totalorder %s94, %s95
      %p107 = scmp.eq.s32.totalorder %s22, 1
      %p108 = por %p106, %p107
      %p110 = scmp.ne.s32.totalorder %s95, %s109
      %p111 = scmp.eq.s32.totalorder %s22, 0
      %p112 = por %p110, %p111
      %s114 = sadd.s32 %s113, 1
      %p117 = scmp.eq.s32.totalorder %s16, 1
      %p118 = scmp.ne.s32.totalorder %s113, %s115
      %p119 = scmp.eq.s32.totalorder %s16, 0
      %p120 = por %p118, %p119
      %p121 = scmp.ne.s32.totalorder %s113, %s115
      %p122 = scmp.eq.s32.totalorder %s21, 1
      %p123 = por %p121, %p122
      %p124 = scmp.ne.s32.totalorder %s115, %s116
      %p125 = scmp.eq.s32.totalorder %s21, 0
      %p126 = por %p124, %p125
      %p127 = scmp.ne.s32.totalorder %s115, %s116
      %p128 = scmp.eq.s32.totalorder %s22, 1
      %p129 = por %p127, %p128
      %p131 = scmp.ne.s32.totalorder %s116, %s130
      %p132 = scmp.eq.s32.totalorder %s22, 0
      %p133 = por %p131, %p132
      %s135 = sadd.s32 %s134, 1
      %p138 = scmp.eq.s32.totalorder %s16, 1
      %p139 = scmp.ne.s32.totalorder %s134, %s136
      %p140 = scmp.eq.s32.totalorder %s16, 0
      %p141 = por %p139, %p140
      %p142 = scmp.ne.s32.totalorder %s134, %s136
      %p143 = scmp.eq.s32.totalorder %s21, 1
      %p144 = por %p142, %p143
      %p145 = scmp.ne.s32.totalorder %s136, %s137
      %p146 = scmp.eq.s32.totalorder %s21, 0
      %p147 = por %p145, %p146
      %p148 = scmp.ne.s32.totalorder %s136, %s137
      %p149 = scmp.eq.s32.totalorder %s22, 1
      %p150 = por %p148, %p149
      %p152 = scmp.ne.s32.totalorder %s137, %s151
      %p153 = scmp.eq.s32.totalorder %s22, 0
      %p154 = por %p152, %p153
      %s156 = sadd.s32 %s155, 1
      %p159 = scmp.eq.s32.totalorder %s16, 1
      %p160 = scmp.ne.s32.totalorder %s155, %s157
      %p161 = scmp.eq.s32.totalorder %s16, 0
      %p162 = por %p160, %p161
      %p163 = scmp.ne.s32.totalorder %s155, %s157
      %p164 = scmp.eq.s32.totalorder %s21, 1
      %p165 = por %p163, %p164
      %p166 = scmp.ne.s32.totalorder %s157, %s158
      %p167 = scmp.eq.s32.totalorder %s21, 0
      %p168 = por %p166, %p167
      %p169 = scmp.ne.s32.totalorder %s157, %s158
      %p170 = scmp.eq.s32.totalorder %s22, 1
      %p171 = por %p169, %p170
      %p173 = scmp.ne.s32.totalorder %s158, %s172
      %p174 = scmp.eq.s32.totalorder %s22, 0
      %p175 = por %p173, %p174
      %s176 = ssub.s32 %s16, %s23
      %p177 = scmp.eq.s32.totalorder %s176, 0
      %s179 = sadd.s32 %s178, 1
      %s180 = scalar_select %p177, %s178, %s179
      %p183 = pneg %p177
      %p184 = scmp.eq.s32.totalorder %s16, 1
      %p185 = por %p183, %p184
      %p186 = scmp.ne.s32.totalorder %s178, %s181
      %p187 = scmp.eq.s32.totalorder %s16, 0
      %p188 = por %p186, %p187
      %p189 = scmp.ne.s32.totalorder %s178, %s181
      %p190 = scmp.eq.s32.totalorder %s21, 1
      %p191 = por %p189, %p190
      %p192 = scmp.ne.s32.totalorder %s181, %s182
      %p193 = scmp.eq.s32.totalorder %s21, 0
      %p194 = por %p192, %p193
      %p195 = scmp.ne.s32.totalorder %s181, %s182
      %p196 = scmp.eq.s32.totalorder %s22, 1
      %p197 = por %p195, %p196
      %p199 = scmp.ne.s32.totalorder %s182, %s198
      %p200 = scmp.eq.s32.totalorder %s22, 0
      %p201 = por %p199, %p200
      %p202 = scmp.le.s32.totalorder 1, %s16
      %p203 = scmp.lt.s32.totalorder %s16, 3
      %p204 = pnand %p202, %p203
      %p205 = pneg %p204
      // Predicated region
      $region9: #{tpu_custom_call.1} parent=5 // pred_check
        _
      $region10: #{tpu_custom_call.1} parent=5 // pred_check_branch
        %207 = sbr.rel (%p204) target = $region12
      $region11: #{tpu_custom_call.1} parent=5 // pred_region
        %s208 = ssub.s32 %s16, 1
        // Predicated region
        $region13: #{tpu_custom_call.1} parent=11 // pred_check
          %p209 = pneg %p63
        $region14: #{tpu_custom_call.1} parent=11 // pred_check_branch
          %211 = sbr.rel (%p209) target = $region16
        $region15: #{tpu_custom_call.1} parent=11 // pred_region
          _
        $region16: #{tpu_custom_call.1} parent=11 // pred_fallthru
          _
        // Predicated region
        $region17: #{tpu_custom_call.1} parent=11 // pred_check
          %p212 = pneg %p84
        $region18: #{tpu_custom_call.1} parent=11 // pred_check_branch
          %214 = sbr.rel (%p212) target = $region20
        $region19: #{tpu_custom_call.1} parent=11 // pred_region
          _
        $region20: #{tpu_custom_call.1} parent=11 // pred_fallthru
          _
        // Predicated region
        $region21: #{tpu_custom_call.1} parent=11 // pred_check
          %p215 = pneg %p105
        $region22: #{tpu_custom_call.1} parent=11 // pred_check_branch
          %217 = sbr.rel (%p215) target = $region24
        $region23: #{tpu_custom_call.1} parent=11 // pred_region
          _
        $region24: #{tpu_custom_call.1} parent=11 // pred_fallthru
          _
        // Predicated region
        $region25: #{tpu_custom_call.1} parent=11 // pred_check
          %p218 = pneg %p126
        $region26: #{tpu_custom_call.1} parent=11 // pred_check_branch
          %220 = sbr.rel (%p218) target = $region28
        $region27: #{tpu_custom_call.1} parent=11 // pred_region
          _
        $region28: #{tpu_custom_call.1} parent=11 // pred_fallthru
          _
        // Predicated region
        $region29: #{tpu_custom_call.1} parent=11 // pred_check
          %p221 = pneg %p147
        $region30: #{tpu_custom_call.1} parent=11 // pred_check_branch
          %223 = sbr.rel (%p221) target = $region32
        $region31: #{tpu_custom_call.1} parent=11 // pred_region
          _
        $region32: #{tpu_custom_call.1} parent=11 // pred_fallthru
          _
        // Predicated region
        $region33: #{tpu_custom_call.1} parent=11 // pred_check
          %p224 = pneg %p168
        $region34: #{tpu_custom_call.1} parent=11 // pred_check_branch
          %226 = sbr.rel (%p224) target = $region36
        $region35: #{tpu_custom_call.1} parent=11 // pred_region
          _
        $region36: #{tpu_custom_call.1} parent=11 // pred_fallthru
          _
      $region12: #{tpu_custom_call.1} parent=5 // pred_fallthru
        _
      %p227 = scmp.lt.s32.totalorder %s16, 2
      // Predicated region
      $region37: #{tpu_custom_call.1} parent=5 // pred_check
        %p228 = pneg %p227
      $region38: #{tpu_custom_call.1} parent=5 // pred_check_branch
        %230 = sbr.rel (%p228) target = $region40
      $region39: #{tpu_custom_call.1} parent=5 // pred_region
        // Predicated region
        $region41: #{tpu_custom_call.1} parent=39 // pred_check
          %p231 = pneg %p36
        $region42: #{tpu_custom_call.1} parent=39 // pred_check_branch
          %233 = sbr.rel (%p231) target = $region44
        $region43: #{tpu_custom_call.1} parent=39 // pred_region
          %p234 = scmp.lt.s32.totalorder %s16, 1
          %s235 = scalar_select %p234, %s16, 1
          %s236 = smul.addr %s235, 32
          %s237 = smul.addr %s236, 4
          %s238 = scalar_lea.vmem %s0, %s237
        $region44: #{tpu_custom_call.1} parent=39 // pred_fallthru
          _
      $region40: #{tpu_custom_call.1} parent=5 // pred_fallthru
        _
      %p239 = scmp.le.s32.totalorder 1, %s16
      %p240 = scmp.lt.s32.totalorder %s16, 3
      %p241 = pnand %p239, %p240
      %p242 = pneg %p241
      // Predicated region
      $region45: #{tpu_custom_call.1} parent=5 // pred_check
        _
      $region46: #{tpu_custom_call.1} parent=5 // pred_check_branch
        %244 = sbr.rel (%p241) target = $region48
      $region47: #{tpu_custom_call.1} parent=5 // pred_region
        %s245 = ssub.s32 %s16, 1
        %p246 = scmp.lt.s32.totalorder %s21, 1
        %s247 = scalar_select %p246, %s21, 1
        %s248 = smul.addr %s247, 32
        %s249 = smul.addr %s248, 4
        %s250 = scalar_lea.vmem %s0, %s249
        %p251 = pneg %p42
        %p252 = pneg %p39
        %p253 = pneg %p63
        %p254 = pneg %p60
        %p255 = pneg %p84
        %p256 = pneg %p81
        %p257 = pneg %p105
        %p258 = pneg %p102
        %p259 = pneg %p126
        %p260 = pneg %p123
        %p261 = pneg %p147
        %p262 = pneg %p144
        %p263 = pneg %p168
        %p264 = pneg %p165
        %p265 = pneg %p194
        %p266 = pneg %p191
        %s267 = sand.u32 %s181, 1
        %s268 = scalar_lea.sflag [#allocation5], %s267
        %s269 = sand.u32 %s181, 1
        %s270 = smul.addr %s269, 128
        %s271 = scalar_lea.vmem [#allocation4], %s270
        %p272 = scmp.lt.s32.totalorder %s21, 1
        %s273 = scalar_select %p272, %s21, 1
        %s274 = smul.addr %s273, 32
        %s275 = smul.addr %s274, 4
        %s276 = scalar_lea.vmem %s0, %s275
        %v278 = vld [vmem:[%s276] sm:$0xf]
        %v279 = vld [vmem:[%s276 + $0x4] sm:$0xf]
        %v280 = vld [vmem:[%s276 + $0x8] sm:$0xf]
        %v281 = vld [vmem:[%s276 + $0xc] sm:$0xf]
        %v282 = vld [vmem:[%s276 + $0x10] sm:$0xf]
        %v283 = vld [vmem:[%s276 + $0x14] sm:$0xf]
        %v284 = vld [vmem:[%s276 + $0x18] sm:$0xf]
        %v285 = vld [vmem:[%s276 + $0x1c] sm:$0xf]
        %v286 = vld [vmem:[%s276 + $0x20] sm:$0xf]
        %v287 = vld [vmem:[%s276 + $0x24] sm:$0xf]
        %v288 = vld [vmem:[%s276 + $0x28] sm:$0xf]
        %v289 = vld [vmem:[%s276 + $0x2c] sm:$0xf]
        %v290 = vld [vmem:[%s276 + $0x30] sm:$0xf]
        %v291 = vld [vmem:[%s276 + $0x34] sm:$0xf]
        %v292 = vld [vmem:[%s276 + $0x38] sm:$0xf]
        %v293 = vld [vmem:[%s276 + $0x3c] sm:$0xf]
        %v294 = vld [vmem:[%s276 + $0x40] sm:$0xf]
        %v295 = vld [vmem:[%s276 + $0x44] sm:$0xf]
        %v296 = vld [vmem:[%s276 + $0x48] sm:$0xf]
        %v297 = vld [vmem:[%s276 + $0x4c] sm:$0xf]
        %v298 = vld [vmem:[%s276 + $0x50] sm:$0xf]
        %v299 = vld [vmem:[%s276 + $0x54] sm:$0xf]
        %v300 = vld [vmem:[%s276 + $0x58] sm:$0xf]
        %v301 = vld [vmem:[%s276 + $0x5c] sm:$0xf]
        %v302 = vld [vmem:[%s276 + $0x60] sm:$0xf]
        %v303 = vld [vmem:[%s276 + $0x64] sm:$0xf]
        %v304 = vld [vmem:[%s276 + $0x68] sm:$0xf]
        %v305 = vld [vmem:[%s276 + $0x6c] sm:$0xf]
        %v306 = vld [vmem:[%s276 + $0x70] sm:$0xf]
        %v307 = vld [vmem:[%s276 + $0x74] sm:$0xf]
        %v308 = vld [vmem:[%s276 + $0x78] sm:$0xf]
        %v309 = vld [vmem:[%s276 + $0x7c] sm:$0xf]
        %v310 = vunpack.c.l.bf16 %v278
        %v311 = vunpack.c.l.bf16 %v279
        %v312 = vunpack.c.l.bf16 %v280
        %v313 = vunpack.c.l.bf16 %v281
        %v314 = vunpack.c.l.bf16 %v282
        %v315 = vunpack.c.l.bf16 %v283
        %v316 = vunpack.c.l.bf16 %v284
        %v317 = vunpack.c.l.bf16 %v285
        %v318 = vunpack.c.l.bf16 %v286
        %v319 = vunpack.c.l.bf16 %v287
        %v320 = vunpack.c.l.bf16 %v288
        %v321 = vunpack.c.l.bf16 %v289
        %v322 = vunpack.c.l.bf16 %v290
        %v323 = vunpack.c.l.bf16 %v291
        %v324 = vunpack.c.l.bf16 %v292
        %v325 = vunpack.c.l.bf16 %v293
        %v326 = vunpack.c.l.bf16 %v294
        %v327 = vunpack.c.l.bf16 %v295
        %v328 = vunpack.c.l.bf16 %v296
        %v329 = vunpack.c.l.bf16 %v297
        %v330 = vunpack.c.l.bf16 %v298
        %v331 = vunpack.c.l.bf16 %v299
        %v332 = vunpack.c.l.bf16 %v300
        %v333 = vunpack.c.l.bf16 %v301
        %v334 = vunpack.c.l.bf16 %v302
        %v335 = vunpack.c.l.bf16 %v303
        %v336 = vunpack.c.l.bf16 %v304
        %v337 = vunpack.c.l.bf16 %v305
        %v338 = vunpack.c.l.bf16 %v306
        %v339 = vunpack.c.l.bf16 %v307
        %v340 = vunpack.c.l.bf16 %v308
        %v341 = vunpack.c.l.bf16 %v309
        %v342 = vld [vmem:[%s1] sm:$0xf]
        %v343 = vld [vmem:[%s1 + $0x4] sm:$0xf]
        %v344 = vld [vmem:[%s1 + $0x8] sm:$0xf]
        %v345 = vld [vmem:[%s1 + $0xc] sm:$0xf]
        %v346 = vld [vmem:[%s1 + $0x10] sm:$0xf]
        %v347 = vld [vmem:[%s1 + $0x14] sm:$0xf]
        %v348 = vld [vmem:[%s1 + $0x18] sm:$0xf]
        %v349 = vld [vmem:[%s1 + $0x1c] sm:$0xf]
        %v350 = vld [vmem:[%s1 + $0x20] sm:$0xf]
        %v351 = vld [vmem:[%s1 + $0x24] sm:$0xf]
        %v352 = vld [vmem:[%s1 + $0x28] sm:$0xf]
        %v353 = vld [vmem:[%s1 + $0x2c] sm:$0xf]
        %v354 = vld [vmem:[%s1 + $0x30] sm:$0xf]
        %v355 = vld [vmem:[%s1 + $0x34] sm:$0xf]
        %v356 = vld [vmem:[%s1 + $0x38] sm:$0xf]
        %v357 = vld [vmem:[%s1 + $0x3c] sm:$0xf]
        %v358 = vld [vmem:[%s2] sm:$0x1]
        %v360 = vlaneseq
        %v361 = vshrl.u32 %v360, 7
        %v362 = vsub.s32 0, %v361
        %v363 = vrot.slane %v358, %v362
        %v397 = vunpack.c.l.b16 %v278
        %v398 = vunpack.c.l.b16 %v279
        %v399 = vunpack.c.l.b16 %v280
        %v400 = vunpack.c.l.b16 %v281
        %v401 = vunpack.c.l.b16 %v282
        %v402 = vunpack.c.l.b16 %v283
        %v403 = vunpack.c.l.b16 %v284
        %v404 = vunpack.c.l.b16 %v285
        %v405 = vunpack.c.l.b16 %v286
        %v406 = vunpack.c.l.b16 %v287
        %v407 = vunpack.c.l.b16 %v288
        %v408 = vunpack.c.l.b16 %v289
        %v409 = vunpack.c.l.b16 %v290
        %v410 = vunpack.c.l.b16 %v291
        %v411 = vunpack.c.l.b16 %v292
        %v412 = vunpack.c.l.b16 %v293
        %v413 = vunpack.c.l.b16 %v294
        %v414 = vunpack.c.l.b16 %v295
        %v415 = vunpack.c.l.b16 %v296
        %v416 = vunpack.c.l.b16 %v297
        %v417 = vunpack.c.l.b16 %v298
        %v418 = vunpack.c.l.b16 %v299
        %v419 = vunpack.c.l.b16 %v300
        %v420 = vunpack.c.l.b16 %v301
        %v421 = vunpack.c.l.b16 %v302
        %v422 = vunpack.c.l.b16 %v303
        %v423 = vunpack.c.l.b16 %v304
        %v424 = vunpack.c.l.b16 %v305
        %v425 = vunpack.c.l.b16 %v306
        %v426 = vunpack.c.l.b16 %v307
        %v427 = vunpack.c.l.b16 %v308
        %v428 = vunpack.c.l.b16 %v309
        %v429 = vpack.c.b16 %v398, %v397
        %v430 = vpack.c.b16 %v400, %v399
        %v431 = vpack.c.b16 %v402, %v401
        %v432 = vpack.c.b16 %v404, %v403
        %v433 = vpack.c.b16 %v406, %v405
        %v434 = vpack.c.b16 %v408, %v407
        %v435 = vpack.c.b16 %v410, %v409
        %v436 = vpack.c.b16 %v412, %v411
        %v437 = vpack.c.b16 %v414, %v413
        %v438 = vpack.c.b16 %v416, %v415
        %v439 = vpack.c.b16 %v418, %v417
        %v440 = vpack.c.b16 %v420, %v419
        %v441 = vpack.c.b16 %v422, %v421
        %v442 = vpack.c.b16 %v424, %v423
        %v443 = vpack.c.b16 %v426, %v425
        %v444 = vpack.c.b16 %v428, %v427
        %v477 = vunpack.c.l.b16 %v342
        %v478 = vunpack.c.l.b16 %v343
        %v479 = vunpack.c.l.b16 %v344
        %v480 = vunpack.c.l.b16 %v345
        %v481 = vunpack.c.l.b16 %v346
        %v482 = vunpack.c.l.b16 %v347
        %v483 = vunpack.c.l.b16 %v348
        %v484 = vunpack.c.l.b16 %v349
        %v485 = vunpack.c.l.b16 %v350
        %v486 = vunpack.c.l.b16 %v351
        %v487 = vunpack.c.l.b16 %v352
        %v488 = vunpack.c.l.b16 %v353
        %v489 = vunpack.c.l.b16 %v354
        %v490 = vunpack.c.l.b16 %v355
        %v491 = vunpack.c.l.b16 %v356
        %v492 = vunpack.c.l.b16 %v357
        %v493 = vpack.c.b16 %v478, %v477
        %v494 = vpack.c.b16 %v480, %v479
        %v495 = vpack.c.b16 %v482, %v481
        %v496 = vpack.c.b16 %v484, %v483
        %v497 = vpack.c.b16 %v486, %v485
        %v498 = vpack.c.b16 %v488, %v487
        %v499 = vpack.c.b16 %v490, %v489
        %v500 = vpack.c.b16 %v492, %v491
        %509 = vmatprep.subr.bf16.mxu0 0
        %510 = vmatpush1.bf16.msra.mxu0 %v493
        %511 = vmatprep.subr.bf16.mxu0 0
        %512 = vmatpush1.bf16.msra.mxu0 %v494
        %513 = vmatprep.subr.bf16.mxu0 0
        %514 = vmatpush1.bf16.msra.mxu0 %v495
        %515 = vmatprep.subr.bf16.mxu0 0
        %516 = vmatpush1.bf16.msra.mxu0 %v496
        %517 = vmatprep.subr.bf16.mxu0 0
        %518 = vmatpush1.bf16.msra.mxu0 %v497
        %519 = vmatprep.subr.bf16.mxu0 0
        %520 = vmatpush1.bf16.msra.mxu0 %v498
        %521 = vmatprep.subr.bf16.mxu0 0
        %522 = vmatpush1.bf16.msra.mxu0 %v499
        %523 = vmatprep.subr.bf16.mxu0 0
        %524 = vmatpush1.bf16.msra.mxu0 %v500
        %525 = vmatprep.subr.bf16.mxu0 0
        %526 = vmatpush1.bf16.msra.mxu0 0
        %527 = vmatprep.subr.bf16.mxu0 0
        %528 = vmatpush1.bf16.msra.mxu0 0
        %529 = vmatprep.subr.bf16.mxu0 0
        %530 = vmatpush1.bf16.msra.mxu0 0
        %531 = vmatprep.subr.bf16.mxu0 0
        %532 = vmatpush1.bf16.msra.mxu0 0
        %533 = vmatprep.subr.bf16.mxu0 0
        %534 = vmatpush1.bf16.msra.mxu0 0
        %535 = vmatprep.subr.bf16.mxu0 0
        %536 = vmatpush1.bf16.msra.mxu0 0
        %537 = vmatprep.subr.bf16.mxu0 0
        %538 = vmatpush1.bf16.msra.mxu0 0
        %539 = vmatprep.subr.bf16.mxu0 0
        %540 = vmatpush1.bf16.msra.mxu0 0
        %541 = vmatprep.mubr.bf16.mxu0 0
        %542 = vmatmul.mubr.bf16.gmra.mrb[0].mxu0 %v429
        %v543 = vpop.f32.mrb[0].mxu0
        %v544 = vadd.f32 %v363, %v543
        %v545 = vpop.f32.mrb[0].mxu0
        %v546 = vpop.f32.mrb[0].mxu0
        %v547 = vadd.f32 %v363, %v546
        %v548 = vpop.f32.mrb[0].mxu0
        %549 = vmatprep.mubr.bf16.mxu0 0
        %550 = vmatmul.mubr.bf16.gmra.mrb[0].mxu0 %v430
        %v551 = vpop.f32.mrb[0].mxu0
        %v552 = vadd.f32 %v363, %v551
        %v553 = vpop.f32.mrb[0].mxu0
        %v554 = vpop.f32.mrb[0].mxu0
        %v555 = vadd.f32 %v363, %v554
        %v556 = vpop.f32.mrb[0].mxu0
        %557 = vmatprep.mubr.bf16.mxu0 0
        %558 = vmatmul.mubr.bf16.gmra.mrb[0].mxu0 %v431
        %v559 = vpop.f32.mrb[0].mxu0
        %v560 = vadd.f32 %v363, %v559
        %v561 = vpop.f32.mrb[0].mxu0
        %v562 = vpop.f32.mrb[0].mxu0
        %v563 = vadd.f32 %v363, %v562
        %v564 = vpop.f32.mrb[0].mxu0
        %565 = vmatprep.mubr.bf16.mxu0 0
        %566 = vmatmul.mubr.bf16.gmra.mrb[0].mxu0 %v432
        %v567 = vpop.f32.mrb[0].mxu0
        %v568 = vadd.f32 %v363, %v567
        %v569 = vpop.f32.mrb[0].mxu0
        %v570 = vpop.f32.mrb[0].mxu0
        %v571 = vadd.f32 %v363, %v570
        %v572 = vpop.f32.mrb[0].mxu0
        %573 = vmatprep.mubr.bf16.mxu0 0
        %574 = vmatmul.mubr.bf16.gmra.mrb[0].mxu0 %v433
        %v575 = vpop.f32.mrb[0].mxu0
        %v576 = vadd.f32 %v363, %v575
        %v577 = vpop.f32.mrb[0].mxu0
        %v578 = vpop.f32.mrb[0].mxu0
        %v579 = vadd.f32 %v363, %v578
        %v580 = vpop.f32.mrb[0].mxu0
        %581 = vmatprep.mubr.bf16.mxu0 0
        %582 = vmatmul.mubr.bf16.gmra.mrb[0].mxu0 %v434
        %v583 = vpop.f32.mrb[0].mxu0
        %v584 = vadd.f32 %v363, %v583
        %v585 = vpop.f32.mrb[0].mxu0
        %v586 = vpop.f32.mrb[0].mxu0
        %v587 = vadd.f32 %v363, %v586
        %v588 = vpop.f32.mrb[0].mxu0
        %589 = vmatprep.mubr.bf16.mxu0 0
        %590 = vmatmul.mubr.bf16.gmra.mrb[0].mxu0 %v435
        %v591 = vpop.f32.mrb[0].mxu0
        %v592 = vadd.f32 %v363, %v591
        %v593 = vpop.f32.mrb[0].mxu0
        %v594 = vpop.f32.mrb[0].mxu0
        %v595 = vadd.f32 %v363, %v594
        %v596 = vpop.f32.mrb[0].mxu0
        %597 = vmatprep.mubr.bf16.mxu0 0
        %598 = vmatmul.mubr.bf16.gmra.mrb[0].mxu0 %v436
        %v599 = vpop.f32.mrb[0].mxu0
        %v600 = vadd.f32 %v363, %v599
        %v601 = vpop.f32.mrb[0].mxu0
        %v602 = vpop.f32.mrb[0].mxu0
        %v603 = vadd.f32 %v363, %v602
        %v604 = vpop.f32.mrb[0].mxu0
        %605 = vmatprep.mubr.bf16.mxu0 0
        %606 = vmatmul.mubr.bf16.gmra.mrb[0].mxu0 %v437
        %v607 = vpop.f32.mrb[0].mxu0
        %v608 = vadd.f32 %v363, %v607
        %v609 = vpop.f32.mrb[0].mxu0
        %v610 = vpop.f32.mrb[0].mxu0
        %v611 = vadd.f32 %v363, %v610
        %v612 = vpop.f32.mrb[0].mxu0
        %613 = vmatprep.mubr.bf16.mxu0 0
        %614 = vmatmul.mubr.bf16.gmra.mrb[0].mxu0 %v438
        %v615 = vpop.f32.mrb[0].mxu0
        %v616 = vadd.f32 %v363, %v615
        %v617 = vpop.f32.mrb[0].mxu0
        %v618 = vpop.f32.mrb[0].mxu0
        %v619 = vadd.f32 %v363, %v618
        %v620 = vpop.f32.mrb[0].mxu0
        %621 = vmatprep.mubr.bf16.mxu0 0
        %622 = vmatmul.mubr.bf16.gmra.mrb[0].mxu0 %v439
        %v623 = vpop.f32.mrb[0].mxu0
        %v624 = vadd.f32 %v363, %v623
        %v625 = vpop.f32.mrb[0].mxu0
        %v626 = vpop.f32.mrb[0].mxu0
        %v627 = vadd.f32 %v363, %v626
        %v628 = vpop.f32.mrb[0].mxu0
        %629 = vmatprep.mubr.bf16.mxu0 0
        %630 = vmatmul.mubr.bf16.gmra.mrb[0].mxu0 %v440
        %v631 = vpop.f32.mrb[0].mxu0
        %v632 = vadd.f32 %v363, %v631
        %v633 = vpop.f32.mrb[0].mxu0
        %v634 = vpop.f32.mrb[0].mxu0
        %v635 = vadd.f32 %v363, %v634
        %v636 = vpop.f32.mrb[0].mxu0
        %637 = vmatprep.mubr.bf16.mxu0 0
        %638 = vmatmul.mubr.bf16.gmra.mrb[0].mxu0 %v441
        %v639 = vpop.f32.mrb[0].mxu0
        %v640 = vadd.f32 %v363, %v639
        %v641 = vpop.f32.mrb[0].mxu0
        %v642 = vpop.f32.mrb[0].mxu0
        %v643 = vadd.f32 %v363, %v642
        %v644 = vpop.f32.mrb[0].mxu0
        %645 = vmatprep.mubr.bf16.mxu0 0
        %646 = vmatmul.mubr.bf16.gmra.mrb[0].mxu0 %v442
        %v647 = vpop.f32.mrb[0].mxu0
        %v648 = vadd.f32 %v363, %v647
        %v649 = vpop.f32.mrb[0].mxu0
        %v650 = vpop.f32.mrb[0].mxu0
        %v651 = vadd.f32 %v363, %v650
        %v652 = vpop.f32.mrb[0].mxu0
        %653 = vmatprep.mubr.bf16.mxu0 0
        %654 = vmatmul.mubr.bf16.gmra.mrb[0].mxu0 %v443
        %v655 = vpop.f32.mrb[0].mxu0
        %v656 = vadd.f32 %v363, %v655
        %v657 = vpop.f32.mrb[0].mxu0
        %v658 = vpop.f32.mrb[0].mxu0
        %v659 = vadd.f32 %v363, %v658
        %v660 = vpop.f32.mrb[0].mxu0
        %661 = vmatprep.mubr.bf16.mxu0 0
        %662 = vmatmul.mubr.bf16.gmra.mrb[0].mxu0 %v444
        %v663 = vpop.f32.mrb[0].mxu0
        %v664 = vadd.f32 %v363, %v663
        %v665 = vpop.f32.mrb[0].mxu0
        %v666 = vpop.f32.mrb[0].mxu0
        %v667 = vadd.f32 %v363, %v666
        %v668 = vpop.f32.mrb[0].mxu0
        %669 = vdwg.mxu0
        %v670 = vmax.f32 %v544, 0.0
        %v671 = vmax.f32 %v547, 0.0
        %v672 = vmax.f32 %v552, 0.0
        %v673 = vmax.f32 %v555, 0.0
        %v674 = vmax.f32 %v560, 0.0
        %v675 = vmax.f32 %v563, 0.0
        %v676 = vmax.f32 %v568, 0.0
        %v677 = vmax.f32 %v571, 0.0
        %v678 = vmax.f32 %v576, 0.0
        %v679 = vmax.f32 %v579, 0.0
        %v680 = vmax.f32 %v584, 0.0
        %v681 = vmax.f32 %v587, 0.0
        %v682 = vmax.f32 %v592, 0.0
        %v683 = vmax.f32 %v595, 0.0
        %v684 = vmax.f32 %v600, 0.0
        %v685 = vmax.f32 %v603, 0.0
        %v686 = vmax.f32 %v608, 0.0
        %v687 = vmax.f32 %v611, 0.0
        %v688 = vmax.f32 %v616, 0.0
        %v689 = vmax.f32 %v619, 0.0
        %v690 = vmax.f32 %v624, 0.0
        %v691 = vmax.f32 %v627, 0.0
        %v692 = vmax.f32 %v632, 0.0
        %v693 = vmax.f32 %v635, 0.0
        %v694 = vmax.f32 %v640, 0.0
        %v695 = vmax.f32 %v643, 0.0
        %v696 = vmax.f32 %v648, 0.0
        %v697 = vmax.f32 %v651, 0.0
        %v698 = vmax.f32 %v656, 0.0
        %v699 = vmax.f32 %v659, 0.0
        %v700 = vmax.f32 %v664, 0.0
        %v701 = vmax.f32 %v667, 0.0
        %vm702 = vcmask 257024
        %703 = vst.msk [vmem:[#allocation2] sm:$0xf] %vm702, 0
        %704 = vst.msk [vmem:[#allocation2 + $0x4] sm:$0xf] %vm702, 0
        %vm705 = vcmask 253952
        %706 = vst.msk [vmem:[#allocation2 + $0x8] sm:$0x1] %vm705, 0
        %s707 = scalar_lea.vmem [#allocation2], 204
        %708 = vst.msk [vmem:[%s707] sm:$0xf] %vm702, 0
        %709 = vst.msk [vmem:[%s707 + $0x4] sm:$0xf] %vm702, 0
        %710 = vst.msk [vmem:[%s707 + $0x8] sm:$0x1] %vm705, 0
        %vm711 = vcmask 253952
        %vm712 = vsmask.f32 256
        %vm713 = vmand %vm711, %vm712
        %v714 = vld [vmem:[#allocation2] sm:$0x1]
        %v715 = vsel %vm713, 0, %v714
        %716 = vst [vmem:[#allocation2] sm:$0x1] %v715
        %v717 = vld [vmem:[#allocation2 + $0xc] sm:$0x1]
        %v718 = vsel %vm713, 0, %v717
        %719 = vst [vmem:[#allocation2 + $0xc] sm:$0x1] %v718
        %v720 = vld [vmem:[#allocation2 + $0x18] sm:$0x1]
        %v721 = vsel %vm713, 0, %v720
        %722 = vst [vmem:[#allocation2 + $0x18] sm:$0x1] %v721
        %v723 = vld [vmem:[#allocation2 + $0x24] sm:$0x1]
        %v724 = vsel %vm713, 0, %v723
        %725 = vst [vmem:[#allocation2 + $0x24] sm:$0x1] %v724
        %v726 = vld [vmem:[#allocation2 + $0x30] sm:$0x1]
        %v727 = vsel %vm713, 0, %v726
        %728 = vst [vmem:[#allocation2 + $0x30] sm:$0x1] %v727
        %v729 = vld [vmem:[#allocation2 + $0x3c] sm:$0x1]
        %v730 = vsel %vm713, 0, %v729
        %731 = vst [vmem:[#allocation2 + $0x3c] sm:$0x1] %v730
        %v732 = vld [vmem:[#allocation2 + $0x48] sm:$0x1]
        %v733 = vsel %vm713, 0, %v732
        %734 = vst [vmem:[#allocation2 + $0x48] sm:$0x1] %v733
        %v735 = vld [vmem:[#allocation2 + $0x54] sm:$0x1]
        %v736 = vsel %vm713, 0, %v735
        %737 = vst [vmem:[#allocation2 + $0x54] sm:$0x1] %v736
        %v738 = vld [vmem:[#allocation2 + $0x60] sm:$0x1]
        %v739 = vsel %vm713, 0, %v738
        %740 = vst [vmem:[#allocation2 + $0x60] sm:$0x1] %v739
        %v741 = vld [vmem:[#allocation2 + $0x6c] sm:$0x1]
        %v742 = vsel %vm713, 0, %v741
        %743 = vst [vmem:[#allocation2 + $0x6c] sm:$0x1] %v742
        %v744 = vld [vmem:[#allocation2 + $0x78] sm:$0x1]
        %v745 = vsel %vm713, 0, %v744
        %746 = vst [vmem:[#allocation2 + $0x78] sm:$0x1] %v745
        %v747 = vld [vmem:[#allocation2 + $0x84] sm:$0x1]
        %v748 = vsel %vm713, 0, %v747
        %749 = vst [vmem:[#allocation2 + $0x84] sm:$0x1] %v748
        %v750 = vld [vmem:[#allocation2 + $0x90] sm:$0x1]
        %v751 = vsel %vm713, 0, %v750
        %752 = vst [vmem:[#allocation2 + $0x90] sm:$0x1] %v751
        %v753 = vld [vmem:[#allocation2 + $0x9c] sm:$0x1]
        %v754 = vsel %vm713, 0, %v753
        %755 = vst [vmem:[#allocation2 + $0x9c] sm:$0x1] %v754
        %v756 = vld [vmem:[#allocation2 + $0xa8] sm:$0x1]
        %v757 = vsel %vm713, 0, %v756
        %758 = vst [vmem:[#allocation2 + $0xa8] sm:$0x1] %v757
        %v759 = vld [vmem:[#allocation2 + $0xb4] sm:$0x1]
        %v760 = vsel %vm713, 0, %v759
        %761 = vst [vmem:[#allocation2 + $0xb4] sm:$0x1] %v760
        %v762 = vld [vmem:[#allocation2 + $0xc0] sm:$0x1]
        %v763 = vsel %vm713, 0, %v762
        %764 = vst [vmem:[#allocation2 + $0xc0] sm:$0x1] %v763
        %v765 = vld [vmem:[#allocation2 + $0xcc] sm:$0x1]
        %v766 = vsel %vm713, 0, %v765
        %767 = vst [vmem:[#allocation2 + $0xcc] sm:$0x1] %v766
        %vm768 = vsmask.f32 7938
        %vm769 = vmand %vm711, %vm768
        %v770 = vld [vmem:[#allocation2 + $0x8] sm:$0x1]
        %v771 = vsel %vm769, 0, %v770
        %772 = vst [vmem:[#allocation2 + $0x8] sm:$0x1] %v771
        %v773 = vld [vmem:[#allocation2 + $0x14] sm:$0x1]
        %v774 = vsel %vm769, 0, %v773
        %775 = vst [vmem:[#allocation2 + $0x14] sm:$0x1] %v774
        %v776 = vld [vmem:[#allocation2 + $0x20] sm:$0x1]
        %v777 = vsel %vm769, 0, %v776
        %778 = vst [vmem:[#allocation2 + $0x20] sm:$0x1] %v777
        %v779 = vld [vmem:[#allocation2 + $0x2c] sm:$0x1]
        %v780 = vsel %vm769, 0, %v779
        %781 = vst [vmem:[#allocation2 + $0x2c] sm:$0x1] %v780
        %v782 = vld [vmem:[#allocation2 + $0x38] sm:$0x1]
        %v783 = vsel %vm769, 0, %v782
        %784 = vst [vmem:[#allocation2 + $0x38] sm:$0x1] %v783
        %v785 = vld [vmem:[#allocation2 + $0x44] sm:$0x1]
        %v786 = vsel %vm769, 0, %v785
        %787 = vst [vmem:[#allocation2 + $0x44] sm:$0x1] %v786
        %v788 = vld [vmem:[#allocation2 + $0x50] sm:$0x1]
        %v789 = vsel %vm769, 0, %v788
        %790 = vst [vmem:[#allocation2 + $0x50] sm:$0x1] %v789
        %v791 = vld [vmem:[#allocation2 + $0x5c] sm:$0x1]
        %v792 = vsel %vm769, 0, %v791
        %793 = vst [vmem:[#allocation2 + $0x5c] sm:$0x1] %v792
        %v794 = vld [vmem:[#allocation2 + $0x68] sm:$0x1]
        %v795 = vsel %vm769, 0, %v794
        %796 = vst [vmem:[#allocation2 + $0x68] sm:$0x1] %v795
        %v797 = vld [vmem:[#allocation2 + $0x74] sm:$0x1]
        %v798 = vsel %vm769, 0, %v797
        %799 = vst [vmem:[#allocation2 + $0x74] sm:$0x1] %v798
        %v800 = vld [vmem:[#allocation2 + $0x80] sm:$0x1]
        %v801 = vsel %vm769, 0, %v800
        %802 = vst [vmem:[#allocation2 + $0x80] sm:$0x1] %v801
        %v803 = vld [vmem:[#allocation2 + $0x8c] sm:$0x1]
        %v804 = vsel %vm769, 0, %v803
        %805 = vst [vmem:[#allocation2 + $0x8c] sm:$0x1] %v804
        %v806 = vld [vmem:[#allocation2 + $0x98] sm:$0x1]
        %v807 = vsel %vm769, 0, %v806
        %808 = vst [vmem:[#allocation2 + $0x98] sm:$0x1] %v807
        %v809 = vld [vmem:[#allocation2 + $0xa4] sm:$0x1]
        %v810 = vsel %vm769, 0, %v809
        %811 = vst [vmem:[#allocation2 + $0xa4] sm:$0x1] %v810
        %v812 = vld [vmem:[#allocation2 + $0xb0] sm:$0x1]
        %v813 = vsel %vm769, 0, %v812
        %814 = vst [vmem:[#allocation2 + $0xb0] sm:$0x1] %v813
        %v815 = vld [vmem:[#allocation2 + $0xbc] sm:$0x1]
        %v816 = vsel %vm769, 0, %v815
        %817 = vst [vmem:[#allocation2 + $0xbc] sm:$0x1] %v816
        %v818 = vld [vmem:[#allocation2 + $0xc8] sm:$0x1]
        %v819 = vsel %vm769, 0, %v818
        %820 = vst [vmem:[#allocation2 + $0xc8] sm:$0x1] %v819
        %v821 = vld [vmem:[#allocation2 + $0xd4] sm:$0x1]
        %v822 = vsel %vm769, 0, %v821
        %823 = vst [vmem:[#allocation2 + $0xd4] sm:$0x1] %v822
        %v824 = vpack.c.bf16 %v671, %v670
        %v825 = vpack.c.bf16 %v673, %v672
        %v826 = vpack.c.bf16 %v675, %v674
        %v827 = vpack.c.bf16 %v677, %v676
        %v828 = vpack.c.bf16 %v679, %v678
        %v829 = vpack.c.bf16 %v681, %v680
        %v830 = vpack.c.bf16 %v683, %v682
        %v831 = vpack.c.bf16 %v685, %v684
        %v832 = vpack.c.bf16 %v687, %v686
        %v833 = vpack.c.bf16 %v689, %v688
        %v834 = vpack.c.bf16 %v691, %v690
        %v835 = vpack.c.bf16 %v693, %v692
        %v836 = vpack.c.bf16 %v695, %v694
        %v837 = vpack.c.bf16 %v697, %v696
        %v838 = vpack.c.bf16 %v699, %v698
        %v839 = vpack.c.bf16 %v701, %v700
        %v856 = vunpack.c.l.b16 %v824
        %v857 = vunpack.c.h.b16 %v824
        %v858 = vunpack.c.l.b16 %v825
        %v859 = vunpack.c.h.b16 %v825
        %v860 = vunpack.c.l.b16 %v826
        %v861 = vunpack.c.h.b16 %v826
        %v862 = vunpack.c.l.b16 %v827
        %v863 = vunpack.c.h.b16 %v827
        %v864 = vunpack.c.l.b16 %v828
        %v865 = vunpack.c.h.b16 %v828
        %v866 = vunpack.c.l.b16 %v829
        %v867 = vunpack.c.h.b16 %v829
        %v868 = vunpack.c.l.b16 %v830
        %v869 = vunpack.c.h.b16 %v830
        %v870 = vunpack.c.l.b16 %v831
        %v871 = vunpack.c.h.b16 %v831
        %v872 = vunpack.c.l.b16 %v832
        %v873 = vunpack.c.h.b16 %v832
        %v874 = vunpack.c.l.b16 %v833
        %v875 = vunpack.c.h.b16 %v833
        %v876 = vunpack.c.l.b16 %v834
        %v877 = vunpack.c.h.b16 %v834
        %v878 = vunpack.c.l.b16 %v835
        %v879 = vunpack.c.h.b16 %v835
        %v880 = vunpack.c.l.b16 %v836
        %v881 = vunpack.c.h.b16 %v836
        %v882 = vunpack.c.l.b16 %v837
        %v883 = vunpack.c.h.b16 %v837
        %v884 = vunpack.c.l.b16 %v838
        %v885 = vunpack.c.h.b16 %v838
        %v886 = vunpack.c.l.b16 %v839
        %v887 = vunpack.c.h.b16 %v839
        %v888 = vpack.c.b16 %v856, %v856
        %v889 = vpack.c.b16 %v857, %v857
        %v890 = vpack.c.b16 %v858, %v858
        %v891 = vpack.c.b16 %v859, %v859
        %v892 = vpack.c.b16 %v860, %v860
        %v893 = vpack.c.b16 %v861, %v861
        %v894 = vpack.c.b16 %v862, %v862
        %v895 = vpack.c.b16 %v863, %v863
        %v896 = vpack.c.b16 %v864, %v864
        %v897 = vpack.c.b16 %v865, %v865
        %v898 = vpack.c.b16 %v866, %v866
        %v899 = vpack.c.b16 %v867, %v867
        %v900 = vpack.c.b16 %v868, %v868
        %v901 = vpack.c.b16 %v869, %v869
        %v902 = vpack.c.b16 %v870, %v870
        %v903 = vpack.c.b16 %v871, %v871
        %v904 = vpack.c.b16 %v872, %v872
        %v905 = vpack.c.b16 %v873, %v873
        %v906 = vpack.c.b16 %v874, %v874
        %v907 = vpack.c.b16 %v875, %v875
        %v908 = vpack.c.b16 %v876, %v876
        %v909 = vpack.c.b16 %v877, %v877
        %v910 = vpack.c.b16 %v878, %v878
        %v911 = vpack.c.b16 %v879, %v879
        %v912 = vpack.c.b16 %v880, %v880
        %v913 = vpack.c.b16 %v881, %v881
        %v914 = vpack.c.b16 %v882, %v882
        %v915 = vpack.c.b16 %v883, %v883
        %v916 = vpack.c.b16 %v884, %v884
        %v917 = vpack.c.b16 %v885, %v885
        %v918 = vpack.c.b16 %v886, %v886
        %v919 = vpack.c.b16 %v887, %v887
        %vm920 = vsmask.f32 4368
        %vm921 = vmor %vm712, %vm920
        %v923 = vshrl.u32 %v888, 16
        %v925 = vrot.slane %v923, 7
        %v926 = vshll.u32 %v888, 16
        %v928 = vor.u32 %v925, %v926
        %v929 = vrot.slane %v925, 4
        %v931 = vshrl.u32 %v889, 16
        %v933 = vrot.slane %v931, 7
        %v934 = vshll.u32 %v889, 16
        %v936 = vor.u32 %v933, %v934
        %v937 = vsel %vm921, %v929, %v936
        %v938 = vrot.slane %v933, 4
        %v940 = vshrl.u32 %v890, 16
        %v942 = vrot.slane %v940, 7
        %v943 = vshll.u32 %v890, 16
        %v945 = vor.u32 %v942, %v943
        %v946 = vrot.slane %v942, 4
        %v948 = vshrl.u32 %v891, 16
        %v950 = vrot.slane %v948, 7
        %v951 = vshll.u32 %v891, 16
        %v953 = vor.u32 %v950, %v951
        %v954 = vsel %vm921, %v946, %v953
        %v955 = vrot.slane %v950, 4
        %v957 = vshrl.u32 %v892, 16
        %v959 = vrot.slane %v957, 7
        %v960 = vshll.u32 %v892, 16
        %v962 = vor.u32 %v959, %v960
        %v963 = vrot.slane %v959, 4
        %v965 = vshrl.u32 %v893, 16
        %v967 = vrot.slane %v965, 7
        %v968 = vshll.u32 %v893, 16
        %v970 = vor.u32 %v967, %v968
        %v971 = vsel %vm921, %v963, %v970
        %v972 = vrot.slane %v967, 4
        %v974 = vshrl.u32 %v894, 16
        %v976 = vrot.slane %v974, 7
        %v977 = vshll.u32 %v894, 16
        %v979 = vor.u32 %v976, %v977
        %v980 = vrot.slane %v976, 4
        %v982 = vshrl.u32 %v895, 16
        %v984 = vrot.slane %v982, 7
        %v985 = vshll.u32 %v895, 16
        %v987 = vor.u32 %v984, %v985
        %v988 = vsel %vm921, %v980, %v987
        %v989 = vrot.slane %v984, 4
        %v991 = vshrl.u32 %v896, 16
        %v993 = vrot.slane %v991, 7
        %v994 = vshll.u32 %v896, 16
        %v996 = vor.u32 %v993, %v994
        %v997 = vrot.slane %v993, 4
        %v999 = vshrl.u32 %v897, 16
        %v1001 = vrot.slane %v999, 7
        %v1002 = vshll.u32 %v897, 16
        %v1004 = vor.u32 %v1001, %v1002
        %v1005 = vsel %vm921, %v997, %v1004
        %v1006 = vrot.slane %v1001, 4
        %v1008 = vshrl.u32 %v898, 16
        %v1010 = vrot.slane %v1008, 7
        %v1011 = vshll.u32 %v898, 16
        %v1013 = vor.u32 %v1010, %v1011
        %v1014 = vrot.slane %v1010, 4
        %v1016 = vshrl.u32 %v899, 16
        %v1018 = vrot.slane %v1016, 7
        %v1019 = vshll.u32 %v899, 16
        %v1021 = vor.u32 %v1018, %v1019
        %v1022 = vsel %vm921, %v1014, %v1021
        %v1023 = vrot.slane %v1018, 4
        %v1025 = vshrl.u32 %v900, 16
        %v1027 = vrot.slane %v1025, 7
        %v1028 = vshll.u32 %v900, 16
        %v1030 = vor.u32 %v1027, %v1028
        %v1031 = vrot.slane %v1027, 4
        %v1033 = vshrl.u32 %v901, 16
        %v1035 = vrot.slane %v1033, 7
        %v1036 = vshll.u32 %v901, 16
        %v1038 = vor.u32 %v1035, %v1036
        %v1039 = vsel %vm921, %v1031, %v1038
        %v1040 = vrot.slane %v1035, 4
        %v1042 = vshrl.u32 %v902, 16
        %v1044 = vrot.slane %v1042, 7
        %v1045 = vshll.u32 %v902, 16
        %v1047 = vor.u32 %v1044, %v1045
        %v1048 = vrot.slane %v1044, 4
        %v1050 = vshrl.u32 %v903, 16
        %v1052 = vrot.slane %v1050, 7
        %v1053 = vshll.u32 %v903, 16
        %v1055 = vor.u32 %v1052, %v1053
        %v1056 = vsel %vm921, %v1048, %v1055
        %v1057 = vrot.slane %v1052, 4
        %v1059 = vshrl.u32 %v904, 16
        %v1061 = vrot.slane %v1059, 7
        %v1062 = vshll.u32 %v904, 16
        %v1064 = vor.u32 %v1061, %v1062
        %v1065 = vrot.slane %v1061, 4
        %v1067 = vshrl.u32 %v905, 16
        %v1069 = vrot.slane %v1067, 7
        %v1070 = vshll.u32 %v905, 16
        %v1072 = vor.u32 %v1069, %v1070
        %v1073 = vsel %vm921, %v1065, %v1072
        %v1074 = vrot.slane %v1069, 4
        %v1076 = vshrl.u32 %v906, 16
        %v1078 = vrot.slane %v1076, 7
        %v1079 = vshll.u32 %v906, 16
        %v1081 = vor.u32 %v1078, %v1079
        %v1082 = vrot.slane %v1078, 4
        %v1084 = vshrl.u32 %v907, 16
        %v1086 = vrot.slane %v1084, 7
        %v1087 = vshll.u32 %v907, 16
        %v1089 = vor.u32 %v1086, %v1087
        %v1090 = vsel %vm921, %v1082, %v1089
        %v1091 = vrot.slane %v1086, 4
        %v1093 = vshrl.u32 %v908, 16
        %v1095 = vrot.slane %v1093, 7
        %v1096 = vshll.u32 %v908, 16
        %v1098 = vor.u32 %v1095, %v1096
        %v1099 = vrot.slane %v1095, 4
        %v1101 = vshrl.u32 %v909, 16
        %v1103 = vrot.slane %v1101, 7
        %v1104 = vshll.u32 %v909, 16
        %v1106 = vor.u32 %v1103, %v1104
        %v1107 = vsel %vm921, %v1099, %v1106
        %v1108 = vrot.slane %v1103, 4
        %v1110 = vshrl.u32 %v910, 16
        %v1112 = vrot.slane %v1110, 7
        %v1113 = vshll.u32 %v910, 16
        %v1115 = vor.u32 %v1112, %v1113
        %v1116 = vrot.slane %v1112, 4
        %v1118 = vshrl.u32 %v911, 16
        %v1120 = vrot.slane %v1118, 7
        %v1121 = vshll.u32 %v911, 16
        %v1123 = vor.u32 %v1120, %v1121
        %v1124 = vsel %vm921, %v1116, %v1123
        %v1125 = vrot.slane %v1120, 4
        %v1127 = vshrl.u32 %v912, 16
        %v1129 = vrot.slane %v1127, 7
        %v1130 = vshll.u32 %v912, 16
        %v1132 = vor.u32 %v1129, %v1130
        %v1133 = vrot.slane %v1129, 4
        %v1135 = vshrl.u32 %v913, 16
        %v1137 = vrot.slane %v1135, 7
        %v1138 = vshll.u32 %v913, 16
        %v1140 = vor.u32 %v1137, %v1138
        %v1141 = vsel %vm921, %v1133, %v1140
        %v1142 = vrot.slane %v1137, 4
        %v1144 = vshrl.u32 %v914, 16
        %v1146 = vrot.slane %v1144, 7
        %v1147 = vshll.u32 %v914, 16
        %v1149 = vor.u32 %v1146, %v1147
        %v1150 = vrot.slane %v1146, 4
        %v1152 = vshrl.u32 %v915, 16
        %v1154 = vrot.slane %v1152, 7
        %v1155 = vshll.u32 %v915, 16
        %v1157 = vor.u32 %v1154, %v1155
        %v1158 = vsel %vm921, %v1150, %v1157
        %v1159 = vrot.slane %v1154, 4
        %v1161 = vshrl.u32 %v916, 16
        %v1163 = vrot.slane %v1161, 7
        %v1164 = vshll.u32 %v916, 16
        %v1166 = vor.u32 %v1163, %v1164
        %v1167 = vrot.slane %v1163, 4
        %v1169 = vshrl.u32 %v917, 16
        %v1171 = vrot.slane %v1169, 7
        %v1172 = vshll.u32 %v917, 16
        %v1174 = vor.u32 %v1171, %v1172
        %v1175 = vsel %vm921, %v1167, %v1174
        %v1176 = vrot.slane %v1171, 4
        %v1178 = vshrl.u32 %v918, 16
        %v1180 = vrot.slane %v1178, 7
        %v1181 = vshll.u32 %v918, 16
        %v1183 = vor.u32 %v1180, %v1181
        %v1184 = vrot.slane %v1180, 4
        %v1186 = vshrl.u32 %v919, 16
        %v1188 = vrot.slane %v1186, 7
        %v1189 = vshll.u32 %v919, 16
        %v1191 = vor.u32 %v1188, %v1189
        %v1192 = vsel %vm921, %v1184, %v1191
        %v1193 = vrot.slane %v1188, 4
        %s1242 = scalar_lea.vmem [#allocation2], 12
        %vm1243 = vcmask 257024
        %vm1244 = vmand %vm1243, %vm768
        %v1245 = vld [vmem:[%s1242] sm:$0xf]
        %v1246 = vsel %vm1244, %v928, %v1245
        %1247 = vst [vmem:[%s1242] sm:$0xf] %v1246
        %1248 = vst.msk [vmem:[%s1242 + $0x4] sm:$0xf] %vm702, %v937
        %v1249 = vld [vmem:[%s1242 + $0x8] sm:$0x1]
        %v1250 = vsel %vm713, %v938, %v1249
        %1251 = vst [vmem:[%s1242 + $0x8] sm:$0x1] %v1250
        %v1252 = vld [vmem:[%s1242 + $0xc] sm:$0xf]
        %v1253 = vsel %vm1244, %v945, %v1252
        %1254 = vst [vmem:[%s1242 + $0xc] sm:$0xf] %v1253
        %1255 = vst.msk [vmem:[%s1242 + $0x10] sm:$0xf] %vm702, %v954
        %v1256 = vld [vmem:[%s1242 + $0x14] sm:$0x1]
        %v1257 = vsel %vm713, %v955, %v1256
        %1258 = vst [vmem:[%s1242 + $0x14] sm:$0x1] %v1257
        %v1259 = vld [vmem:[%s1242 + $0x18] sm:$0xf]
        %v1260 = vsel %vm1244, %v962, %v1259
        %1261 = vst [vmem:[%s1242 + $0x18] sm:$0xf] %v1260
        %1262 = vst.msk [vmem:[%s1242 + $0x1c] sm:$0xf] %vm702, %v971
        %v1263 = vld [vmem:[%s1242 + $0x20] sm:$0x1]
        %v1264 = vsel %vm713, %v972, %v1263
        %1265 = vst [vmem:[%s1242 + $0x20] sm:$0x1] %v1264
        %v1266 = vld [vmem:[%s1242 + $0x24] sm:$0xf]
        %v1267 = vsel %vm1244, %v979, %v1266
        %1268 = vst [vmem:[%s1242 + $0x24] sm:$0xf] %v1267
        %1269 = vst.msk [vmem:[%s1242 + $0x28] sm:$0xf] %vm702, %v988
        %v1270 = vld [vmem:[%s1242 + $0x2c] sm:$0x1]
        %v1271 = vsel %vm713, %v989, %v1270
        %1272 = vst [vmem:[%s1242 + $0x2c] sm:$0x1] %v1271
        %v1273 = vld [vmem:[%s1242 + $0x30] sm:$0xf]
        %v1274 = vsel %vm1244, %v996, %v1273
        %1275 = vst [vmem:[%s1242 + $0x30] sm:$0xf] %v1274
        %1276 = vst.msk [vmem:[%s1242 + $0x34] sm:$0xf] %vm702, %v1005
        %v1277 = vld [vmem:[%s1242 + $0x38] sm:$0x1]
        %v1278 = vsel %vm713, %v1006, %v1277
        %1279 = vst [vmem:[%s1242 + $0x38] sm:$0x1] %v1278
        %v1280 = vld [vmem:[%s1242 + $0x3c] sm:$0xf]
        %v1281 = vsel %vm1244, %v1013, %v1280
        %1282 = vst [vmem:[%s1242 + $0x3c] sm:$0xf] %v1281
        %1283 = vst.msk [vmem:[%s1242 + $0x40] sm:$0xf] %vm702, %v1022
        %v1284 = vld [vmem:[%s1242 + $0x44] sm:$0x1]
        %v1285 = vsel %vm713, %v1023, %v1284
        %1286 = vst [vmem:[%s1242 + $0x44] sm:$0x1] %v1285
        %v1287 = vld [vmem:[%s1242 + $0x48] sm:$0xf]
        %v1288 = vsel %vm1244, %v1030, %v1287
        %1289 = vst [vmem:[%s1242 + $0x48] sm:$0xf] %v1288
        %1290 = vst.msk [vmem:[%s1242 + $0x4c] sm:$0xf] %vm702, %v1039
        %v1291 = vld [vmem:[%s1242 + $0x50] sm:$0x1]
        %v1292 = vsel %vm713, %v1040, %v1291
        %1293 = vst [vmem:[%s1242 + $0x50] sm:$0x1] %v1292
        %v1294 = vld [vmem:[%s1242 + $0x54] sm:$0xf]
        %v1295 = vsel %vm1244, %v1047, %v1294
        %1296 = vst [vmem:[%s1242 + $0x54] sm:$0xf] %v1295
        %1297 = vst.msk [vmem:[%s1242 + $0x58] sm:$0xf] %vm702, %v1056
        %v1298 = vld [vmem:[%s1242 + $0x5c] sm:$0x1]
        %v1299 = vsel %vm713, %v1057, %v1298
        %1300 = vst [vmem:[%s1242 + $0x5c] sm:$0x1] %v1299
        %v1301 = vld [vmem:[%s1242 + $0x60] sm:$0xf]
        %v1302 = vsel %vm1244, %v1064, %v1301
        %1303 = vst [vmem:[%s1242 + $0x60] sm:$0xf] %v1302
        %1304 = vst.msk [vmem:[%s1242 + $0x64] sm:$0xf] %vm702, %v1073
        %v1305 = vld [vmem:[%s1242 + $0x68] sm:$0x1]
        %v1306 = vsel %vm713, %v1074, %v1305
        %1307 = vst [vmem:[%s1242 + $0x68] sm:$0x1] %v1306
        %v1308 = vld [vmem:[%s1242 + $0x6c] sm:$0xf]
        %v1309 = vsel %vm1244, %v1081, %v1308
        %1310 = vst [vmem:[%s1242 + $0x6c] sm:$0xf] %v1309
        %1311 = vst.msk [vmem:[%s1242 + $0x70] sm:$0xf] %vm702, %v1090
        %v1312 = vld [vmem:[%s1242 + $0x74] sm:$0x1]
        %v1313 = vsel %vm713, %v1091, %v1312
        %1314 = vst [vmem:[%s1242 + $0x74] sm:$0x1] %v1313
        %v1315 = vld [vmem:[%s1242 + $0x78] sm:$0xf]
        %v1316 = vsel %vm1244, %v1098, %v1315
        %1317 = vst [vmem:[%s1242 + $0x78] sm:$0xf] %v1316
        %1318 = vst.msk [vmem:[%s1242 + $0x7c] sm:$0xf] %vm702, %v1107
        %v1319 = vld [vmem:[%s1242 + $0x80] sm:$0x1]
        %v1320 = vsel %vm713, %v1108, %v1319
        %1321 = vst [vmem:[%s1242 + $0x80] sm:$0x1] %v1320
        %v1322 = vld [vmem:[%s1242 + $0x84] sm:$0xf]
        %v1323 = vsel %vm1244, %v1115, %v1322
        %1324 = vst [vmem:[%s1242 + $0x84] sm:$0xf] %v1323
        %1325 = vst.msk [vmem:[%s1242 + $0x88] sm:$0xf] %vm702, %v1124
        %v1326 = vld [vmem:[%s1242 + $0x8c] sm:$0x1]
        %v1327 = vsel %vm713, %v1125, %v1326
        %1328 = vst [vmem:[%s1242 + $0x8c] sm:$0x1] %v1327
        %v1329 = vld [vmem:[%s1242 + $0x90] sm:$0xf]
        %v1330 = vsel %vm1244, %v1132, %v1329
        %1331 = vst [vmem:[%s1242 + $0x90] sm:$0xf] %v1330
        %1332 = vst.msk [vmem:[%s1242 + $0x94] sm:$0xf] %vm702, %v1141
        %v1333 = vld [vmem:[%s1242 + $0x98] sm:$0x1]
        %v1334 = vsel %vm713, %v1142, %v1333
        %1335 = vst [vmem:[%s1242 + $0x98] sm:$0x1] %v1334
        %v1336 = vld [vmem:[%s1242 + $0x9c] sm:$0xf]
        %v1337 = vsel %vm1244, %v1149, %v1336
        %1338 = vst [vmem:[%s1242 + $0x9c] sm:$0xf] %v1337
        %1339 = vst.msk [vmem:[%s1242 + $0xa0] sm:$0xf] %vm702, %v1158
        %v1340 = vld [vmem:[%s1242 + $0xa4] sm:$0x1]
        %v1341 = vsel %vm713, %v1159, %v1340
        %1342 = vst [vmem:[%s1242 + $0xa4] sm:$0x1] %v1341
        %v1343 = vld [vmem:[%s1242 + $0xa8] sm:$0xf]
        %v1344 = vsel %vm1244, %v1166, %v1343
        %1345 = vst [vmem:[%s1242 + $0xa8] sm:$0xf] %v1344
        %1346 = vst.msk [vmem:[%s1242 + $0xac] sm:$0xf] %vm702, %v1175
        %v1347 = vld [vmem:[%s1242 + $0xb0] sm:$0x1]
        %v1348 = vsel %vm713, %v1176, %v1347
        %1349 = vst [vmem:[%s1242 + $0xb0] sm:$0x1] %v1348
        %v1350 = vld [vmem:[%s1242 + $0xb4] sm:$0xf]
        %v1351 = vsel %vm1244, %v1183, %v1350
        %1352 = vst [vmem:[%s1242 + $0xb4] sm:$0xf] %v1351
        %1353 = vst.msk [vmem:[%s1242 + $0xb8] sm:$0xf] %vm702, %v1192
        %v1354 = vld [vmem:[%s1242 + $0xbc] sm:$0x1]
        %v1355 = vsel %vm713, %v1193, %v1354
        %1356 = vst [vmem:[%s1242 + $0xbc] sm:$0x1] %v1355
        %v1357 = vld [vmem:[#allocation2] sm:$0xf]
        %v1358 = vld [vmem:[#allocation2 + $0x4] sm:$0xf]
        %v1359 = vld [vmem:[#allocation2 + $0xc] sm:$0xf]
        %v1360 = vld [vmem:[#allocation2 + $0x10] sm:$0xf]
        %v1361 = vld [vmem:[#allocation2 + $0x18] sm:$0xf]
        %v1362 = vld [vmem:[#allocation2 + $0x1c] sm:$0xf]
        %v1363 = vld [vmem:[#allocation2 + $0x24] sm:$0xf]
        %v1364 = vld [vmem:[#allocation2 + $0x28] sm:$0xf]
        %v1365 = vld [vmem:[#allocation2 + $0x30] sm:$0xf]
        %v1366 = vld [vmem:[#allocation2 + $0x34] sm:$0xf]
        %v1367 = vld [vmem:[#allocation2 + $0x3c] sm:$0xf]
        %v1368 = vld [vmem:[#allocation2 + $0x40] sm:$0xf]
        %v1369 = vld [vmem:[#allocation2 + $0x48] sm:$0xf]
        %v1370 = vld [vmem:[#allocation2 + $0x4c] sm:$0xf]
        %v1371 = vld [vmem:[#allocation2 + $0x54] sm:$0xf]
        %v1372 = vld [vmem:[#allocation2 + $0x58] sm:$0xf]
        %v1373 = vld [vmem:[#allocation2 + $0x60] sm:$0xf]
        %v1374 = vld [vmem:[#allocation2 + $0x64] sm:$0xf]
        %v1375 = vld [vmem:[#allocation2 + $0x6c] sm:$0xf]
        %v1376 = vld [vmem:[#allocation2 + $0x70] sm:$0xf]
        %v1377 = vld [vmem:[#allocation2 + $0x78] sm:$0xf]
        %v1378 = vld [vmem:[#allocation2 + $0x7c] sm:$0xf]
        %v1379 = vld [vmem:[#allocation2 + $0x84] sm:$0xf]
        %v1380 = vld [vmem:[#allocation2 + $0x88] sm:$0xf]
        %v1381 = vld [vmem:[#allocation2 + $0x90] sm:$0xf]
        %v1382 = vld [vmem:[#allocation2 + $0x94] sm:$0xf]
        %v1383 = vld [vmem:[#allocation2 + $0x9c] sm:$0xf]
        %v1384 = vld [vmem:[#allocation2 + $0xa0] sm:$0xf]
        %v1385 = vld [vmem:[#allocation2 + $0xa8] sm:$0xf]
        %v1386 = vld [vmem:[#allocation2 + $0xac] sm:$0xf]
        %v1387 = vld [vmem:[#allocation2 + $0xb4] sm:$0xf]
        %v1388 = vld [vmem:[#allocation2 + $0xb8] sm:$0xf]
        %v1421 = vunpack.c.l.b16 %v1357
        %v1422 = vunpack.c.l.b16 %v1358
        %v1423 = vunpack.c.l.b16 %v1359
        %v1424 = vunpack.c.l.b16 %v1360
        %v1425 = vunpack.c.l.b16 %v1361
        %v1426 = vunpack.c.l.b16 %v1362
        %v1427 = vunpack.c.l.b16 %v1363
        %v1428 = vunpack.c.l.b16 %v1364
        %v1429 = vunpack.c.l.b16 %v1365
        %v1430 = vunpack.c.l.b16 %v1366
        %v1431 = vunpack.c.l.b16 %v1367
        %v1432 = vunpack.c.l.b16 %v1368
        %v1433 = vunpack.c.l.b16 %v1369
        %v1434 = vunpack.c.l.b16 %v1370
        %v1435 = vunpack.c.l.b16 %v1371
        %v1436 = vunpack.c.l.b16 %v1372
        %v1437 = vunpack.c.l.b16 %v1373
        %v1438 = vunpack.c.l.b16 %v1374
        %v1439 = vunpack.c.l.b16 %v1375
        %v1440 = vunpack.c.l.b16 %v1376
        %v1441 = vunpack.c.l.b16 %v1377
        %v1442 = vunpack.c.l.b16 %v1378
        %v1443 = vunpack.c.l.b16 %v1379
        %v1444 = vunpack.c.l.b16 %v1380
        %v1445 = vunpack.c.l.b16 %v1381
        %v1446 = vunpack.c.l.b16 %v1382
        %v1447 = vunpack.c.l.b16 %v1383
        %v1448 = vunpack.c.l.b16 %v1384
        %v1449 = vunpack.c.l.b16 %v1385
        %v1450 = vunpack.c.l.b16 %v1386
        %v1451 = vunpack.c.l.b16 %v1387
        %v1452 = vunpack.c.l.b16 %v1388
        %v1453 = vpack.c.b16 %v1422, %v1421
        %v1454 = vpack.c.b16 %v1424, %v1423
        %v1455 = vpack.c.b16 %v1426, %v1425
        %v1456 = vpack.c.b16 %v1428, %v1427
        %v1457 = vpack.c.b16 %v1430, %v1429
        %v1458 = vpack.c.b16 %v1432, %v1431
        %v1459 = vpack.c.b16 %v1434, %v1433
        %v1460 = vpack.c.b16 %v1436, %v1435
        %v1461 = vpack.c.b16 %v1438, %v1437
        %v1462 = vpack.c.b16 %v1440, %v1439
        %v1463 = vpack.c.b16 %v1442, %v1441
        %v1464 = vpack.c.b16 %v1444, %v1443
        %v1465 = vpack.c.b16 %v1446, %v1445
        %v1466 = vpack.c.b16 %v1448, %v1447
        %v1467 = vpack.c.b16 %v1450, %v1449
        %v1468 = vpack.c.b16 %v1452, %v1451
        %vm1485 = vcmask 261120
        %1486 = vst.msk [vmem:[#allocation3] sm:$0xff] %vm1485, %v1453
        %1487 = vst.msk [vmem:[#allocation3 + $0x18] sm:$0xff] %vm1485, %v1454
        %1488 = vst.msk [vmem:[#allocation3 + $0x30] sm:$0xff] %vm1485, %v1455
        %1489 = vst.msk [vmem:[#allocation3 + $0x48] sm:$0xff] %vm1485, %v1456
        %1490 = vst.msk [vmem:[#allocation3 + $0x60] sm:$0xff] %vm1485, %v1457
        %1491 = vst.msk [vmem:[#allocation3 + $0x78] sm:$0xff] %vm1485, %v1458
        %1492 = vst.msk [vmem:[#allocation3 + $0x90] sm:$0xff] %vm1485, %v1459
        %1493 = vst.msk [vmem:[#allocation3 + $0xa8] sm:$0xff] %vm1485, %v1460
        %1494 = vst.msk [vmem:[#allocation3 + $0xc0] sm:$0xff] %vm1485, %v1461
        %1495 = vst.msk [vmem:[#allocation3 + $0xd8] sm:$0xff] %vm1485, %v1462
        %1496 = vst.msk [vmem:[#allocation3 + $0xf0] sm:$0xff] %vm1485, %v1463
        %1497 = vst.msk [vmem:[#allocation3 + $0x108] sm:$0xff] %vm1485, %v1464
        %1498 = vst.msk [vmem:[#allocation3 + $0x120] sm:$0xff] %vm1485, %v1465
        %1499 = vst.msk [vmem:[#allocation3 + $0x138] sm:$0xff] %vm1485, %v1466
        %1500 = vst.msk [vmem:[#allocation3 + $0x150] sm:$0xff] %vm1485, %v1467
        %1501 = vst.msk [vmem:[#allocation3 + $0x168] sm:$0xff] %vm1485, %v1468
        %v1502 = vld [vmem:[#allocation2] sm:$0xf]
        %v1503 = vld [vmem:[#allocation2 + $0x4] sm:$0xf]
        %v1504 = vld [vmem:[#allocation2 + $0x8] sm:$0x1]
        %v1505 = vld [vmem:[#allocation2 + $0xc] sm:$0xf]
        %v1506 = vld [vmem:[#allocation2 + $0x10] sm:$0xf]
        %v1507 = vld [vmem:[#allocation2 + $0x14] sm:$0x1]
        %v1508 = vld [vmem:[#allocation2 + $0x18] sm:$0xf]
        %v1509 = vld [vmem:[#allocation2 + $0x1c] sm:$0xf]
        %v1510 = vld [vmem:[#allocation2 + $0x20] sm:$0x1]
        %v1511 = vld [vmem:[#allocation2 + $0x24] sm:$0xf]
        %v1512 = vld [vmem:[#allocation2 + $0x28] sm:$0xf]
        %v1513 = vld [vmem:[#allocation2 + $0x2c] sm:$0x1]
        %v1514 = vld [vmem:[#allocation2 + $0x30] sm:$0xf]
        %v1515 = vld [vmem:[#allocation2 + $0x34] sm:$0xf]
        %v1516 = vld [vmem:[#allocation2 + $0x38] sm:$0x1]
        %v1517 = vld [vmem:[#allocation2 + $0x3c] sm:$0xf]
        %v1518 = vld [vmem:[#allocation2 + $0x40] sm:$0xf]
        %v1519 = vld [vmem:[#allocation2 + $0x44] sm:$0x1]
        %v1520 = vld [vmem:[#allocation2 + $0x48] sm:$0xf]
        %v1521 = vld [vmem:[#allocation2 + $0x4c] sm:$0xf]
        %v1522 = vld [vmem:[#allocation2 + $0x50] sm:$0x1]
        %v1523 = vld [vmem:[#allocation2 + $0x54] sm:$0xf]
        %v1524 = vld [vmem:[#allocation2 + $0x58] sm:$0xf]
        %v1525 = vld [vmem:[#allocation2 + $0x5c] sm:$0x1]
        %v1526 = vld [vmem:[#allocation2 + $0x60] sm:$0xf]
        %v1527 = vld [vmem:[#allocation2 + $0x64] sm:$0xf]
        %v1528 = vld [vmem:[#allocation2 + $0x68] sm:$0x1]
        %v1529 = vld [vmem:[#allocation2 + $0x6c] sm:$0xf]
        %v1530 = vld [vmem:[#allocation2 + $0x70] sm:$0xf]
        %v1531 = vld [vmem:[#allocation2 + $0x74] sm:$0x1]
        %v1532 = vld [vmem:[#allocation2 + $0x78] sm:$0xf]
        %v1533 = vld [vmem:[#allocation2 + $0x7c] sm:$0xf]
        %v1534 = vld [vmem:[#allocation2 + $0x80] sm:$0x1]
        %v1535 = vld [vmem:[#allocation2 + $0x84] sm:$0xf]
        %v1536 = vld [vmem:[#allocation2 + $0x88] sm:$0xf]
        %v1537 = vld [vmem:[#allocation2 + $0x8c] sm:$0x1]
        %v1538 = vld [vmem:[#allocation2 + $0x90] sm:$0xf]
        %v1539 = vld [vmem:[#allocation2 + $0x94] sm:$0xf]
        %v1540 = vld [vmem:[#allocation2 + $0x98] sm:$0x1]
        %v1541 = vld [vmem:[#allocation2 + $0x9c] sm:$0xf]
        %v1542 = vld [vmem:[#allocation2 + $0xa0] sm:$0xf]
        %v1543 = vld [vmem:[#allocation2 + $0xa4] sm:$0x1]
        %v1544 = vld [vmem:[#allocation2 + $0xa8] sm:$0xf]
        %v1545 = vld [vmem:[#allocation2 + $0xac] sm:$0xf]
        %v1546 = vld [vmem:[#allocation2 + $0xb0] sm:$0x1]
        %v1547 = vld [vmem:[#allocation2 + $0xb4] sm:$0xf]
        %v1548 = vld [vmem:[#allocation2 + $0xb8] sm:$0xf]
        %v1549 = vld [vmem:[#allocation2 + $0xbc] sm:$0x1]
        %vm1550 = vsmask.f32 3328
        %vm1551 = vsmask.f32 7440
        %vm1552 = vmor %vm1550, %vm1551
        %v1554 = vshrl.u32 %v1502, 16
        %v1556 = vrot.slane %v1554, 4
        %v1557 = vshll.u32 %v1502, 16
        %v1559 = vrot.slane %v1557, 5
        %v1560 = vor.u32 %v1556, %v1559
        %v1561 = vrot.slane %v1560, 4
        %v1563 = vshll.u32 %v1503, 16
        %v1565 = vrot.slane %v1563, 5
        %v1566 = vsel %vm1552, %v1561, %v1565
        %v1567 = vshrl.u32 %v1503, 16
        %v1569 = vrot.slane %v1567, 4
        %v1570 = vor.u32 %v1569, %v1565
        %v1571 = vrot.slane %v1570, 4
        %v1573 = vshll.u32 %v1504, 16
        %v1575 = vrot.slane %v1573, 5
        %v1576 = vsel %vm1552, %v1571, %v1575
        %v1578 = vshrl.u32 %v1505, 16
        %v1580 = vrot.slane %v1578, 4
        %v1581 = vshll.u32 %v1505, 16
        %v1583 = vrot.slane %v1581, 5
        %v1584 = vor.u32 %v1580, %v1583
        %v1585 = vrot.slane %v1584, 4
        %v1587 = vshll.u32 %v1506, 16
        %v1589 = vrot.slane %v1587, 5
        %v1590 = vsel %vm1552, %v1585, %v1589
        %v1591 = vshrl.u32 %v1506, 16
        %v1593 = vrot.slane %v1591, 4
        %v1594 = vor.u32 %v1593, %v1589
        %v1595 = vrot.slane %v1594, 4
        %v1597 = vshll.u32 %v1507, 16
        %v1599 = vrot.slane %v1597, 5
        %v1600 = vsel %vm1552, %v1595, %v1599
        %v1602 = vshrl.u32 %v1508, 16
        %v1604 = vrot.slane %v1602, 4
        %v1605 = vshll.u32 %v1508, 16
        %v1607 = vrot.slane %v1605, 5
        %v1608 = vor.u32 %v1604, %v1607
        %v1609 = vrot.slane %v1608, 4
        %v1611 = vshll.u32 %v1509, 16
        %v1613 = vrot.slane %v1611, 5
        %v1614 = vsel %vm1552, %v1609, %v1613
        %v1615 = vshrl.u32 %v1509, 16
        %v1617 = vrot.slane %v1615, 4
        %v1618 = vor.u32 %v1617, %v1613
        %v1619 = vrot.slane %v1618, 4
        %v1621 = vshll.u32 %v1510, 16
        %v1623 = vrot.slane %v1621, 5
        %v1624 = vsel %vm1552, %v1619, %v1623
        %v1626 = vshrl.u32 %v1511, 16
        %v1628 = vrot.slane %v1626, 4
        %v1629 = vshll.u32 %v1511, 16
        %v1631 = vrot.slane %v1629, 5
        %v1632 = vor.u32 %v1628, %v1631
        %v1633 = vrot.slane %v1632, 4
        %v1635 = vshll.u32 %v1512, 16
        %v1637 = vrot.slane %v1635, 5
        %v1638 = vsel %vm1552, %v1633, %v1637
        %v1639 = vshrl.u32 %v1512, 16
        %v1641 = vrot.slane %v1639, 4
        %v1642 = vor.u32 %v1641, %v1637
        %v1643 = vrot.slane %v1642, 4
        %v1645 = vshll.u32 %v1513, 16
        %v1647 = vrot.slane %v1645, 5
        %v1648 = vsel %vm1552, %v1643, %v1647
        %v1650 = vshrl.u32 %v1514, 16
        %v1652 = vrot.slane %v1650, 4
        %v1653 = vshll.u32 %v1514, 16
        %v1655 = vrot.slane %v1653, 5
        %v1656 = vor.u32 %v1652, %v1655
        %v1657 = vrot.slane %v1656, 4
        %v1659 = vshll.u32 %v1515, 16
        %v1661 = vrot.slane %v1659, 5
        %v1662 = vsel %vm1552, %v1657, %v1661
        %v1663 = vshrl.u32 %v1515, 16
        %v1665 = vrot.slane %v1663, 4
        %v1666 = vor.u32 %v1665, %v1661
        %v1667 = vrot.slane %v1666, 4
        %v1669 = vshll.u32 %v1516, 16
        %v1671 = vrot.slane %v1669, 5
        %v1672 = vsel %vm1552, %v1667, %v1671
        %v1674 = vshrl.u32 %v1517, 16
        %v1676 = vrot.slane %v1674, 4
        %v1677 = vshll.u32 %v1517, 16
        %v1679 = vrot.slane %v1677, 5
        %v1680 = vor.u32 %v1676, %v1679
        %v1681 = vrot.slane %v1680, 4
        %v1683 = vshll.u32 %v1518, 16
        %v1685 = vrot.slane %v1683, 5
        %v1686 = vsel %vm1552, %v1681, %v1685
        %v1687 = vshrl.u32 %v1518, 16
        %v1689 = vrot.slane %v1687, 4
        %v1690 = vor.u32 %v1689, %v1685
        %v1691 = vrot.slane %v1690, 4
        %v1693 = vshll.u32 %v1519, 16
        %v1695 = vrot.slane %v1693, 5
        %v1696 = vsel %vm1552, %v1691, %v1695
        %v1698 = vshrl.u32 %v1520, 16
        %v1700 = vrot.slane %v1698, 4
        %v1701 = vshll.u32 %v1520, 16
        %v1703 = vrot.slane %v1701, 5
        %v1704 = vor.u32 %v1700, %v1703
        %v1705 = vrot.slane %v1704, 4
        %v1707 = vshll.u32 %v1521, 16
        %v1709 = vrot.slane %v1707, 5
        %v1710 = vsel %vm1552, %v1705, %v1709
        %v1711 = vshrl.u32 %v1521, 16
        %v1713 = vrot.slane %v1711, 4
        %v1714 = vor.u32 %v1713, %v1709
        %v1715 = vrot.slane %v1714, 4
        %v1717 = vshll.u32 %v1522, 16
        %v1719 = vrot.slane %v1717, 5
        %v1720 = vsel %vm1552, %v1715, %v1719
        %v1722 = vshrl.u32 %v1523, 16
        %v1724 = vrot.slane %v1722, 4
        %v1725 = vshll.u32 %v1523, 16
        %v1727 = vrot.slane %v1725, 5
        %v1728 = vor.u32 %v1724, %v1727
        %v1729 = vrot.slane %v1728, 4
        %v1731 = vshll.u32 %v1524, 16
        %v1733 = vrot.slane %v1731, 5
        %v1734 = vsel %vm1552, %v1729, %v1733
        %v1735 = vshrl.u32 %v1524, 16
        %v1737 = vrot.slane %v1735, 4
        %v1738 = vor.u32 %v1737, %v1733
        %v1739 = vrot.slane %v1738, 4
        %v1741 = vshll.u32 %v1525, 16
        %v1743 = vrot.slane %v1741, 5
        %v1744 = vsel %vm1552, %v1739, %v1743
        %v1746 = vshrl.u32 %v1526, 16
        %v1748 = vrot.slane %v1746, 4
        %v1749 = vshll.u32 %v1526, 16
        %v1751 = vrot.slane %v1749, 5
        %v1752 = vor.u32 %v1748, %v1751
        %v1753 = vrot.slane %v1752, 4
        %v1755 = vshll.u32 %v1527, 16
        %v1757 = vrot.slane %v1755, 5
        %v1758 = vsel %vm1552, %v1753, %v1757
        %v1759 = vshrl.u32 %v1527, 16
        %v1761 = vrot.slane %v1759, 4
        %v1762 = vor.u32 %v1761, %v1757
        %v1763 = vrot.slane %v1762, 4
        %v1765 = vshll.u32 %v1528, 16
        %v1767 = vrot.slane %v1765, 5
        %v1768 = vsel %vm1552, %v1763, %v1767
        %v1770 = vshrl.u32 %v1529, 16
        %v1772 = vrot.slane %v1770, 4
        %v1773 = vshll.u32 %v1529, 16
        %v1775 = vrot.slane %v1773, 5
        %v1776 = vor.u32 %v1772, %v1775
        %v1777 = vrot.slane %v1776, 4
        %v1779 = vshll.u32 %v1530, 16
        %v1781 = vrot.slane %v1779, 5
        %v1782 = vsel %vm1552, %v1777, %v1781
        %v1783 = vshrl.u32 %v1530, 16
        %v1785 = vrot.slane %v1783, 4
        %v1786 = vor.u32 %v1785, %v1781
        %v1787 = vrot.slane %v1786, 4
        %v1789 = vshll.u32 %v1531, 16
        %v1791 = vrot.slane %v1789, 5
        %v1792 = vsel %vm1552, %v1787, %v1791
        %v1794 = vshrl.u32 %v1532, 16
        %v1796 = vrot.slane %v1794, 4
        %v1797 = vshll.u32 %v1532, 16
        %v1799 = vrot.slane %v1797, 5
        %v1800 = vor.u32 %v1796, %v1799
        %v1801 = vrot.slane %v1800, 4
        %v1803 = vshll.u32 %v1533, 16
        %v1805 = vrot.slane %v1803, 5
        %v1806 = vsel %vm1552, %v1801, %v1805
        %v1807 = vshrl.u32 %v1533, 16
        %v1809 = vrot.slane %v1807, 4
        %v1810 = vor.u32 %v1809, %v1805
        %v1811 = vrot.slane %v1810, 4
        %v1813 = vshll.u32 %v1534, 16
        %v1815 = vrot.slane %v1813, 5
        %v1816 = vsel %vm1552, %v1811, %v1815
        %v1818 = vshrl.u32 %v1535, 16
        %v1820 = vrot.slane %v1818, 4
        %v1821 = vshll.u32 %v1535, 16
        %v1823 = vrot.slane %v1821, 5
        %v1824 = vor.u32 %v1820, %v1823
        %v1825 = vrot.slane %v1824, 4
        %v1827 = vshll.u32 %v1536, 16
        %v1829 = vrot.slane %v1827, 5
        %v1830 = vsel %vm1552, %v1825, %v1829
        %v1831 = vshrl.u32 %v1536, 16
        %v1833 = vrot.slane %v1831, 4
        %v1834 = vor.u32 %v1833, %v1829
        %v1835 = vrot.slane %v1834, 4
        %v1837 = vshll.u32 %v1537, 16
        %v1839 = vrot.slane %v1837, 5
        %v1840 = vsel %vm1552, %v1835, %v1839
        %v1842 = vshrl.u32 %v1538, 16
        %v1844 = vrot.slane %v1842, 4
        %v1845 = vshll.u32 %v1538, 16
        %v1847 = vrot.slane %v1845, 5
        %v1848 = vor.u32 %v1844, %v1847
        %v1849 = vrot.slane %v1848, 4
        %v1851 = vshll.u32 %v1539, 16
        %v1853 = vrot.slane %v1851, 5
        %v1854 = vsel %vm1552, %v1849, %v1853
        %v1855 = vshrl.u32 %v1539, 16
        %v1857 = vrot.slane %v1855, 4
        %v1858 = vor.u32 %v1857, %v1853
        %v1859 = vrot.slane %v1858, 4
        %v1861 = vshll.u32 %v1540, 16
        %v1863 = vrot.slane %v1861, 5
        %v1864 = vsel %vm1552, %v1859, %v1863
        %v1866 = vshrl.u32 %v1541, 16
        %v1868 = vrot.slane %v1866, 4
        %v1869 = vshll.u32 %v1541, 16
        %v1871 = vrot.slane %v1869, 5
        %v1872 = vor.u32 %v1868, %v1871
        %v1873 = vrot.slane %v1872, 4
        %v1875 = vshll.u32 %v1542, 16
        %v1877 = vrot.slane %v1875, 5
        %v1878 = vsel %vm1552, %v1873, %v1877
        %v1879 = vshrl.u32 %v1542, 16
        %v1881 = vrot.slane %v1879, 4
        %v1882 = vor.u32 %v1881, %v1877
        %v1883 = vrot.slane %v1882, 4
        %v1885 = vshll.u32 %v1543, 16
        %v1887 = vrot.slane %v1885, 5
        %v1888 = vsel %vm1552, %v1883, %v1887
        %v1890 = vshrl.u32 %v1544, 16
        %v1892 = vrot.slane %v1890, 4
        %v1893 = vshll.u32 %v1544, 16
        %v1895 = vrot.slane %v1893, 5
        %v1896 = vor.u32 %v1892, %v1895
        %v1897 = vrot.slane %v1896, 4
        %v1899 = vshll.u32 %v1545, 16
        %v1901 = vrot.slane %v1899, 5
        %v1902 = vsel %vm1552, %v1897, %v1901
        %v1903 = vshrl.u32 %v1545, 16
        %v1905 = vrot.slane %v1903, 4
        %v1906 = vor.u32 %v1905, %v1901
        %v1907 = vrot.slane %v1906, 4
        %v1909 = vshll.u32 %v1546, 16
        %v1911 = vrot.slane %v1909, 5
        %v1912 = vsel %vm1552, %v1907, %v1911
        %v1914 = vshrl.u32 %v1547, 16
        %v1916 = vrot.slane %v1914, 4
        %v1917 = vshll.u32 %v1547, 16
        %v1919 = vrot.slane %v1917, 5
        %v1920 = vor.u32 %v1916, %v1919
        %v1921 = vrot.slane %v1920, 4
        %v1923 = vshll.u32 %v1548, 16
        %v1925 = vrot.slane %v1923, 5
        %v1926 = vsel %vm1552, %v1921, %v1925
        %v1927 = vshrl.u32 %v1548, 16
        %v1929 = vrot.slane %v1927, 4
        %v1930 = vor.u32 %v1929, %v1925
        %v1931 = vrot.slane %v1930, 4
        %v1933 = vshll.u32 %v1549, 16
        %v1935 = vrot.slane %v1933, 5
        %v1936 = vsel %vm1552, %v1931, %v1935
        %v1937 = vunpack.c.l.b16 %v1566
        %v1938 = vunpack.c.l.b16 %v1576
        %v1939 = vunpack.c.l.b16 %v1590
        %v1940 = vunpack.c.l.b16 %v1600
        %v1941 = vunpack.c.l.b16 %v1614
        %v1942 = vunpack.c.l.b16 %v1624
        %v1943 = vunpack.c.l.b16 %v1638
        %v1944 = vunpack.c.l.b16 %v1648
        %v1945 = vunpack.c.l.b16 %v1662
        %v1946 = vunpack.c.l.b16 %v1672
        %v1947 = vunpack.c.l.b16 %v1686
        %v1948 = vunpack.c.l.b16 %v1696
        %v1949 = vunpack.c.l.b16 %v1710
        %v1950 = vunpack.c.l.b16 %v1720
        %v1951 = vunpack.c.l.b16 %v1734
        %v1952 = vunpack.c.l.b16 %v1744
        %v1953 = vunpack.c.l.b16 %v1758
        %v1954 = vunpack.c.l.b16 %v1768
        %v1955 = vunpack.c.l.b16 %v1782
        %v1956 = vunpack.c.l.b16 %v1792
        %v1957 = vunpack.c.l.b16 %v1806
        %v1958 = vunpack.c.l.b16 %v1816
        %v1959 = vunpack.c.l.b16 %v1830
        %v1960 = vunpack.c.l.b16 %v1840
        %v1961 = vunpack.c.l.b16 %v1854
        %v1962 = vunpack.c.l.b16 %v1864
        %v1963 = vunpack.c.l.b16 %v1878
        %v1964 = vunpack.c.l.b16 %v1888
        %v1965 = vunpack.c.l.b16 %v1902
        %v1966 = vunpack.c.l.b16 %v1912
        %v1967 = vunpack.c.l.b16 %v1926
        %v1968 = vunpack.c.l.b16 %v1936
        %v1969 = vpack.c.b16 %v1938, %v1937
        %v1970 = vpack.c.b16 %v1940, %v1939
        %v1971 = vpack.c.b16 %v1942, %v1941
        %v1972 = vpack.c.b16 %v1944, %v1943
        %v1973 = vpack.c.b16 %v1946, %v1945
        %v1974 = vpack.c.b16 %v1948, %v1947
        %v1975 = vpack.c.b16 %v1950, %v1949
        %v1976 = vpack.c.b16 %v1952, %v1951
        %v1977 = vpack.c.b16 %v1954, %v1953
        %v1978 = vpack.c.b16 %v1956, %v1955
        %v1979 = vpack.c.b16 %v1958, %v1957
        %v1980 = vpack.c.b16 %v1960, %v1959
        %v1981 = vpack.c.b16 %v1962, %v1961
        %v1982 = vpack.c.b16 %v1964, %v1963
        %v1983 = vpack.c.b16 %v1966, %v1965
        %v1984 = vpack.c.b16 %v1968, %v1967
        %1985 = vrot.lane.b32.xlu0 %v1969, 32
        %v1986 = vpop.permute.xlu0 %1985
        %1987 = vrot.lane.b32.xlu0 %v1970, 32
        %v1988 = vpop.permute.xlu0 %1987
        %1989 = vrot.lane.b32.xlu0 %v1971, 32
        %v1990 = vpop.permute.xlu0 %1989
        %1991 = vrot.lane.b32.xlu0 %v1972, 32
        %v1992 = vpop.permute.xlu0 %1991
        %1993 = vrot.lane.b32.xlu0 %v1973, 32
        %v1994 = vpop.permute.xlu0 %1993
        %1995 = vrot.lane.b32.xlu0 %v1974, 32
        %v1996 = vpop.permute.xlu0 %1995
        %1997 = vrot.lane.b32.xlu0 %v1975, 32
        %v1998 = vpop.permute.xlu0 %1997
        %1999 = vrot.lane.b32.xlu0 %v1976, 32
        %v2000 = vpop.permute.xlu0 %1999
        %2001 = vrot.lane.b32.xlu0 %v1977, 32
        %v2002 = vpop.permute.xlu0 %2001
        %2003 = vrot.lane.b32.xlu0 %v1978, 32
        %v2004 = vpop.permute.xlu0 %2003
        %2005 = vrot.lane.b32.xlu0 %v1979, 32
        %v2006 = vpop.permute.xlu0 %2005
        %2007 = vrot.lane.b32.xlu0 %v1980, 32
        %v2008 = vpop.permute.xlu0 %2007
        %2009 = vrot.lane.b32.xlu0 %v1981, 32
        %v2010 = vpop.permute.xlu0 %2009
        %2011 = vrot.lane.b32.xlu0 %v1982, 32
        %v2012 = vpop.permute.xlu0 %2011
        %2013 = vrot.lane.b32.xlu0 %v1983, 32
        %v2014 = vpop.permute.xlu0 %2013
        %2015 = vrot.lane.b32.xlu0 %v1984, 32
        %v2016 = vpop.permute.xlu0 %2015
        %vm2033 = vcmask 523520
        %2034 = vst.msk [vmem:[#allocation3] sm:$0xff] %vm2033, %v1986
        %2035 = vst.msk [vmem:[#allocation3 + $0x18] sm:$0xff] %vm2033, %v1988
        %2036 = vst.msk [vmem:[#allocation3 + $0x30] sm:$0xff] %vm2033, %v1990
        %2037 = vst.msk [vmem:[#allocation3 + $0x48] sm:$0xff] %vm2033, %v1992
        %2038 = vst.msk [vmem:[#allocation3 + $0x60] sm:$0xff] %vm2033, %v1994
        %2039 = vst.msk [vmem:[#allocation3 + $0x78] sm:$0xff] %vm2033, %v1996
        %2040 = vst.msk [vmem:[#allocation3 + $0x90] sm:$0xff] %vm2033, %v1998
        %2041 = vst.msk [vmem:[#allocation3 + $0xa8] sm:$0xff] %vm2033, %v2000
        %2042 = vst.msk [vmem:[#allocation3 + $0xc0] sm:$0xff] %vm2033, %v2002
        %2043 = vst.msk [vmem:[#allocation3 + $0xd8] sm:$0xff] %vm2033, %v2004
        %2044 = vst.msk [vmem:[#allocation3 + $0xf0] sm:$0xff] %vm2033, %v2006
        %2045 = vst.msk [vmem:[#allocation3 + $0x108] sm:$0xff] %vm2033, %v2008
        %2046 = vst.msk [vmem:[#allocation3 + $0x120] sm:$0xff] %vm2033, %v2010
        %2047 = vst.msk [vmem:[#allocation3 + $0x138] sm:$0xff] %vm2033, %v2012
        %2048 = vst.msk [vmem:[#allocation3 + $0x150] sm:$0xff] %vm2033, %v2014
        %2049 = vst.msk [vmem:[#allocation3 + $0x168] sm:$0xff] %vm2033, %v2016
        %v2050 = vld [vmem:[#allocation2] sm:$0xe]
        %v2051 = vld [vmem:[#allocation2 + $0x4] sm:$0xf]
        %v2052 = vld [vmem:[#allocation2 + $0x8] sm:$0x1]
        %v2053 = vld [vmem:[#allocation2 + $0xc] sm:$0xe]
        %v2054 = vld [vmem:[#allocation2 + $0x10] sm:$0xf]
        %v2055 = vld [vmem:[#allocation2 + $0x14] sm:$0x1]
        %v2056 = vld [vmem:[#allocation2 + $0x18] sm:$0xe]
        %v2057 = vld [vmem:[#allocation2 + $0x1c] sm:$0xf]
        %v2058 = vld [vmem:[#allocation2 + $0x20] sm:$0x1]
        %v2059 = vld [vmem:[#allocation2 + $0x24] sm:$0xe]
        %v2060 = vld [vmem:[#allocation2 + $0x28] sm:$0xf]
        %v2061 = vld [vmem:[#allocation2 + $0x2c] sm:$0x1]
        %v2062 = vld [vmem:[#allocation2 + $0x30] sm:$0xe]
        %v2063 = vld [vmem:[#allocation2 + $0x34] sm:$0xf]
        %v2064 = vld [vmem:[#allocation2 + $0x38] sm:$0x1]
        %v2065 = vld [vmem:[#allocation2 + $0x3c] sm:$0xe]
        %v2066 = vld [vmem:[#allocation2 + $0x40] sm:$0xf]
        %v2067 = vld [vmem:[#allocation2 + $0x44] sm:$0x1]
        %v2068 = vld [vmem:[#allocation2 + $0x48] sm:$0xe]
        %v2069 = vld [vmem:[#allocation2 + $0x4c] sm:$0xf]
        %v2070 = vld [vmem:[#allocation2 + $0x50] sm:$0x1]
        %v2071 = vld [vmem:[#allocation2 + $0x54] sm:$0xe]
        %v2072 = vld [vmem:[#allocation2 + $0x58] sm:$0xf]
        %v2073 = vld [vmem:[#allocation2 + $0x5c] sm:$0x1]
        %v2074 = vld [vmem:[#allocation2 + $0x60] sm:$0xe]
        %v2075 = vld [vmem:[#allocation2 + $0x64] sm:$0xf]
        %v2076 = vld [vmem:[#allocation2 + $0x68] sm:$0x1]
        %v2077 = vld [vmem:[#allocation2 + $0x6c] sm:$0xe]
        %v2078 = vld [vmem:[#allocation2 + $0x70] sm:$0xf]
        %v2079 = vld [vmem:[#allocation2 + $0x74] sm:$0x1]
        %v2080 = vld [vmem:[#allocation2 + $0x78] sm:$0xe]
        %v2081 = vld [vmem:[#allocation2 + $0x7c] sm:$0xf]
        %v2082 = vld [vmem:[#allocation2 + $0x80] sm:$0x1]
        %v2083 = vld [vmem:[#allocation2 + $0x84] sm:$0xe]
        %v2084 = vld [vmem:[#allocation2 + $0x88] sm:$0xf]
        %v2085 = vld [vmem:[#allocation2 + $0x8c] sm:$0x1]
        %v2086 = vld [vmem:[#allocation2 + $0x90] sm:$0xe]
        %v2087 = vld [vmem:[#allocation2 + $0x94] sm:$0xf]
        %v2088 = vld [vmem:[#allocation2 + $0x98] sm:$0x1]
        %v2089 = vld [vmem:[#allocation2 + $0x9c] sm:$0xe]
        %v2090 = vld [vmem:[#allocation2 + $0xa0] sm:$0xf]
        %v2091 = vld [vmem:[#allocation2 + $0xa4] sm:$0x1]
        %v2092 = vld [vmem:[#allocation2 + $0xa8] sm:$0xe]
        %v2093 = vld [vmem:[#allocation2 + $0xac] sm:$0xf]
        %v2094 = vld [vmem:[#allocation2 + $0xb0] sm:$0x1]
        %v2095 = vld [vmem:[#allocation2 + $0xb4] sm:$0xe]
        %v2096 = vld [vmem:[#allocation2 + $0xb8] sm:$0xf]
        %v2097 = vld [vmem:[#allocation2 + $0xbc] sm:$0x1]
        %vm2146 = vcmask 1042432
        %vm2147 = vcmask 1046532
        %vm2148 = vmor %vm2146, %vm2147
        %v2149 = vrot.slane %v2050, 5
        %v2150 = vrot.slane %v2149, 4
        %v2151 = vrot.slane %v2051, 5
        %v2152 = vsel %vm2148, %v2150, %v2151
        %v2153 = vrot.slane %v2151, 4
        %v2154 = vrot.slane %v2052, 5
        %v2155 = vsel %vm2148, %v2153, %v2154
        %v2156 = vrot.slane %v2053, 5
        %v2157 = vrot.slane %v2156, 4
        %v2158 = vrot.slane %v2054, 5
        %v2159 = vsel %vm2148, %v2157, %v2158
        %v2160 = vrot.slane %v2158, 4
        %v2161 = vrot.slane %v2055, 5
        %v2162 = vsel %vm2148, %v2160, %v2161
        %v2163 = vrot.slane %v2056, 5
        %v2164 = vrot.slane %v2163, 4
        %v2165 = vrot.slane %v2057, 5
        %v2166 = vsel %vm2148, %v2164, %v2165
        %v2167 = vrot.slane %v2165, 4
        %v2168 = vrot.slane %v2058, 5
        %v2169 = vsel %vm2148, %v2167, %v2168
        %v2170 = vrot.slane %v2059, 5
        %v2171 = vrot.slane %v2170, 4
        %v2172 = vrot.slane %v2060, 5
        %v2173 = vsel %vm2148, %v2171, %v2172
        %v2174 = vrot.slane %v2172, 4
        %v2175 = vrot.slane %v2061, 5
        %v2176 = vsel %vm2148, %v2174, %v2175
        %v2177 = vrot.slane %v2062, 5
        %v2178 = vrot.slane %v2177, 4
        %v2179 = vrot.slane %v2063, 5
        %v2180 = vsel %vm2148, %v2178, %v2179
        %v2181 = vrot.slane %v2179, 4
        %v2182 = vrot.slane %v2064, 5
        %v2183 = vsel %vm2148, %v2181, %v2182
        %v2184 = vrot.slane %v2065, 5
        %v2185 = vrot.slane %v2184, 4
        %v2186 = vrot.slane %v2066, 5
        %v2187 = vsel %vm2148, %v2185, %v2186
        %v2188 = vrot.slane %v2186, 4
        %v2189 = vrot.slane %v2067, 5
        %v2190 = vsel %vm2148, %v2188, %v2189
        %v2191 = vrot.slane %v2068, 5
        %v2192 = vrot.slane %v2191, 4
        %v2193 = vrot.slane %v2069, 5
        %v2194 = vsel %vm2148, %v2192, %v2193
        %v2195 = vrot.slane %v2193, 4
        %v2196 = vrot.slane %v2070, 5
        %v2197 = vsel %vm2148, %v2195, %v2196
        %v2198 = vrot.slane %v2071, 5
        %v2199 = vrot.slane %v2198, 4
        %v2200 = vrot.slane %v2072, 5
        %v2201 = vsel %vm2148, %v2199, %v2200
        %v2202 = vrot.slane %v2200, 4
        %v2203 = vrot.slane %v2073, 5
        %v2204 = vsel %vm2148, %v2202, %v2203
        %v2205 = vrot.slane %v2074, 5
        %v2206 = vrot.slane %v2205, 4
        %v2207 = vrot.slane %v2075, 5
        %v2208 = vsel %vm2148, %v2206, %v2207
        %v2209 = vrot.slane %v2207, 4
        %v2210 = vrot.slane %v2076, 5
        %v2211 = vsel %vm2148, %v2209, %v2210
        %v2212 = vrot.slane %v2077, 5
        %v2213 = vrot.slane %v2212, 4
        %v2214 = vrot.slane %v2078, 5
        %v2215 = vsel %vm2148, %v2213, %v2214
        %v2216 = vrot.slane %v2214, 4
        %v2217 = vrot.slane %v2079, 5
        %v2218 = vsel %vm2148, %v2216, %v2217
        %v2219 = vrot.slane %v2080, 5
        %v2220 = vrot.slane %v2219, 4
        %v2221 = vrot.slane %v2081, 5
        %v2222 = vsel %vm2148, %v2220, %v2221
        %v2223 = vrot.slane %v2221, 4
        %v2224 = vrot.slane %v2082, 5
        %v2225 = vsel %vm2148, %v2223, %v2224
        %v2226 = vrot.slane %v2083, 5
        %v2227 = vrot.slane %v2226, 4
        %v2228 = vrot.slane %v2084, 5
        %v2229 = vsel %vm2148, %v2227, %v2228
        %v2230 = vrot.slane %v2228, 4
        %v2231 = vrot.slane %v2085, 5
        %v2232 = vsel %vm2148, %v2230, %v2231
        %v2233 = vrot.slane %v2086, 5
        %v2234 = vrot.slane %v2233, 4
        %v2235 = vrot.slane %v2087, 5
        %v2236 = vsel %vm2148, %v2234, %v2235
        %v2237 = vrot.slane %v2235, 4
        %v2238 = vrot.slane %v2088, 5
        %v2239 = vsel %vm2148, %v2237, %v2238
        %v2240 = vrot.slane %v2089, 5
        %v2241 = vrot.slane %v2240, 4
        %v2242 = vrot.slane %v2090, 5
        %v2243 = vsel %vm2148, %v2241, %v2242
        %v2244 = vrot.slane %v2242, 4
        %v2245 = vrot.slane %v2091, 5
        %v2246 = vsel %vm2148, %v2244, %v2245
        %v2247 = vrot.slane %v2092, 5
        %v2248 = vrot.slane %v2247, 4
        %v2249 = vrot.slane %v2093, 5
        %v2250 = vsel %vm2148, %v2248, %v2249
        %v2251 = vrot.slane %v2249, 4
        %v2252 = vrot.slane %v2094, 5
        %v2253 = vsel %vm2148, %v2251, %v2252
        %v2254 = vrot.slane %v2095, 5
        %v2255 = vrot.slane %v2254, 4
        %v2256 = vrot.slane %v2096, 5
        %v2257 = vsel %vm2148, %v2255, %v2256
        %v2258 = vrot.slane %v2256, 4
        %v2259 = vrot.slane %v2097, 5
        %v2260 = vsel %vm2148, %v2258, %v2259
        %v2261 = vunpack.c.l.b16 %v2152
        %v2262 = vunpack.c.l.b16 %v2155
        %v2263 = vunpack.c.l.b16 %v2159
        %v2264 = vunpack.c.l.b16 %v2162
        %v2265 = vunpack.c.l.b16 %v2166
        %v2266 = vunpack.c.l.b16 %v2169
        %v2267 = vunpack.c.l.b16 %v2173
        %v2268 = vunpack.c.l.b16 %v2176
        %v2269 = vunpack.c.l.b16 %v2180
        %v2270 = vunpack.c.l.b16 %v2183
        %v2271 = vunpack.c.l.b16 %v2187
        %v2272 = vunpack.c.l.b16 %v2190
        %v2273 = vunpack.c.l.b16 %v2194
        %v2274 = vunpack.c.l.b16 %v2197
        %v2275 = vunpack.c.l.b16 %v2201
        %v2276 = vunpack.c.l.b16 %v2204
        %v2277 = vunpack.c.l.b16 %v2208
        %v2278 = vunpack.c.l.b16 %v2211
        %v2279 = vunpack.c.l.b16 %v2215
        %v2280 = vunpack.c.l.b16 %v2218
        %v2281 = vunpack.c.l.b16 %v2222
        %v2282 = vunpack.c.l.b16 %v2225
        %v2283 = vunpack.c.l.b16 %v2229
        %v2284 = vunpack.c.l.b16 %v2232
        %v2285 = vunpack.c.l.b16 %v2236
        %v2286 = vunpack.c.l.b16 %v2239
        %v2287 = vunpack.c.l.b16 %v2243
        %v2288 = vunpack.c.l.b16 %v2246
        %v2289 = vunpack.c.l.b16 %v2250
        %v2290 = vunpack.c.l.b16 %v2253
        %v2291 = vunpack.c.l.b16 %v2257
        %v2292 = vunpack.c.l.b16 %v2260
        %v2293 = vpack.c.b16 %v2262, %v2261
        %v2294 = vpack.c.b16 %v2264, %v2263
        %v2295 = vpack.c.b16 %v2266, %v2265
        %v2296 = vpack.c.b16 %v2268, %v2267
        %v2297 = vpack.c.b16 %v2270, %v2269
        %v2298 = vpack.c.b16 %v2272, %v2271
        %v2299 = vpack.c.b16 %v2274, %v2273
        %v2300 = vpack.c.b16 %v2276, %v2275
        %v2301 = vpack.c.b16 %v2278, %v2277
        %v2302 = vpack.c.b16 %v2280, %v2279
        %v2303 = vpack.c.b16 %v2282, %v2281
        %v2304 = vpack.c.b16 %v2284, %v2283
        %v2305 = vpack.c.b16 %v2286, %v2285
        %v2306 = vpack.c.b16 %v2288, %v2287
        %v2307 = vpack.c.b16 %v2290, %v2289
        %v2308 = vpack.c.b16 %v2292, %v2291
        %2309 = vrot.lane.b32.xlu0 %v2293, 64
        %v2310 = vpop.permute.xlu0 %2309
        %2311 = vrot.lane.b32.xlu0 %v2294, 64
        %v2312 = vpop.permute.xlu0 %2311
        %2313 = vrot.lane.b32.xlu0 %v2295, 64
        %v2314 = vpop.permute.xlu0 %2313
        %2315 = vrot.lane.b32.xlu0 %v2296, 64
        %v2316 = vpop.permute.xlu0 %2315
        %2317 = vrot.lane.b32.xlu0 %v2297, 64
        %v2318 = vpop.permute.xlu0 %2317
        %2319 = vrot.lane.b32.xlu0 %v2298, 64
        %v2320 = vpop.permute.xlu0 %2319
        %2321 = vrot.lane.b32.xlu0 %v2299, 64
        %v2322 = vpop.permute.xlu0 %2321
        %2323 = vrot.lane.b32.xlu0 %v2300, 64
        %v2324 = vpop.permute.xlu0 %2323
        %2325 = vrot.lane.b32.xlu0 %v2301, 64
        %v2326 = vpop.permute.xlu0 %2325
        %2327 = vrot.lane.b32.xlu0 %v2302, 64
        %v2328 = vpop.permute.xlu0 %2327
        %2329 = vrot.lane.b32.xlu0 %v2303, 64
        %v2330 = vpop.permute.xlu0 %2329
        %2331 = vrot.lane.b32.xlu0 %v2304, 64
        %v2332 = vpop.permute.xlu0 %2331
        %2333 = vrot.lane.b32.xlu0 %v2305, 64
        %v2334 = vpop.permute.xlu0 %2333
        %2335 = vrot.lane.b32.xlu0 %v2306, 64
        %v2336 = vpop.permute.xlu0 %2335
        %2337 = vrot.lane.b32.xlu0 %v2307, 64
        %v2338 = vpop.permute.xlu0 %2337
        %2339 = vrot.lane.b32.xlu0 %v2308, 64
        %v2340 = vpop.permute.xlu0 %2339
        %vm2357 = vcmask 785920
        %2358 = vst.msk [vmem:[#allocation3] sm:$0xff] %vm2357, %v2310
        %2359 = vst.msk [vmem:[#allocation3 + $0x18] sm:$0xff] %vm2357, %v2312
        %2360 = vst.msk [vmem:[#allocation3 + $0x30] sm:$0xff] %vm2357, %v2314
        %2361 = vst.msk [vmem:[#allocation3 + $0x48] sm:$0xff] %vm2357, %v2316
        %2362 = vst.msk [vmem:[#allocation3 + $0x60] sm:$0xff] %vm2357, %v2318
        %2363 = vst.msk [vmem:[#allocation3 + $0x78] sm:$0xff] %vm2357, %v2320
        %2364 = vst.msk [vmem:[#allocation3 + $0x90] sm:$0xff] %vm2357, %v2322
        %2365 = vst.msk [vmem:[#allocation3 + $0xa8] sm:$0xff] %vm2357, %v2324
        %2366 = vst.msk [vmem:[#allocation3 + $0xc0] sm:$0xff] %vm2357, %v2326
        %2367 = vst.msk [vmem:[#allocation3 + $0xd8] sm:$0xff] %vm2357, %v2328
        %2368 = vst.msk [vmem:[#allocation3 + $0xf0] sm:$0xff] %vm2357, %v2330
        %2369 = vst.msk [vmem:[#allocation3 + $0x108] sm:$0xff] %vm2357, %v2332
        %2370 = vst.msk [vmem:[#allocation3 + $0x120] sm:$0xff] %vm2357, %v2334
        %2371 = vst.msk [vmem:[#allocation3 + $0x138] sm:$0xff] %vm2357, %v2336
        %2372 = vst.msk [vmem:[#allocation3 + $0x150] sm:$0xff] %vm2357, %v2338
        %2373 = vst.msk [vmem:[#allocation3 + $0x168] sm:$0xff] %vm2357, %v2340
        %v2374 = vld [vmem:[%s1242] sm:$0xf]
        %v2375 = vld [vmem:[%s1242 + $0x4] sm:$0xf]
        %v2376 = vld [vmem:[%s1242 + $0xc] sm:$0xf]
        %v2377 = vld [vmem:[%s1242 + $0x10] sm:$0xf]
        %v2378 = vld [vmem:[%s1242 + $0x18] sm:$0xf]
        %v2379 = vld [vmem:[%s1242 + $0x1c] sm:$0xf]
        %v2380 = vld [vmem:[%s1242 + $0x24] sm:$0xf]
        %v2381 = vld [vmem:[%s1242 + $0x28] sm:$0xf]
        %v2382 = vld [vmem:[%s1242 + $0x30] sm:$0xf]
        %v2383 = vld [vmem:[%s1242 + $0x34] sm:$0xf]
        %v2384 = vld [vmem:[%s1242 + $0x3c] sm:$0xf]
        %v2385 = vld [vmem:[%s1242 + $0x40] sm:$0xf]
        %v2386 = vld [vmem:[%s1242 + $0x48] sm:$0xf]
        %v2387 = vld [vmem:[%s1242 + $0x4c] sm:$0xf]
        %v2388 = vld [vmem:[%s1242 + $0x54] sm:$0xf]
        %v2389 = vld [vmem:[%s1242 + $0x58] sm:$0xf]
        %v2390 = vld [vmem:[%s1242 + $0x60] sm:$0xf]
        %v2391 = vld [vmem:[%s1242 + $0x64] sm:$0xf]
        %v2392 = vld [vmem:[%s1242 + $0x6c] sm:$0xf]
        %v2393 = vld [vmem:[%s1242 + $0x70] sm:$0xf]
        %v2394 = vld [vmem:[%s1242 + $0x78] sm:$0xf]
        %v2395 = vld [vmem:[%s1242 + $0x7c] sm:$0xf]
        %v2396 = vld [vmem:[%s1242 + $0x84] sm:$0xf]
        %v2397 = vld [vmem:[%s1242 + $0x88] sm:$0xf]
        %v2398 = vld [vmem:[%s1242 + $0x90] sm:$0xf]
        %v2399 = vld [vmem:[%s1242 + $0x94] sm:$0xf]
        %v2400 = vld [vmem:[%s1242 + $0x9c] sm:$0xf]
        %v2401 = vld [vmem:[%s1242 + $0xa0] sm:$0xf]
        %v2402 = vld [vmem:[%s1242 + $0xa8] sm:$0xf]
        %v2403 = vld [vmem:[%s1242 + $0xac] sm:$0xf]
        %v2404 = vld [vmem:[%s1242 + $0xb4] sm:$0xf]
        %v2405 = vld [vmem:[%s1242 + $0xb8] sm:$0xf]
        %v2438 = vunpack.c.l.b16 %v2374
        %v2439 = vunpack.c.l.b16 %v2375
        %v2440 = vunpack.c.l.b16 %v2376
        %v2441 = vunpack.c.l.b16 %v2377
        %v2442 = vunpack.c.l.b16 %v2378
        %v2443 = vunpack.c.l.b16 %v2379
        %v2444 = vunpack.c.l.b16 %v2380
        %v2445 = vunpack.c.l.b16 %v2381
        %v2446 = vunpack.c.l.b16 %v2382
        %v2447 = vunpack.c.l.b16 %v2383
        %v2448 = vunpack.c.l.b16 %v2384
        %v2449 = vunpack.c.l.b16 %v2385
        %v2450 = vunpack.c.l.b16 %v2386
        %v2451 = vunpack.c.l.b16 %v2387
        %v2452 = vunpack.c.l.b16 %v2388
        %v2453 = vunpack.c.l.b16 %v2389
        %v2454 = vunpack.c.l.b16 %v2390
        %v2455 = vunpack.c.l.b16 %v2391
        %v2456 = vunpack.c.l.b16 %v2392
        %v2457 = vunpack.c.l.b16 %v2393
        %v2458 = vunpack.c.l.b16 %v2394
        %v2459 = vunpack.c.l.b16 %v2395
        %v2460 = vunpack.c.l.b16 %v2396
        %v2461 = vunpack.c.l.b16 %v2397
        %v2462 = vunpack.c.l.b16 %v2398
        %v2463 = vunpack.c.l.b16 %v2399
        %v2464 = vunpack.c.l.b16 %v2400
        %v2465 = vunpack.c.l.b16 %v2401
        %v2466 = vunpack.c.l.b16 %v2402
        %v2467 = vunpack.c.l.b16 %v2403
        %v2468 = vunpack.c.l.b16 %v2404
        %v2469 = vunpack.c.l.b16 %v2405
        %v2470 = vpack.c.b16 %v2439, %v2438
        %v2471 = vpack.c.b16 %v2441, %v2440
        %v2472 = vpack.c.b16 %v2443, %v2442
        %v2473 = vpack.c.b16 %v2445, %v2444
        %v2474 = vpack.c.b16 %v2447, %v2446
        %v2475 = vpack.c.b16 %v2449, %v2448
        %v2476 = vpack.c.b16 %v2451, %v2450
        %v2477 = vpack.c.b16 %v2453, %v2452
        %v2478 = vpack.c.b16 %v2455, %v2454
        %v2479 = vpack.c.b16 %v2457, %v2456
        %v2480 = vpack.c.b16 %v2459, %v2458
        %v2481 = vpack.c.b16 %v2461, %v2460
        %v2482 = vpack.c.b16 %v2463, %v2462
        %v2483 = vpack.c.b16 %v2465, %v2464
        %v2484 = vpack.c.b16 %v2467, %v2466
        %v2485 = vpack.c.b16 %v2469, %v2468
        %2486 = vrot.lane.b32.xlu0 %v2470, 96
        %v2487 = vpop.permute.xlu0 %2486
        %2488 = vrot.lane.b32.xlu0 %v2471, 96
        %v2489 = vpop.permute.xlu0 %2488
        %2490 = vrot.lane.b32.xlu0 %v2472, 96
        %v2491 = vpop.permute.xlu0 %2490
        %2492 = vrot.lane.b32.xlu0 %v2473, 96
        %v2493 = vpop.permute.xlu0 %2492
        %2494 = vrot.lane.b32.xlu0 %v2474, 96
        %v2495 = vpop.permute.xlu0 %2494
        %2496 = vrot.lane.b32.xlu0 %v2475, 96
        %v2497 = vpop.permute.xlu0 %2496
        %2498 = vrot.lane.b32.xlu0 %v2476, 96
        %v2499 = vpop.permute.xlu0 %2498
        %2500 = vrot.lane.b32.xlu0 %v2477, 96
        %v2501 = vpop.permute.xlu0 %2500
        %2502 = vrot.lane.b32.xlu0 %v2478, 96
        %v2503 = vpop.permute.xlu0 %2502
        %2504 = vrot.lane.b32.xlu0 %v2479, 96
        %v2505 = vpop.permute.xlu0 %2504
        %2506 = vrot.lane.b32.xlu0 %v2480, 96
        %v2507 = vpop.permute.xlu0 %2506
        %2508 = vrot.lane.b32.xlu0 %v2481, 96
        %v2509 = vpop.permute.xlu0 %2508
        %2510 = vrot.lane.b32.xlu0 %v2482, 96
        %v2511 = vpop.permute.xlu0 %2510
        %2512 = vrot.lane.b32.xlu0 %v2483, 96
        %v2513 = vpop.permute.xlu0 %2512
        %2514 = vrot.lane.b32.xlu0 %v2484, 96
        %v2515 = vpop.permute.xlu0 %2514
        %2516 = vrot.lane.b32.xlu0 %v2485, 96
        %v2517 = vpop.permute.xlu0 %2516
        %vm2534 = vcmask 1048320
        %2535 = vst.msk [vmem:[#allocation3] sm:$0xff] %vm2534, %v2487
        %2536 = vst.msk [vmem:[#allocation3 + $0x18] sm:$0xff] %vm2534, %v2489
        %2537 = vst.msk [vmem:[#allocation3 + $0x30] sm:$0xff] %vm2534, %v2491
        %2538 = vst.msk [vmem:[#allocation3 + $0x48] sm:$0xff] %vm2534, %v2493
        %2539 = vst.msk [vmem:[#allocation3 + $0x60] sm:$0xff] %vm2534, %v2495
        %2540 = vst.msk [vmem:[#allocation3 + $0x78] sm:$0xff] %vm2534, %v2497
        %2541 = vst.msk [vmem:[#allocation3 + $0x90] sm:$0xff] %vm2534, %v2499
        %2542 = vst.msk [vmem:[#allocation3 + $0xa8] sm:$0xff] %vm2534, %v2501
        %2543 = vst.msk [vmem:[#allocation3 + $0xc0] sm:$0xff] %vm2534, %v2503
        %2544 = vst.msk [vmem:[#allocation3 + $0xd8] sm:$0xff] %vm2534, %v2505
        %2545 = vst.msk [vmem:[#allocation3 + $0xf0] sm:$0xff] %vm2534, %v2507
        %2546 = vst.msk [vmem:[#allocation3 + $0x108] sm:$0xff] %vm2534, %v2509
        %2547 = vst.msk [vmem:[#allocation3 + $0x120] sm:$0xff] %vm2534, %v2511
        %2548 = vst.msk [vmem:[#allocation3 + $0x138] sm:$0xff] %vm2534, %v2513
        %2549 = vst.msk [vmem:[#allocation3 + $0x150] sm:$0xff] %vm2534, %v2515
        %2550 = vst.msk [vmem:[#allocation3 + $0x168] sm:$0xff] %vm2534, %v2517
        %v2551 = vld [vmem:[%s1242] sm:$0xf]
        %v2552 = vld [vmem:[%s1242 + $0x4] sm:$0xf]
        %v2553 = vld [vmem:[%s1242 + $0x8] sm:$0x1]
        %v2554 = vld [vmem:[%s1242 + $0xc] sm:$0xf]
        %v2555 = vld [vmem:[%s1242 + $0x10] sm:$0xf]
        %v2556 = vld [vmem:[%s1242 + $0x14] sm:$0x1]
        %v2557 = vld [vmem:[%s1242 + $0x18] sm:$0xf]
        %v2558 = vld [vmem:[%s1242 + $0x1c] sm:$0xf]
        %v2559 = vld [vmem:[%s1242 + $0x20] sm:$0x1]
        %v2560 = vld [vmem:[%s1242 + $0x24] sm:$0xf]
        %v2561 = vld [vmem:[%s1242 + $0x28] sm:$0xf]
        %v2562 = vld [vmem:[%s1242 + $0x2c] sm:$0x1]
        %v2563 = vld [vmem:[%s1242 + $0x30] sm:$0xf]
        %v2564 = vld [vmem:[%s1242 + $0x34] sm:$0xf]
        %v2565 = vld [vmem:[%s1242 + $0x38] sm:$0x1]
        %v2566 = vld [vmem:[%s1242 + $0x3c] sm:$0xf]
        %v2567 = vld [vmem:[%s1242 + $0x40] sm:$0xf]
        %v2568 = vld [vmem:[%s1242 + $0x44] sm:$0x1]
        %v2569 = vld [vmem:[%s1242 + $0x48] sm:$0xf]
        %v2570 = vld [vmem:[%s1242 + $0x4c] sm:$0xf]
        %v2571 = vld [vmem:[%s1242 + $0x50] sm:$0x1]
        %v2572 = vld [vmem:[%s1242 + $0x54] sm:$0xf]
        %v2573 = vld [vmem:[%s1242 + $0x58] sm:$0xf]
        %v2574 = vld [vmem:[%s1242 + $0x5c] sm:$0x1]
        %v2575 = vld [vmem:[%s1242 + $0x60] sm:$0xf]
        %v2576 = vld [vmem:[%s1242 + $0x64] sm:$0xf]
        %v2577 = vld [vmem:[%s1242 + $0x68] sm:$0x1]
        %v2578 = vld [vmem:[%s1242 + $0x6c] sm:$0xf]
        %v2579 = vld [vmem:[%s1242 + $0x70] sm:$0xf]
        %v2580 = vld [vmem:[%s1242 + $0x74] sm:$0x1]
        %v2581 = vld [vmem:[%s1242 + $0x78] sm:$0xf]
        %v2582 = vld [vmem:[%s1242 + $0x7c] sm:$0xf]
        %v2583 = vld [vmem:[%s1242 + $0x80] sm:$0x1]
        %v2584 = vld [vmem:[%s1242 + $0x84] sm:$0xf]
        %v2585 = vld [vmem:[%s1242 + $0x88] sm:$0xf]
        %v2586 = vld [vmem:[%s1242 + $0x8c] sm:$0x1]
        %v2587 = vld [vmem:[%s1242 + $0x90] sm:$0xf]
        %v2588 = vld [vmem:[%s1242 + $0x94] sm:$0xf]
        %v2589 = vld [vmem:[%s1242 + $0x98] sm:$0x1]
        %v2590 = vld [vmem:[%s1242 + $0x9c] sm:$0xf]
        %v2591 = vld [vmem:[%s1242 + $0xa0] sm:$0xf]
        %v2592 = vld [vmem:[%s1242 + $0xa4] sm:$0x1]
        %v2593 = vld [vmem:[%s1242 + $0xa8] sm:$0xf]
        %v2594 = vld [vmem:[%s1242 + $0xac] sm:$0xf]
        %v2595 = vld [vmem:[%s1242 + $0xb0] sm:$0x1]
        %v2596 = vld [vmem:[%s1242 + $0xb4] sm:$0xf]
        %v2597 = vld [vmem:[%s1242 + $0xb8] sm:$0xf]
        %v2598 = vld [vmem:[%s1242 + $0xbc] sm:$0x1]
        %v2600 = vshrl.u32 %v2551, 16
        %v2602 = vrot.slane %v2600, 4
        %v2603 = vshll.u32 %v2551, 16
        %v2605 = vrot.slane %v2603, 5
        %v2606 = vor.u32 %v2602, %v2605
        %v2607 = vrot.slane %v2606, 4
        %v2609 = vshll.u32 %v2552, 16
        %v2611 = vrot.slane %v2609, 5
        %v2612 = vsel %vm1552, %v2607, %v2611
        %v2613 = vshrl.u32 %v2552, 16
        %v2615 = vrot.slane %v2613, 4
        %v2616 = vor.u32 %v2615, %v2611
        %v2617 = vrot.slane %v2616, 4
        %v2619 = vshll.u32 %v2553, 16
        %v2621 = vrot.slane %v2619, 5
        %v2622 = vsel %vm1552, %v2617, %v2621
        %v2624 = vshrl.u32 %v2554, 16
        %v2626 = vrot.slane %v2624, 4
        %v2627 = vshll.u32 %v2554, 16
        %v2629 = vrot.slane %v2627, 5
        %v2630 = vor.u32 %v2626, %v2629
        %v2631 = vrot.slane %v2630, 4
        %v2633 = vshll.u32 %v2555, 16
        %v2635 = vrot.slane %v2633, 5
        %v2636 = vsel %vm1552, %v2631, %v2635
        %v2637 = vshrl.u32 %v2555, 16
        %v2639 = vrot.slane %v2637, 4
        %v2640 = vor.u32 %v2639, %v2635
        %v2641 = vrot.slane %v2640, 4
        %v2643 = vshll.u32 %v2556, 16
        %v2645 = vrot.slane %v2643, 5
        %v2646 = vsel %vm1552, %v2641, %v2645
        %v2648 = vshrl.u32 %v2557, 16
        %v2650 = vrot.slane %v2648, 4
        %v2651 = vshll.u32 %v2557, 16
        %v2653 = vrot.slane %v2651, 5
        %v2654 = vor.u32 %v2650, %v2653
        %v2655 = vrot.slane %v2654, 4
        %v2657 = vshll.u32 %v2558, 16
        %v2659 = vrot.slane %v2657, 5
        %v2660 = vsel %vm1552, %v2655, %v2659
        %v2661 = vshrl.u32 %v2558, 16
        %v2663 = vrot.slane %v2661, 4
        %v2664 = vor.u32 %v2663, %v2659
        %v2665 = vrot.slane %v2664, 4
        %v2667 = vshll.u32 %v2559, 16
        %v2669 = vrot.slane %v2667, 5
        %v2670 = vsel %vm1552, %v2665, %v2669
        %v2672 = vshrl.u32 %v2560, 16
        %v2674 = vrot.slane %v2672, 4
        %v2675 = vshll.u32 %v2560, 16
        %v2677 = vrot.slane %v2675, 5
        %v2678 = vor.u32 %v2674, %v2677
        %v2679 = vrot.slane %v2678, 4
        %v2681 = vshll.u32 %v2561, 16
        %v2683 = vrot.slane %v2681, 5
        %v2684 = vsel %vm1552, %v2679, %v2683
        %v2685 = vshrl.u32 %v2561, 16
        %v2687 = vrot.slane %v2685, 4
        %v2688 = vor.u32 %v2687, %v2683
        %v2689 = vrot.slane %v2688, 4
        %v2691 = vshll.u32 %v2562, 16
        %v2693 = vrot.slane %v2691, 5
        %v2694 = vsel %vm1552, %v2689, %v2693
        %v2696 = vshrl.u32 %v2563, 16
        %v2698 = vrot.slane %v2696, 4
        %v2699 = vshll.u32 %v2563, 16
        %v2701 = vrot.slane %v2699, 5
        %v2702 = vor.u32 %v2698, %v2701
        %v2703 = vrot.slane %v2702, 4
        %v2705 = vshll.u32 %v2564, 16
        %v2707 = vrot.slane %v2705, 5
        %v2708 = vsel %vm1552, %v2703, %v2707
        %v2709 = vshrl.u32 %v2564, 16
        %v2711 = vrot.slane %v2709, 4
        %v2712 = vor.u32 %v2711, %v2707
        %v2713 = vrot.slane %v2712, 4
        %v2715 = vshll.u32 %v2565, 16
        %v2717 = vrot.slane %v2715, 5
        %v2718 = vsel %vm1552, %v2713, %v2717
        %v2720 = vshrl.u32 %v2566, 16
        %v2722 = vrot.slane %v2720, 4
        %v2723 = vshll.u32 %v2566, 16
        %v2725 = vrot.slane %v2723, 5
        %v2726 = vor.u32 %v2722, %v2725
        %v2727 = vrot.slane %v2726, 4
        %v2729 = vshll.u32 %v2567, 16
        %v2731 = vrot.slane %v2729, 5
        %v2732 = vsel %vm1552, %v2727, %v2731
        %v2733 = vshrl.u32 %v2567, 16
        %v2735 = vrot.slane %v2733, 4
        %v2736 = vor.u32 %v2735, %v2731
        %v2737 = vrot.slane %v2736, 4
        %v2739 = vshll.u32 %v2568, 16
        %v2741 = vrot.slane %v2739, 5
        %v2742 = vsel %vm1552, %v2737, %v2741
        %v2744 = vshrl.u32 %v2569, 16
        %v2746 = vrot.slane %v2744, 4
        %v2747 = vshll.u32 %v2569, 16
        %v2749 = vrot.slane %v2747, 5
        %v2750 = vor.u32 %v2746, %v2749
        %v2751 = vrot.slane %v2750, 4
        %v2753 = vshll.u32 %v2570, 16
        %v2755 = vrot.slane %v2753, 5
        %v2756 = vsel %vm1552, %v2751, %v2755
        %v2757 = vshrl.u32 %v2570, 16
        %v2759 = vrot.slane %v2757, 4
        %v2760 = vor.u32 %v2759, %v2755
        %v2761 = vrot.slane %v2760, 4
        %v2763 = vshll.u32 %v2571, 16
        %v2765 = vrot.slane %v2763, 5
        %v2766 = vsel %vm1552, %v2761, %v2765
        %v2768 = vshrl.u32 %v2572, 16
        %v2770 = vrot.slane %v2768, 4
        %v2771 = vshll.u32 %v2572, 16
        %v2773 = vrot.slane %v2771, 5
        %v2774 = vor.u32 %v2770, %v2773
        %v2775 = vrot.slane %v2774, 4
        %v2777 = vshll.u32 %v2573, 16
        %v2779 = vrot.slane %v2777, 5
        %v2780 = vsel %vm1552, %v2775, %v2779
        %v2781 = vshrl.u32 %v2573, 16
        %v2783 = vrot.slane %v2781, 4
        %v2784 = vor.u32 %v2783, %v2779
        %v2785 = vrot.slane %v2784, 4
        %v2787 = vshll.u32 %v2574, 16
        %v2789 = vrot.slane %v2787, 5
        %v2790 = vsel %vm1552, %v2785, %v2789
        %v2792 = vshrl.u32 %v2575, 16
        %v2794 = vrot.slane %v2792, 4
        %v2795 = vshll.u32 %v2575, 16
        %v2797 = vrot.slane %v2795, 5
        %v2798 = vor.u32 %v2794, %v2797
        %v2799 = vrot.slane %v2798, 4
        %v2801 = vshll.u32 %v2576, 16
        %v2803 = vrot.slane %v2801, 5
        %v2804 = vsel %vm1552, %v2799, %v2803
        %v2805 = vshrl.u32 %v2576, 16
        %v2807 = vrot.slane %v2805, 4
        %v2808 = vor.u32 %v2807, %v2803
        %v2809 = vrot.slane %v2808, 4
        %v2811 = vshll.u32 %v2577, 16
        %v2813 = vrot.slane %v2811, 5
        %v2814 = vsel %vm1552, %v2809, %v2813
        %v2816 = vshrl.u32 %v2578, 16
        %v2818 = vrot.slane %v2816, 4
        %v2819 = vshll.u32 %v2578, 16
        %v2821 = vrot.slane %v2819, 5
        %v2822 = vor.u32 %v2818, %v2821
        %v2823 = vrot.slane %v2822, 4
        %v2825 = vshll.u32 %v2579, 16
        %v2827 = vrot.slane %v2825, 5
        %v2828 = vsel %vm1552, %v2823, %v2827
        %v2829 = vshrl.u32 %v2579, 16
        %v2831 = vrot.slane %v2829, 4
        %v2832 = vor.u32 %v2831, %v2827
        %v2833 = vrot.slane %v2832, 4
        %v2835 = vshll.u32 %v2580, 16
        %v2837 = vrot.slane %v2835, 5
        %v2838 = vsel %vm1552, %v2833, %v2837
        %v2840 = vshrl.u32 %v2581, 16
        %v2842 = vrot.slane %v2840, 4
        %v2843 = vshll.u32 %v2581, 16
        %v2845 = vrot.slane %v2843, 5
        %v2846 = vor.u32 %v2842, %v2845
        %v2847 = vrot.slane %v2846, 4
        %v2849 = vshll.u32 %v2582, 16
        %v2851 = vrot.slane %v2849, 5
        %v2852 = vsel %vm1552, %v2847, %v2851
        %v2853 = vshrl.u32 %v2582, 16
        %v2855 = vrot.slane %v2853, 4
        %v2856 = vor.u32 %v2855, %v2851
        %v2857 = vrot.slane %v2856, 4
        %v2859 = vshll.u32 %v2583, 16
        %v2861 = vrot.slane %v2859, 5
        %v2862 = vsel %vm1552, %v2857, %v2861
        %v2864 = vshrl.u32 %v2584, 16
        %v2866 = vrot.slane %v2864, 4
        %v2867 = vshll.u32 %v2584, 16
        %v2869 = vrot.slane %v2867, 5
        %v2870 = vor.u32 %v2866, %v2869
        %v2871 = vrot.slane %v2870, 4
        %v2873 = vshll.u32 %v2585, 16
        %v2875 = vrot.slane %v2873, 5
        %v2876 = vsel %vm1552, %v2871, %v2875
        %v2877 = vshrl.u32 %v2585, 16
        %v2879 = vrot.slane %v2877, 4
        %v2880 = vor.u32 %v2879, %v2875
        %v2881 = vrot.slane %v2880, 4
        %v2883 = vshll.u32 %v2586, 16
        %v2885 = vrot.slane %v2883, 5
        %v2886 = vsel %vm1552, %v2881, %v2885
        %v2888 = vshrl.u32 %v2587, 16
        %v2890 = vrot.slane %v2888, 4
        %v2891 = vshll.u32 %v2587, 16
        %v2893 = vrot.slane %v2891, 5
        %v2894 = vor.u32 %v2890, %v2893
        %v2895 = vrot.slane %v2894, 4
        %v2897 = vshll.u32 %v2588, 16
        %v2899 = vrot.slane %v2897, 5
        %v2900 = vsel %vm1552, %v2895, %v2899
        %v2901 = vshrl.u32 %v2588, 16
        %v2903 = vrot.slane %v2901, 4
        %v2904 = vor.u32 %v2903, %v2899
        %v2905 = vrot.slane %v2904, 4
        %v2907 = vshll.u32 %v2589, 16
        %v2909 = vrot.slane %v2907, 5
        %v2910 = vsel %vm1552, %v2905, %v2909
        %v2912 = vshrl.u32 %v2590, 16
        %v2914 = vrot.slane %v2912, 4
        %v2915 = vshll.u32 %v2590, 16
        %v2917 = vrot.slane %v2915, 5
        %v2918 = vor.u32 %v2914, %v2917
        %v2919 = vrot.slane %v2918, 4
        %v2921 = vshll.u32 %v2591, 16
        %v2923 = vrot.slane %v2921, 5
        %v2924 = vsel %vm1552, %v2919, %v2923
        %v2925 = vshrl.u32 %v2591, 16
        %v2927 = vrot.slane %v2925, 4
        %v2928 = vor.u32 %v2927, %v2923
        %v2929 = vrot.slane %v2928, 4
        %v2931 = vshll.u32 %v2592, 16
        %v2933 = vrot.slane %v2931, 5
        %v2934 = vsel %vm1552, %v2929, %v2933
        %v2936 = vshrl.u32 %v2593, 16
        %v2938 = vrot.slane %v2936, 4
        %v2939 = vshll.u32 %v2593, 16
        %v2941 = vrot.slane %v2939, 5
        %v2942 = vor.u32 %v2938, %v2941
        %v2943 = vrot.slane %v2942, 4
        %v2945 = vshll.u32 %v2594, 16
        %v2947 = vrot.slane %v2945, 5
        %v2948 = vsel %vm1552, %v2943, %v2947
        %v2949 = vshrl.u32 %v2594, 16
        %v2951 = vrot.slane %v2949, 4
        %v2952 = vor.u32 %v2951, %v2947
        %v2953 = vrot.slane %v2952, 4
        %v2955 = vshll.u32 %v2595, 16
        %v2957 = vrot.slane %v2955, 5
        %v2958 = vsel %vm1552, %v2953, %v2957
        %v2960 = vshrl.u32 %v2596, 16
        %v2962 = vrot.slane %v2960, 4
        %v2963 = vshll.u32 %v2596, 16
        %v2965 = vrot.slane %v2963, 5
        %v2966 = vor.u32 %v2962, %v2965
        %v2967 = vrot.slane %v2966, 4
        %v2969 = vshll.u32 %v2597, 16
        %v2971 = vrot.slane %v2969, 5
        %v2972 = vsel %vm1552, %v2967, %v2971
        %v2973 = vshrl.u32 %v2597, 16
        %v2975 = vrot.slane %v2973, 4
        %v2976 = vor.u32 %v2975, %v2971
        %v2977 = vrot.slane %v2976, 4
        %v2979 = vshll.u32 %v2598, 16
        %v2981 = vrot.slane %v2979, 5
        %v2982 = vsel %vm1552, %v2977, %v2981
        %v2983 = vunpack.c.l.b16 %v2612
        %v2984 = vunpack.c.l.b16 %v2622
        %v2985 = vunpack.c.l.b16 %v2636
        %v2986 = vunpack.c.l.b16 %v2646
        %v2987 = vunpack.c.l.b16 %v2660
        %v2988 = vunpack.c.l.b16 %v2670
        %v2989 = vunpack.c.l.b16 %v2684
        %v2990 = vunpack.c.l.b16 %v2694
        %v2991 = vunpack.c.l.b16 %v2708
        %v2992 = vunpack.c.l.b16 %v2718
        %v2993 = vunpack.c.l.b16 %v2732
        %v2994 = vunpack.c.l.b16 %v2742
        %v2995 = vunpack.c.l.b16 %v2756
        %v2996 = vunpack.c.l.b16 %v2766
        %v2997 = vunpack.c.l.b16 %v2780
        %v2998 = vunpack.c.l.b16 %v2790
        %v2999 = vunpack.c.l.b16 %v2804
        %v3000 = vunpack.c.l.b16 %v2814
        %v3001 = vunpack.c.l.b16 %v2828
        %v3002 = vunpack.c.l.b16 %v2838
        %v3003 = vunpack.c.l.b16 %v2852
        %v3004 = vunpack.c.l.b16 %v2862
        %v3005 = vunpack.c.l.b16 %v2876
        %v3006 = vunpack.c.l.b16 %v2886
        %v3007 = vunpack.c.l.b16 %v2900
        %v3008 = vunpack.c.l.b16 %v2910
        %v3009 = vunpack.c.l.b16 %v2924
        %v3010 = vunpack.c.l.b16 %v2934
        %v3011 = vunpack.c.l.b16 %v2948
        %v3012 = vunpack.c.l.b16 %v2958
        %v3013 = vunpack.c.l.b16 %v2972
        %v3014 = vunpack.c.l.b16 %v2982
        %v3015 = vpack.c.b16 %v2984, %v2983
        %v3016 = vpack.c.b16 %v2986, %v2985
        %v3017 = vpack.c.b16 %v2988, %v2987
        %v3018 = vpack.c.b16 %v2990, %v2989
        %v3019 = vpack.c.b16 %v2992, %v2991
        %v3020 = vpack.c.b16 %v2994, %v2993
        %v3021 = vpack.c.b16 %v2996, %v2995
        %v3022 = vpack.c.b16 %v2998, %v2997
        %v3023 = vpack.c.b16 %v3000, %v2999
        %v3024 = vpack.c.b16 %v3002, %v3001
        %v3025 = vpack.c.b16 %v3004, %v3003
        %v3026 = vpack.c.b16 %v3006, %v3005
        %v3027 = vpack.c.b16 %v3008, %v3007
        %v3028 = vpack.c.b16 %v3010, %v3009
        %v3029 = vpack.c.b16 %v3012, %v3011
        %v3030 = vpack.c.b16 %v3014, %v3013
        %3047 = vst.msk [vmem:[#allocation3 + $0x8] sm:$0xff] %vm1485, %v3015
        %3048 = vst.msk [vmem:[#allocation3 + $0x20] sm:$0xff] %vm1485, %v3016
        %3049 = vst.msk [vmem:[#allocation3 + $0x38] sm:$0xff] %vm1485, %v3017
        %3050 = vst.msk [vmem:[#allocation3 + $0x50] sm:$0xff] %vm1485, %v3018
        %3051 = vst.msk [vmem:[#allocation3 + $0x68] sm:$0xff] %vm1485, %v3019
        %3052 = vst.msk [vmem:[#allocation3 + $0x80] sm:$0xff] %vm1485, %v3020
        %3053 = vst.msk [vmem:[#allocation3 + $0x98] sm:$0xff] %vm1485, %v3021
        %3054 = vst.msk [vmem:[#allocation3 + $0xb0] sm:$0xff] %vm1485, %v3022
        %3055 = vst.msk [vmem:[#allocation3 + $0xc8] sm:$0xff] %vm1485, %v3023
        %3056 = vst.msk [vmem:[#allocation3 + $0xe0] sm:$0xff] %vm1485, %v3024
        %3057 = vst.msk [vmem:[#allocation3 + $0xf8] sm:$0xff] %vm1485, %v3025
        %3058 = vst.msk [vmem:[#allocation3 + $0x110] sm:$0xff] %vm1485, %v3026
        %3059 = vst.msk [vmem:[#allocation3 + $0x128] sm:$0xff] %vm1485, %v3027
        %3060 = vst.msk [vmem:[#allocation3 + $0x140] sm:$0xff] %vm1485, %v3028
        %3061 = vst.msk [vmem:[#allocation3 + $0x158] sm:$0xff] %vm1485, %v3029
        %3062 = vst.msk [vmem:[#allocation3 + $0x170] sm:$0xff] %vm1485, %v3030
        %v3063 = vld [vmem:[%s1242] sm:$0xe]
        %v3064 = vld [vmem:[%s1242 + $0x4] sm:$0xf]
        %v3065 = vld [vmem:[%s1242 + $0x8] sm:$0x1]
        %v3066 = vld [vmem:[%s1242 + $0xc] sm:$0xe]
        %v3067 = vld [vmem:[%s1242 + $0x10] sm:$0xf]
        %v3068 = vld [vmem:[%s1242 + $0x14] sm:$0x1]
        %v3069 = vld [vmem:[%s1242 + $0x18] sm:$0xe]
        %v3070 = vld [vmem:[%s1242 + $0x1c] sm:$0xf]
        %v3071 = vld [vmem:[%s1242 + $0x20] sm:$0x1]
        %v3072 = vld [vmem:[%s1242 + $0x24] sm:$0xe]
        %v3073 = vld [vmem:[%s1242 + $0x28] sm:$0xf]
        %v3074 = vld [vmem:[%s1242 + $0x2c] sm:$0x1]
        %v3075 = vld [vmem:[%s1242 + $0x30] sm:$0xe]
        %v3076 = vld [vmem:[%s1242 + $0x34] sm:$0xf]
        %v3077 = vld [vmem:[%s1242 + $0x38] sm:$0x1]
        %v3078 = vld [vmem:[%s1242 + $0x3c] sm:$0xe]
        %v3079 = vld [vmem:[%s1242 + $0x40] sm:$0xf]
        %v3080 = vld [vmem:[%s1242 + $0x44] sm:$0x1]
        %v3081 = vld [vmem:[%s1242 + $0x48] sm:$0xe]
        %v3082 = vld [vmem:[%s1242 + $0x4c] sm:$0xf]
        %v3083 = vld [vmem:[%s1242 + $0x50] sm:$0x1]
        %v3084 = vld [vmem:[%s1242 + $0x54] sm:$0xe]
        %v3085 = vld [vmem:[%s1242 + $0x58] sm:$0xf]
        %v3086 = vld [vmem:[%s1242 + $0x5c] sm:$0x1]
        %v3087 = vld [vmem:[%s1242 + $0x60] sm:$0xe]
        %v3088 = vld [vmem:[%s1242 + $0x64] sm:$0xf]
        %v3089 = vld [vmem:[%s1242 + $0x68] sm:$0x1]
        %v3090 = vld [vmem:[%s1242 + $0x6c] sm:$0xe]
        %v3091 = vld [vmem:[%s1242 + $0x70] sm:$0xf]
        %v3092 = vld [vmem:[%s1242 + $0x74] sm:$0x1]
        %v3093 = vld [vmem:[%s1242 + $0x78] sm:$0xe]
        %v3094 = vld [vmem:[%s1242 + $0x7c] sm:$0xf]
        %v3095 = vld [vmem:[%s1242 + $0x80] sm:$0x1]
        %v3096 = vld [vmem:[%s1242 + $0x84] sm:$0xe]
        %v3097 = vld [vmem:[%s1242 + $0x88] sm:$0xf]
        %v3098 = vld [vmem:[%s1242 + $0x8c] sm:$0x1]
        %v3099 = vld [vmem:[%s1242 + $0x90] sm:$0xe]
        %v3100 = vld [vmem:[%s1242 + $0x94] sm:$0xf]
        %v3101 = vld [vmem:[%s1242 + $0x98] sm:$0x1]
        %v3102 = vld [vmem:[%s1242 + $0x9c] sm:$0xe]
        %v3103 = vld [vmem:[%s1242 + $0xa0] sm:$0xf]
        %v3104 = vld [vmem:[%s1242 + $0xa4] sm:$0x1]
        %v3105 = vld [vmem:[%s1242 + $0xa8] sm:$0xe]
        %v3106 = vld [vmem:[%s1242 + $0xac] sm:$0xf]
        %v3107 = vld [vmem:[%s1242 + $0xb0] sm:$0x1]
        %v3108 = vld [vmem:[%s1242 + $0xb4] sm:$0xe]
        %v3109 = vld [vmem:[%s1242 + $0xb8] sm:$0xf]
        %v3110 = vld [vmem:[%s1242 + $0xbc] sm:$0x1]
        %v3159 = vrot.slane %v3063, 5
        %v3160 = vrot.slane %v3159, 4
        %v3161 = vrot.slane %v3064, 5
        %v3162 = vsel %vm2148, %v3160, %v3161
        %v3163 = vrot.slane %v3161, 4
        %v3164 = vrot.slane %v3065, 5
        %v3165 = vsel %vm2148, %v3163, %v3164
        %v3166 = vrot.slane %v3066, 5
        %v3167 = vrot.slane %v3166, 4
        %v3168 = vrot.slane %v3067, 5
        %v3169 = vsel %vm2148, %v3167, %v3168
        %v3170 = vrot.slane %v3168, 4
        %v3171 = vrot.slane %v3068, 5
        %v3172 = vsel %vm2148, %v3170, %v3171
        %v3173 = vrot.slane %v3069, 5
        %v3174 = vrot.slane %v3173, 4
        %v3175 = vrot.slane %v3070, 5
        %v3176 = vsel %vm2148, %v3174, %v3175
        %v3177 = vrot.slane %v3175, 4
        %v3178 = vrot.slane %v3071, 5
        %v3179 = vsel %vm2148, %v3177, %v3178
        %v3180 = vrot.slane %v3072, 5
        %v3181 = vrot.slane %v3180, 4
        %v3182 = vrot.slane %v3073, 5
        %v3183 = vsel %vm2148, %v3181, %v3182
        %v3184 = vrot.slane %v3182, 4
        %v3185 = vrot.slane %v3074, 5
        %v3186 = vsel %vm2148, %v3184, %v3185
        %v3187 = vrot.slane %v3075, 5
        %v3188 = vrot.slane %v3187, 4
        %v3189 = vrot.slane %v3076, 5
        %v3190 = vsel %vm2148, %v3188, %v3189
        %v3191 = vrot.slane %v3189, 4
        %v3192 = vrot.slane %v3077, 5
        %v3193 = vsel %vm2148, %v3191, %v3192
        %v3194 = vrot.slane %v3078, 5
        %v3195 = vrot.slane %v3194, 4
        %v3196 = vrot.slane %v3079, 5
        %v3197 = vsel %vm2148, %v3195, %v3196
        %v3198 = vrot.slane %v3196, 4
        %v3199 = vrot.slane %v3080, 5
        %v3200 = vsel %vm2148, %v3198, %v3199
        %v3201 = vrot.slane %v3081, 5
        %v3202 = vrot.slane %v3201, 4
        %v3203 = vrot.slane %v3082, 5
        %v3204 = vsel %vm2148, %v3202, %v3203
        %v3205 = vrot.slane %v3203, 4
        %v3206 = vrot.slane %v3083, 5
        %v3207 = vsel %vm2148, %v3205, %v3206
        %v3208 = vrot.slane %v3084, 5
        %v3209 = vrot.slane %v3208, 4
        %v3210 = vrot.slane %v3085, 5
        %v3211 = vsel %vm2148, %v3209, %v3210
        %v3212 = vrot.slane %v3210, 4
        %v3213 = vrot.slane %v3086, 5
        %v3214 = vsel %vm2148, %v3212, %v3213
        %v3215 = vrot.slane %v3087, 5
        %v3216 = vrot.slane %v3215, 4
        %v3217 = vrot.slane %v3088, 5
        %v3218 = vsel %vm2148, %v3216, %v3217
        %v3219 = vrot.slane %v3217, 4
        %v3220 = vrot.slane %v3089, 5
        %v3221 = vsel %vm2148, %v3219, %v3220
        %v3222 = vrot.slane %v3090, 5
        %v3223 = vrot.slane %v3222, 4
        %v3224 = vrot.slane %v3091, 5
        %v3225 = vsel %vm2148, %v3223, %v3224
        %v3226 = vrot.slane %v3224, 4
        %v3227 = vrot.slane %v3092, 5
        %v3228 = vsel %vm2148, %v3226, %v3227
        %v3229 = vrot.slane %v3093, 5
        %v3230 = vrot.slane %v3229, 4
        %v3231 = vrot.slane %v3094, 5
        %v3232 = vsel %vm2148, %v3230, %v3231
        %v3233 = vrot.slane %v3231, 4
        %v3234 = vrot.slane %v3095, 5
        %v3235 = vsel %vm2148, %v3233, %v3234
        %v3236 = vrot.slane %v3096, 5
        %v3237 = vrot.slane %v3236, 4
        %v3238 = vrot.slane %v3097, 5
        %v3239 = vsel %vm2148, %v3237, %v3238
        %v3240 = vrot.slane %v3238, 4
        %v3241 = vrot.slane %v3098, 5
        %v3242 = vsel %vm2148, %v3240, %v3241
        %v3243 = vrot.slane %v3099, 5
        %v3244 = vrot.slane %v3243, 4
        %v3245 = vrot.slane %v3100, 5
        %v3246 = vsel %vm2148, %v3244, %v3245
        %v3247 = vrot.slane %v3245, 4
        %v3248 = vrot.slane %v3101, 5
        %v3249 = vsel %vm2148, %v3247, %v3248
        %v3250 = vrot.slane %v3102, 5
        %v3251 = vrot.slane %v3250, 4
        %v3252 = vrot.slane %v3103, 5
        %v3253 = vsel %vm2148, %v3251, %v3252
        %v3254 = vrot.slane %v3252, 4
        %v3255 = vrot.slane %v3104, 5
        %v3256 = vsel %vm2148, %v3254, %v3255
        %v3257 = vrot.slane %v3105, 5
        %v3258 = vrot.slane %v3257, 4
        %v3259 = vrot.slane %v3106, 5
        %v3260 = vsel %vm2148, %v3258, %v3259
        %v3261 = vrot.slane %v3259, 4
        %v3262 = vrot.slane %v3107, 5
        %v3263 = vsel %vm2148, %v3261, %v3262
        %v3264 = vrot.slane %v3108, 5
        %v3265 = vrot.slane %v3264, 4
        %v3266 = vrot.slane %v3109, 5
        %v3267 = vsel %vm2148, %v3265, %v3266
        %v3268 = vrot.slane %v3266, 4
        %v3269 = vrot.slane %v3110, 5
        %v3270 = vsel %vm2148, %v3268, %v3269
        %v3271 = vunpack.c.l.b16 %v3162
        %v3272 = vunpack.c.l.b16 %v3165
        %v3273 = vunpack.c.l.b16 %v3169
        %v3274 = vunpack.c.l.b16 %v3172
        %v3275 = vunpack.c.l.b16 %v3176
        %v3276 = vunpack.c.l.b16 %v3179
        %v3277 = vunpack.c.l.b16 %v3183
        %v3278 = vunpack.c.l.b16 %v3186
        %v3279 = vunpack.c.l.b16 %v3190
        %v3280 = vunpack.c.l.b16 %v3193
        %v3281 = vunpack.c.l.b16 %v3197
        %v3282 = vunpack.c.l.b16 %v3200
        %v3283 = vunpack.c.l.b16 %v3204
        %v3284 = vunpack.c.l.b16 %v3207
        %v3285 = vunpack.c.l.b16 %v3211
        %v3286 = vunpack.c.l.b16 %v3214
        %v3287 = vunpack.c.l.b16 %v3218
        %v3288 = vunpack.c.l.b16 %v3221
        %v3289 = vunpack.c.l.b16 %v3225
        %v3290 = vunpack.c.l.b16 %v3228
        %v3291 = vunpack.c.l.b16 %v3232
        %v3292 = vunpack.c.l.b16 %v3235
        %v3293 = vunpack.c.l.b16 %v3239
        %v3294 = vunpack.c.l.b16 %v3242
        %v3295 = vunpack.c.l.b16 %v3246
        %v3296 = vunpack.c.l.b16 %v3249
        %v3297 = vunpack.c.l.b16 %v3253
        %v3298 = vunpack.c.l.b16 %v3256
        %v3299 = vunpack.c.l.b16 %v3260
        %v3300 = vunpack.c.l.b16 %v3263
        %v3301 = vunpack.c.l.b16 %v3267
        %v3302 = vunpack.c.l.b16 %v3270
        %v3303 = vpack.c.b16 %v3272, %v3271
        %v3304 = vpack.c.b16 %v3274, %v3273
        %v3305 = vpack.c.b16 %v3276, %v3275
        %v3306 = vpack.c.b16 %v3278, %v3277
        %v3307 = vpack.c.b16 %v3280, %v3279
        %v3308 = vpack.c.b16 %v3282, %v3281
        %v3309 = vpack.c.b16 %v3284, %v3283
        %v3310 = vpack.c.b16 %v3286, %v3285
        %v3311 = vpack.c.b16 %v3288, %v3287
        %v3312 = vpack.c.b16 %v3290, %v3289
        %v3313 = vpack.c.b16 %v3292, %v3291
        %v3314 = vpack.c.b16 %v3294, %v3293
        %v3315 = vpack.c.b16 %v3296, %v3295
        %v3316 = vpack.c.b16 %v3298, %v3297
        %v3317 = vpack.c.b16 %v3300, %v3299
        %v3318 = vpack.c.b16 %v3302, %v3301
        %3319 = vrot.lane.b32.xlu0 %v3303, 32
        %v3320 = vpop.permute.xlu0 %3319
        %3321 = vrot.lane.b32.xlu0 %v3304, 32
        %v3322 = vpop.permute.xlu0 %3321
        %3323 = vrot.lane.b32.xlu0 %v3305, 32
        %v3324 = vpop.permute.xlu0 %3323
        %3325 = vrot.lane.b32.xlu0 %v3306, 32
        %v3326 = vpop.permute.xlu0 %3325
        %3327 = vrot.lane.b32.xlu0 %v3307, 32
        %v3328 = vpop.permute.xlu0 %3327
        %3329 = vrot.lane.b32.xlu0 %v3308, 32
        %v3330 = vpop.permute.xlu0 %3329
        %3331 = vrot.lane.b32.xlu0 %v3309, 32
        %v3332 = vpop.permute.xlu0 %3331
        %3333 = vrot.lane.b32.xlu0 %v3310, 32
        %v3334 = vpop.permute.xlu0 %3333
        %3335 = vrot.lane.b32.xlu0 %v3311, 32
        %v3336 = vpop.permute.xlu0 %3335
        %3337 = vrot.lane.b32.xlu0 %v3312, 32
        %v3338 = vpop.permute.xlu0 %3337
        %3339 = vrot.lane.b32.xlu0 %v3313, 32
        %v3340 = vpop.permute.xlu0 %3339
        %3341 = vrot.lane.b32.xlu0 %v3314, 32
        %v3342 = vpop.permute.xlu0 %3341
        %3343 = vrot.lane.b32.xlu0 %v3315, 32
        %v3344 = vpop.permute.xlu0 %3343
        %3345 = vrot.lane.b32.xlu0 %v3316, 32
        %v3346 = vpop.permute.xlu0 %3345
        %3347 = vrot.lane.b32.xlu0 %v3317, 32
        %v3348 = vpop.permute.xlu0 %3347
        %3349 = vrot.lane.b32.xlu0 %v3318, 32
        %v3350 = vpop.permute.xlu0 %3349
        %3367 = vst.msk [vmem:[#allocation3 + $0x8] sm:$0xff] %vm2033, %v3320
        %3368 = vst.msk [vmem:[#allocation3 + $0x20] sm:$0xff] %vm2033, %v3322
        %3369 = vst.msk [vmem:[#allocation3 + $0x38] sm:$0xff] %vm2033, %v3324
        %3370 = vst.msk [vmem:[#allocation3 + $0x50] sm:$0xff] %vm2033, %v3326
        %3371 = vst.msk [vmem:[#allocation3 + $0x68] sm:$0xff] %vm2033, %v3328
        %3372 = vst.msk [vmem:[#allocation3 + $0x80] sm:$0xff] %vm2033, %v3330
        %3373 = vst.msk [vmem:[#allocation3 + $0x98] sm:$0xff] %vm2033, %v3332
        %3374 = vst.msk [vmem:[#allocation3 + $0xb0] sm:$0xff] %vm2033, %v3334
        %3375 = vst.msk [vmem:[#allocation3 + $0xc8] sm:$0xff] %vm2033, %v3336
        %3376 = vst.msk [vmem:[#allocation3 + $0xe0] sm:$0xff] %vm2033, %v3338
        %3377 = vst.msk [vmem:[#allocation3 + $0xf8] sm:$0xff] %vm2033, %v3340
        %3378 = vst.msk [vmem:[#allocation3 + $0x110] sm:$0xff] %vm2033, %v3342
        %3379 = vst.msk [vmem:[#allocation3 + $0x128] sm:$0xff] %vm2033, %v3344
        %3380 = vst.msk [vmem:[#allocation3 + $0x140] sm:$0xff] %vm2033, %v3346
        %3381 = vst.msk [vmem:[#allocation3 + $0x158] sm:$0xff] %vm2033, %v3348
        %3382 = vst.msk [vmem:[#allocation3 + $0x170] sm:$0xff] %vm2033, %v3350
        %s3383 = scalar_lea.vmem [#allocation2], 24
        %v3384 = vld [vmem:[%s3383] sm:$0xf]
        %v3385 = vld [vmem:[%s3383 + $0x4] sm:$0xf]
        %v3386 = vld [vmem:[%s3383 + $0xc] sm:$0xf]
        %v3387 = vld [vmem:[%s3383 + $0x10] sm:$0xf]
        %v3388 = vld [vmem:[%s3383 + $0x18] sm:$0xf]
        %v3389 = vld [vmem:[%s3383 + $0x1c] sm:$0xf]
        %v3390 = vld [vmem:[%s3383 + $0x24] sm:$0xf]
        %v3391 = vld [vmem:[%s3383 + $0x28] sm:$0xf]
        %v3392 = vld [vmem:[%s3383 + $0x30] sm:$0xf]
        %v3393 = vld [vmem:[%s3383 + $0x34] sm:$0xf]
        %v3394 = vld [vmem:[%s3383 + $0x3c] sm:$0xf]
        %v3395 = vld [vmem:[%s3383 + $0x40] sm:$0xf]
        %v3396 = vld [vmem:[%s3383 + $0x48] sm:$0xf]
        %v3397 = vld [vmem:[%s3383 + $0x4c] sm:$0xf]
        %v3398 = vld [vmem:[%s3383 + $0x54] sm:$0xf]
        %v3399 = vld [vmem:[%s3383 + $0x58] sm:$0xf]
        %v3400 = vld [vmem:[%s3383 + $0x60] sm:$0xf]
        %v3401 = vld [vmem:[%s3383 + $0x64] sm:$0xf]
        %v3402 = vld [vmem:[%s3383 + $0x6c] sm:$0xf]
        %v3403 = vld [vmem:[%s3383 + $0x70] sm:$0xf]
        %v3404 = vld [vmem:[%s3383 + $0x78] sm:$0xf]
        %v3405 = vld [vmem:[%s3383 + $0x7c] sm:$0xf]
        %v3406 = vld [vmem:[%s3383 + $0x84] sm:$0xf]
        %v3407 = vld [vmem:[%s3383 + $0x88] sm:$0xf]
        %v3408 = vld [vmem:[%s3383 + $0x90] sm:$0xf]
        %v3409 = vld [vmem:[%s3383 + $0x94] sm:$0xf]
        %v3410 = vld [vmem:[%s3383 + $0x9c] sm:$0xf]
        %v3411 = vld [vmem:[%s3383 + $0xa0] sm:$0xf]
        %v3412 = vld [vmem:[%s3383 + $0xa8] sm:$0xf]
        %v3413 = vld [vmem:[%s3383 + $0xac] sm:$0xf]
        %v3414 = vld [vmem:[%s3383 + $0xb4] sm:$0xf]
        %v3415 = vld [vmem:[%s3383 + $0xb8] sm:$0xf]
        %v3448 = vunpack.c.l.b16 %v3384
        %v3449 = vunpack.c.l.b16 %v3385
        %v3450 = vunpack.c.l.b16 %v3386
        %v3451 = vunpack.c.l.b16 %v3387
        %v3452 = vunpack.c.l.b16 %v3388
        %v3453 = vunpack.c.l.b16 %v3389
        %v3454 = vunpack.c.l.b16 %v3390
        %v3455 = vunpack.c.l.b16 %v3391
        %v3456 = vunpack.c.l.b16 %v3392
        %v3457 = vunpack.c.l.b16 %v3393
        %v3458 = vunpack.c.l.b16 %v3394
        %v3459 = vunpack.c.l.b16 %v3395
        %v3460 = vunpack.c.l.b16 %v3396
        %v3461 = vunpack.c.l.b16 %v3397
        %v3462 = vunpack.c.l.b16 %v3398
        %v3463 = vunpack.c.l.b16 %v3399
        %v3464 = vunpack.c.l.b16 %v3400
        %v3465 = vunpack.c.l.b16 %v3401
        %v3466 = vunpack.c.l.b16 %v3402
        %v3467 = vunpack.c.l.b16 %v3403
        %v3468 = vunpack.c.l.b16 %v3404
        %v3469 = vunpack.c.l.b16 %v3405
        %v3470 = vunpack.c.l.b16 %v3406
        %v3471 = vunpack.c.l.b16 %v3407
        %v3472 = vunpack.c.l.b16 %v3408
        %v3473 = vunpack.c.l.b16 %v3409
        %v3474 = vunpack.c.l.b16 %v3410
        %v3475 = vunpack.c.l.b16 %v3411
        %v3476 = vunpack.c.l.b16 %v3412
        %v3477 = vunpack.c.l.b16 %v3413
        %v3478 = vunpack.c.l.b16 %v3414
        %v3479 = vunpack.c.l.b16 %v3415
        %v3480 = vpack.c.b16 %v3449, %v3448
        %v3481 = vpack.c.b16 %v3451, %v3450
        %v3482 = vpack.c.b16 %v3453, %v3452
        %v3483 = vpack.c.b16 %v3455, %v3454
        %v3484 = vpack.c.b16 %v3457, %v3456
        %v3485 = vpack.c.b16 %v3459, %v3458
        %v3486 = vpack.c.b16 %v3461, %v3460
        %v3487 = vpack.c.b16 %v3463, %v3462
        %v3488 = vpack.c.b16 %v3465, %v3464
        %v3489 = vpack.c.b16 %v3467, %v3466
        %v3490 = vpack.c.b16 %v3469, %v3468
        %v3491 = vpack.c.b16 %v3471, %v3470
        %v3492 = vpack.c.b16 %v3473, %v3472
        %v3493 = vpack.c.b16 %v3475, %v3474
        %v3494 = vpack.c.b16 %v3477, %v3476
        %v3495 = vpack.c.b16 %v3479, %v3478
        %3496 = vrot.lane.b32.xlu0 %v3480, 64
        %v3497 = vpop.permute.xlu0 %3496
        %3498 = vrot.lane.b32.xlu0 %v3481, 64
        %v3499 = vpop.permute.xlu0 %3498
        %3500 = vrot.lane.b32.xlu0 %v3482, 64
        %v3501 = vpop.permute.xlu0 %3500
        %3502 = vrot.lane.b32.xlu0 %v3483, 64
        %v3503 = vpop.permute.xlu0 %3502
        %3504 = vrot.lane.b32.xlu0 %v3484, 64
        %v3505 = vpop.permute.xlu0 %3504
        %3506 = vrot.lane.b32.xlu0 %v3485, 64
        %v3507 = vpop.permute.xlu0 %3506
        %3508 = vrot.lane.b32.xlu0 %v3486, 64
        %v3509 = vpop.permute.xlu0 %3508
        %3510 = vrot.lane.b32.xlu0 %v3487, 64
        %v3511 = vpop.permute.xlu0 %3510
        %3512 = vrot.lane.b32.xlu0 %v3488, 64
        %v3513 = vpop.permute.xlu0 %3512
        %3514 = vrot.lane.b32.xlu0 %v3489, 64
        %v3515 = vpop.permute.xlu0 %3514
        %3516 = vrot.lane.b32.xlu0 %v3490, 64
        %v3517 = vpop.permute.xlu0 %3516
        %3518 = vrot.lane.b32.xlu0 %v3491, 64
        %v3519 = vpop.permute.xlu0 %3518
        %3520 = vrot.lane.b32.xlu0 %v3492, 64
        %v3521 = vpop.permute.xlu0 %3520
        %3522 = vrot.lane.b32.xlu0 %v3493, 64
        %v3523 = vpop.permute.xlu0 %3522
        %3524 = vrot.lane.b32.xlu0 %v3494, 64
        %v3525 = vpop.permute.xlu0 %3524
        %3526 = vrot.lane.b32.xlu0 %v3495, 64
        %v3527 = vpop.permute.xlu0 %3526
        %3544 = vst.msk [vmem:[#allocation3 + $0x8] sm:$0xff] %vm2357, %v3497
        %3545 = vst.msk [vmem:[#allocation3 + $0x20] sm:$0xff] %vm2357, %v3499
        %3546 = vst.msk [vmem:[#allocation3 + $0x38] sm:$0xff] %vm2357, %v3501
        %3547 = vst.msk [vmem:[#allocation3 + $0x50] sm:$0xff] %vm2357, %v3503
        %3548 = vst.msk [vmem:[#allocation3 + $0x68] sm:$0xff] %vm2357, %v3505
        %3549 = vst.msk [vmem:[#allocation3 + $0x80] sm:$0xff] %vm2357, %v3507
        %3550 = vst.msk [vmem:[#allocation3 + $0x98] sm:$0xff] %vm2357, %v3509
        %3551 = vst.msk [vmem:[#allocation3 + $0xb0] sm:$0xff] %vm2357, %v3511
        %3552 = vst.msk [vmem:[#allocation3 + $0xc8] sm:$0xff] %vm2357, %v3513
        %3553 = vst.msk [vmem:[#allocation3 + $0xe0] sm:$0xff] %vm2357, %v3515
        %3554 = vst.msk [vmem:[#allocation3 + $0xf8] sm:$0xff] %vm2357, %v3517
        %3555 = vst.msk [vmem:[#allocation3 + $0x110] sm:$0xff] %vm2357, %v3519
        %3556 = vst.msk [vmem:[#allocation3 + $0x128] sm:$0xff] %vm2357, %v3521
        %3557 = vst.msk [vmem:[#allocation3 + $0x140] sm:$0xff] %vm2357, %v3523
        %3558 = vst.msk [vmem:[#allocation3 + $0x158] sm:$0xff] %vm2357, %v3525
        %3559 = vst.msk [vmem:[#allocation3 + $0x170] sm:$0xff] %vm2357, %v3527
        %v3560 = vld [vmem:[%s3383] sm:$0xf]
        %v3561 = vld [vmem:[%s3383 + $0x4] sm:$0xf]
        %v3562 = vld [vmem:[%s3383 + $0x8] sm:$0x1]
        %v3563 = vld [vmem:[%s3383 + $0xc] sm:$0xf]
        %v3564 = vld [vmem:[%s3383 + $0x10] sm:$0xf]
        %v3565 = vld [vmem:[%s3383 + $0x14] sm:$0x1]
        %v3566 = vld [vmem:[%s3383 + $0x18] sm:$0xf]
        %v3567 = vld [vmem:[%s3383 + $0x1c] sm:$0xf]
        %v3568 = vld [vmem:[%s3383 + $0x20] sm:$0x1]
        %v3569 = vld [vmem:[%s3383 + $0x24] sm:$0xf]
        %v3570 = vld [vmem:[%s3383 + $0x28] sm:$0xf]
        %v3571 = vld [vmem:[%s3383 + $0x2c] sm:$0x1]
        %v3572 = vld [vmem:[%s3383 + $0x30] sm:$0xf]
        %v3573 = vld [vmem:[%s3383 + $0x34] sm:$0xf]
        %v3574 = vld [vmem:[%s3383 + $0x38] sm:$0x1]
        %v3575 = vld [vmem:[%s3383 + $0x3c] sm:$0xf]
        %v3576 = vld [vmem:[%s3383 + $0x40] sm:$0xf]
        %v3577 = vld [vmem:[%s3383 + $0x44] sm:$0x1]
        %v3578 = vld [vmem:[%s3383 + $0x48] sm:$0xf]
        %v3579 = vld [vmem:[%s3383 + $0x4c] sm:$0xf]
        %v3580 = vld [vmem:[%s3383 + $0x50] sm:$0x1]
        %v3581 = vld [vmem:[%s3383 + $0x54] sm:$0xf]
        %v3582 = vld [vmem:[%s3383 + $0x58] sm:$0xf]
        %v3583 = vld [vmem:[%s3383 + $0x5c] sm:$0x1]
        %v3584 = vld [vmem:[%s3383 + $0x60] sm:$0xf]
        %v3585 = vld [vmem:[%s3383 + $0x64] sm:$0xf]
        %v3586 = vld [vmem:[%s3383 + $0x68] sm:$0x1]
        %v3587 = vld [vmem:[%s3383 + $0x6c] sm:$0xf]
        %v3588 = vld [vmem:[%s3383 + $0x70] sm:$0xf]
        %v3589 = vld [vmem:[%s3383 + $0x74] sm:$0x1]
        %v3590 = vld [vmem:[%s3383 + $0x78] sm:$0xf]
        %v3591 = vld [vmem:[%s3383 + $0x7c] sm:$0xf]
        %v3592 = vld [vmem:[%s3383 + $0x80] sm:$0x1]
        %v3593 = vld [vmem:[%s3383 + $0x84] sm:$0xf]
        %v3594 = vld [vmem:[%s3383 + $0x88] sm:$0xf]
        %v3595 = vld [vmem:[%s3383 + $0x8c] sm:$0x1]
        %v3596 = vld [vmem:[%s3383 + $0x90] sm:$0xf]
        %v3597 = vld [vmem:[%s3383 + $0x94] sm:$0xf]
        %v3598 = vld [vmem:[%s3383 + $0x98] sm:$0x1]
        %v3599 = vld [vmem:[%s3383 + $0x9c] sm:$0xf]
        %v3600 = vld [vmem:[%s3383 + $0xa0] sm:$0xf]
        %v3601 = vld [vmem:[%s3383 + $0xa4] sm:$0x1]
        %v3602 = vld [vmem:[%s3383 + $0xa8] sm:$0xf]
        %v3603 = vld [vmem:[%s3383 + $0xac] sm:$0xf]
        %v3604 = vld [vmem:[%s3383 + $0xb0] sm:$0x1]
        %v3605 = vld [vmem:[%s3383 + $0xb4] sm:$0xf]
        %v3606 = vld [vmem:[%s3383 + $0xb8] sm:$0xf]
        %v3607 = vld [vmem:[%s3383 + $0xbc] sm:$0x1]
        %v3609 = vshrl.u32 %v3560, 16
        %v3611 = vrot.slane %v3609, 4
        %v3612 = vshll.u32 %v3560, 16
        %v3614 = vrot.slane %v3612, 5
        %v3615 = vor.u32 %v3611, %v3614
        %v3616 = vrot.slane %v3615, 4
        %v3618 = vshll.u32 %v3561, 16
        %v3620 = vrot.slane %v3618, 5
        %v3621 = vsel %vm1552, %v3616, %v3620
        %v3622 = vshrl.u32 %v3561, 16
        %v3624 = vrot.slane %v3622, 4
        %v3625 = vor.u32 %v3624, %v3620
        %v3626 = vrot.slane %v3625, 4
        %v3628 = vshll.u32 %v3562, 16
        %v3630 = vrot.slane %v3628, 5
        %v3631 = vsel %vm1552, %v3626, %v3630
        %v3633 = vshrl.u32 %v3563, 16
        %v3635 = vrot.slane %v3633, 4
        %v3636 = vshll.u32 %v3563, 16
        %v3638 = vrot.slane %v3636, 5
        %v3639 = vor.u32 %v3635, %v3638
        %v3640 = vrot.slane %v3639, 4
        %v3642 = vshll.u32 %v3564, 16
        %v3644 = vrot.slane %v3642, 5
        %v3645 = vsel %vm1552, %v3640, %v3644
        %v3646 = vshrl.u32 %v3564, 16
        %v3648 = vrot.slane %v3646, 4
        %v3649 = vor.u32 %v3648, %v3644
        %v3650 = vrot.slane %v3649, 4
        %v3652 = vshll.u32 %v3565, 16
        %v3654 = vrot.slane %v3652, 5
        %v3655 = vsel %vm1552, %v3650, %v3654
        %v3657 = vshrl.u32 %v3566, 16
        %v3659 = vrot.slane %v3657, 4
        %v3660 = vshll.u32 %v3566, 16
        %v3662 = vrot.slane %v3660, 5
        %v3663 = vor.u32 %v3659, %v3662
        %v3664 = vrot.slane %v3663, 4
        %v3666 = vshll.u32 %v3567, 16
        %v3668 = vrot.slane %v3666, 5
        %v3669 = vsel %vm1552, %v3664, %v3668
        %v3670 = vshrl.u32 %v3567, 16
        %v3672 = vrot.slane %v3670, 4
        %v3673 = vor.u32 %v3672, %v3668
        %v3674 = vrot.slane %v3673, 4
        %v3676 = vshll.u32 %v3568, 16
        %v3678 = vrot.slane %v3676, 5
        %v3679 = vsel %vm1552, %v3674, %v3678
        %v3681 = vshrl.u32 %v3569, 16
        %v3683 = vrot.slane %v3681, 4
        %v3684 = vshll.u32 %v3569, 16
        %v3686 = vrot.slane %v3684, 5
        %v3687 = vor.u32 %v3683, %v3686
        %v3688 = vrot.slane %v3687, 4
        %v3690 = vshll.u32 %v3570, 16
        %v3692 = vrot.slane %v3690, 5
        %v3693 = vsel %vm1552, %v3688, %v3692
        %v3694 = vshrl.u32 %v3570, 16
        %v3696 = vrot.slane %v3694, 4
        %v3697 = vor.u32 %v3696, %v3692
        %v3698 = vrot.slane %v3697, 4
        %v3700 = vshll.u32 %v3571, 16
        %v3702 = vrot.slane %v3700, 5
        %v3703 = vsel %vm1552, %v3698, %v3702
        %v3705 = vshrl.u32 %v3572, 16
        %v3707 = vrot.slane %v3705, 4
        %v3708 = vshll.u32 %v3572, 16
        %v3710 = vrot.slane %v3708, 5
        %v3711 = vor.u32 %v3707, %v3710
        %v3712 = vrot.slane %v3711, 4
        %v3714 = vshll.u32 %v3573, 16
        %v3716 = vrot.slane %v3714, 5
        %v3717 = vsel %vm1552, %v3712, %v3716
        %v3718 = vshrl.u32 %v3573, 16
        %v3720 = vrot.slane %v3718, 4
        %v3721 = vor.u32 %v3720, %v3716
        %v3722 = vrot.slane %v3721, 4
        %v3724 = vshll.u32 %v3574, 16
        %v3726 = vrot.slane %v3724, 5
        %v3727 = vsel %vm1552, %v3722, %v3726
        %v3729 = vshrl.u32 %v3575, 16
        %v3731 = vrot.slane %v3729, 4
        %v3732 = vshll.u32 %v3575, 16
        %v3734 = vrot.slane %v3732, 5
        %v3735 = vor.u32 %v3731, %v3734
        %v3736 = vrot.slane %v3735, 4
        %v3738 = vshll.u32 %v3576, 16
        %v3740 = vrot.slane %v3738, 5
        %v3741 = vsel %vm1552, %v3736, %v3740
        %v3742 = vshrl.u32 %v3576, 16
        %v3744 = vrot.slane %v3742, 4
        %v3745 = vor.u32 %v3744, %v3740
        %v3746 = vrot.slane %v3745, 4
        %v3748 = vshll.u32 %v3577, 16
        %v3750 = vrot.slane %v3748, 5
        %v3751 = vsel %vm1552, %v3746, %v3750
        %v3753 = vshrl.u32 %v3578, 16
        %v3755 = vrot.slane %v3753, 4
        %v3756 = vshll.u32 %v3578, 16
        %v3758 = vrot.slane %v3756, 5
        %v3759 = vor.u32 %v3755, %v3758
        %v3760 = vrot.slane %v3759, 4
        %v3762 = vshll.u32 %v3579, 16
        %v3764 = vrot.slane %v3762, 5
        %v3765 = vsel %vm1552, %v3760, %v3764
        %v3766 = vshrl.u32 %v3579, 16
        %v3768 = vrot.slane %v3766, 4
        %v3769 = vor.u32 %v3768, %v3764
        %v3770 = vrot.slane %v3769, 4
        %v3772 = vshll.u32 %v3580, 16
        %v3774 = vrot.slane %v3772, 5
        %v3775 = vsel %vm1552, %v3770, %v3774
        %v3777 = vshrl.u32 %v3581, 16
        %v3779 = vrot.slane %v3777, 4
        %v3780 = vshll.u32 %v3581, 16
        %v3782 = vrot.slane %v3780, 5
        %v3783 = vor.u32 %v3779, %v3782
        %v3784 = vrot.slane %v3783, 4
        %v3786 = vshll.u32 %v3582, 16
        %v3788 = vrot.slane %v3786, 5
        %v3789 = vsel %vm1552, %v3784, %v3788
        %v3790 = vshrl.u32 %v3582, 16
        %v3792 = vrot.slane %v3790, 4
        %v3793 = vor.u32 %v3792, %v3788
        %v3794 = vrot.slane %v3793, 4
        %v3796 = vshll.u32 %v3583, 16
        %v3798 = vrot.slane %v3796, 5
        %v3799 = vsel %vm1552, %v3794, %v3798
        %v3801 = vshrl.u32 %v3584, 16
        %v3803 = vrot.slane %v3801, 4
        %v3804 = vshll.u32 %v3584, 16
        %v3806 = vrot.slane %v3804, 5
        %v3807 = vor.u32 %v3803, %v3806
        %v3808 = vrot.slane %v3807, 4
        %v3810 = vshll.u32 %v3585, 16
        %v3812 = vrot.slane %v3810, 5
        %v3813 = vsel %vm1552, %v3808, %v3812
        %v3814 = vshrl.u32 %v3585, 16
        %v3816 = vrot.slane %v3814, 4
        %v3817 = vor.u32 %v3816, %v3812
        %v3818 = vrot.slane %v3817, 4
        %v3820 = vshll.u32 %v3586, 16
        %v3822 = vrot.slane %v3820, 5
        %v3823 = vsel %vm1552, %v3818, %v3822
        %v3825 = vshrl.u32 %v3587, 16
        %v3827 = vrot.slane %v3825, 4
        %v3828 = vshll.u32 %v3587, 16
        %v3830 = vrot.slane %v3828, 5
        %v3831 = vor.u32 %v3827, %v3830
        %v3832 = vrot.slane %v3831, 4
        %v3834 = vshll.u32 %v3588, 16
        %v3836 = vrot.slane %v3834, 5
        %v3837 = vsel %vm1552, %v3832, %v3836
        %v3838 = vshrl.u32 %v3588, 16
        %v3840 = vrot.slane %v3838, 4
        %v3841 = vor.u32 %v3840, %v3836
        %v3842 = vrot.slane %v3841, 4
        %v3844 = vshll.u32 %v3589, 16
        %v3846 = vrot.slane %v3844, 5
        %v3847 = vsel %vm1552, %v3842, %v3846
        %v3849 = vshrl.u32 %v3590, 16
        %v3851 = vrot.slane %v3849, 4
        %v3852 = vshll.u32 %v3590, 16
        %v3854 = vrot.slane %v3852, 5
        %v3855 = vor.u32 %v3851, %v3854
        %v3856 = vrot.slane %v3855, 4
        %v3858 = vshll.u32 %v3591, 16
        %v3860 = vrot.slane %v3858, 5
        %v3861 = vsel %vm1552, %v3856, %v3860
        %v3862 = vshrl.u32 %v3591, 16
        %v3864 = vrot.slane %v3862, 4
        %v3865 = vor.u32 %v3864, %v3860
        %v3866 = vrot.slane %v3865, 4
        %v3868 = vshll.u32 %v3592, 16
        %v3870 = vrot.slane %v3868, 5
        %v3871 = vsel %vm1552, %v3866, %v3870
        %v3873 = vshrl.u32 %v3593, 16
        %v3875 = vrot.slane %v3873, 4
        %v3876 = vshll.u32 %v3593, 16
        %v3878 = vrot.slane %v3876, 5
        %v3879 = vor.u32 %v3875, %v3878
        %v3880 = vrot.slane %v3879, 4
        %v3882 = vshll.u32 %v3594, 16
        %v3884 = vrot.slane %v3882, 5
        %v3885 = vsel %vm1552, %v3880, %v3884
        %v3886 = vshrl.u32 %v3594, 16
        %v3888 = vrot.slane %v3886, 4
        %v3889 = vor.u32 %v3888, %v3884
        %v3890 = vrot.slane %v3889, 4
        %v3892 = vshll.u32 %v3595, 16
        %v3894 = vrot.slane %v3892, 5
        %v3895 = vsel %vm1552, %v3890, %v3894
        %v3897 = vshrl.u32 %v3596, 16
        %v3899 = vrot.slane %v3897, 4
        %v3900 = vshll.u32 %v3596, 16
        %v3902 = vrot.slane %v3900, 5
        %v3903 = vor.u32 %v3899, %v3902
        %v3904 = vrot.slane %v3903, 4
        %v3906 = vshll.u32 %v3597, 16
        %v3908 = vrot.slane %v3906, 5
        %v3909 = vsel %vm1552, %v3904, %v3908
        %v3910 = vshrl.u32 %v3597, 16
        %v3912 = vrot.slane %v3910, 4
        %v3913 = vor.u32 %v3912, %v3908
        %v3914 = vrot.slane %v3913, 4
        %v3916 = vshll.u32 %v3598, 16
        %v3918 = vrot.slane %v3916, 5
        %v3919 = vsel %vm1552, %v3914, %v3918
        %v3921 = vshrl.u32 %v3599, 16
        %v3923 = vrot.slane %v3921, 4
        %v3924 = vshll.u32 %v3599, 16
        %v3926 = vrot.slane %v3924, 5
        %v3927 = vor.u32 %v3923, %v3926
        %v3928 = vrot.slane %v3927, 4
        %v3930 = vshll.u32 %v3600, 16
        %v3932 = vrot.slane %v3930, 5
        %v3933 = vsel %vm1552, %v3928, %v3932
        %v3934 = vshrl.u32 %v3600, 16
        %v3936 = vrot.slane %v3934, 4
        %v3937 = vor.u32 %v3936, %v3932
        %v3938 = vrot.slane %v3937, 4
        %v3940 = vshll.u32 %v3601, 16
        %v3942 = vrot.slane %v3940, 5
        %v3943 = vsel %vm1552, %v3938, %v3942
        %v3945 = vshrl.u32 %v3602, 16
        %v3947 = vrot.slane %v3945, 4
        %v3948 = vshll.u32 %v3602, 16
        %v3950 = vrot.slane %v3948, 5
        %v3951 = vor.u32 %v3947, %v3950
        %v3952 = vrot.slane %v3951, 4
        %v3954 = vshll.u32 %v3603, 16
        %v3956 = vrot.slane %v3954, 5
        %v3957 = vsel %vm1552, %v3952, %v3956
        %v3958 = vshrl.u32 %v3603, 16
        %v3960 = vrot.slane %v3958, 4
        %v3961 = vor.u32 %v3960, %v3956
        %v3962 = vrot.slane %v3961, 4
        %v3964 = vshll.u32 %v3604, 16
        %v3966 = vrot.slane %v3964, 5
        %v3967 = vsel %vm1552, %v3962, %v3966
        %v3969 = vshrl.u32 %v3605, 16
        %v3971 = vrot.slane %v3969, 4
        %v3972 = vshll.u32 %v3605, 16
        %v3974 = vrot.slane %v3972, 5
        %v3975 = vor.u32 %v3971, %v3974
        %v3976 = vrot.slane %v3975, 4
        %v3978 = vshll.u32 %v3606, 16
        %v3980 = vrot.slane %v3978, 5
        %v3981 = vsel %vm1552, %v3976, %v3980
        %v3982 = vshrl.u32 %v3606, 16
        %v3984 = vrot.slane %v3982, 4
        %v3985 = vor.u32 %v3984, %v3980
        %v3986 = vrot.slane %v3985, 4
        %v3988 = vshll.u32 %v3607, 16
        %v3990 = vrot.slane %v3988, 5
        %v3991 = vsel %vm1552, %v3986, %v3990
        %v3992 = vunpack.c.l.b16 %v3621
        %v3993 = vunpack.c.l.b16 %v3631
        %v3994 = vunpack.c.l.b16 %v3645
        %v3995 = vunpack.c.l.b16 %v3655
        %v3996 = vunpack.c.l.b16 %v3669
        %v3997 = vunpack.c.l.b16 %v3679
        %v3998 = vunpack.c.l.b16 %v3693
        %v3999 = vunpack.c.l.b16 %v3703
        %v4000 = vunpack.c.l.b16 %v3717
        %v4001 = vunpack.c.l.b16 %v3727
        %v4002 = vunpack.c.l.b16 %v3741
        %v4003 = vunpack.c.l.b16 %v3751
        %v4004 = vunpack.c.l.b16 %v3765
        %v4005 = vunpack.c.l.b16 %v3775
        %v4006 = vunpack.c.l.b16 %v3789
        %v4007 = vunpack.c.l.b16 %v3799
        %v4008 = vunpack.c.l.b16 %v3813
        %v4009 = vunpack.c.l.b16 %v3823
        %v4010 = vunpack.c.l.b16 %v3837
        %v4011 = vunpack.c.l.b16 %v3847
        %v4012 = vunpack.c.l.b16 %v3861
        %v4013 = vunpack.c.l.b16 %v3871
        %v4014 = vunpack.c.l.b16 %v3885
        %v4015 = vunpack.c.l.b16 %v3895
        %v4016 = vunpack.c.l.b16 %v3909
        %v4017 = vunpack.c.l.b16 %v3919
        %v4018 = vunpack.c.l.b16 %v3933
        %v4019 = vunpack.c.l.b16 %v3943
        %v4020 = vunpack.c.l.b16 %v3957
        %v4021 = vunpack.c.l.b16 %v3967
        %v4022 = vunpack.c.l.b16 %v3981
        %v4023 = vunpack.c.l.b16 %v3991
        %v4024 = vpack.c.b16 %v3993, %v3992
        %v4025 = vpack.c.b16 %v3995, %v3994
        %v4026 = vpack.c.b16 %v3997, %v3996
        %v4027 = vpack.c.b16 %v3999, %v3998
        %v4028 = vpack.c.b16 %v4001, %v4000
        %v4029 = vpack.c.b16 %v4003, %v4002
        %v4030 = vpack.c.b16 %v4005, %v4004
        %v4031 = vpack.c.b16 %v4007, %v4006
        %v4032 = vpack.c.b16 %v4009, %v4008
        %v4033 = vpack.c.b16 %v4011, %v4010
        %v4034 = vpack.c.b16 %v4013, %v4012
        %v4035 = vpack.c.b16 %v4015, %v4014
        %v4036 = vpack.c.b16 %v4017, %v4016
        %v4037 = vpack.c.b16 %v4019, %v4018
        %v4038 = vpack.c.b16 %v4021, %v4020
        %v4039 = vpack.c.b16 %v4023, %v4022
        %4040 = vrot.lane.b32.xlu0 %v4024, 96
        %v4041 = vpop.permute.xlu0 %4040
        %4042 = vrot.lane.b32.xlu0 %v4025, 96
        %v4043 = vpop.permute.xlu0 %4042
        %4044 = vrot.lane.b32.xlu0 %v4026, 96
        %v4045 = vpop.permute.xlu0 %4044
        %4046 = vrot.lane.b32.xlu0 %v4027, 96
        %v4047 = vpop.permute.xlu0 %4046
        %4048 = vrot.lane.b32.xlu0 %v4028, 96
        %v4049 = vpop.permute.xlu0 %4048
        %4050 = vrot.lane.b32.xlu0 %v4029, 96
        %v4051 = vpop.permute.xlu0 %4050
        %4052 = vrot.lane.b32.xlu0 %v4030, 96
        %v4053 = vpop.permute.xlu0 %4052
        %4054 = vrot.lane.b32.xlu0 %v4031, 96
        %v4055 = vpop.permute.xlu0 %4054
        %4056 = vrot.lane.b32.xlu0 %v4032, 96
        %v4057 = vpop.permute.xlu0 %4056
        %4058 = vrot.lane.b32.xlu0 %v4033, 96
        %v4059 = vpop.permute.xlu0 %4058
        %4060 = vrot.lane.b32.xlu0 %v4034, 96
        %v4061 = vpop.permute.xlu0 %4060
        %4062 = vrot.lane.b32.xlu0 %v4035, 96
        %v4063 = vpop.permute.xlu0 %4062
        %4064 = vrot.lane.b32.xlu0 %v4036, 96
        %v4065 = vpop.permute.xlu0 %4064
        %4066 = vrot.lane.b32.xlu0 %v4037, 96
        %v4067 = vpop.permute.xlu0 %4066
        %4068 = vrot.lane.b32.xlu0 %v4038, 96
        %v4069 = vpop.permute.xlu0 %4068
        %4070 = vrot.lane.b32.xlu0 %v4039, 96
        %v4071 = vpop.permute.xlu0 %4070
        %4088 = vst.msk [vmem:[#allocation3 + $0x8] sm:$0xff] %vm2534, %v4041
        %4089 = vst.msk [vmem:[#allocation3 + $0x20] sm:$0xff] %vm2534, %v4043
        %4090 = vst.msk [vmem:[#allocation3 + $0x38] sm:$0xff] %vm2534, %v4045
        %4091 = vst.msk [vmem:[#allocation3 + $0x50] sm:$0xff] %vm2534, %v4047
        %4092 = vst.msk [vmem:[#allocation3 + $0x68] sm:$0xff] %vm2534, %v4049
        %4093 = vst.msk [vmem:[#allocation3 + $0x80] sm:$0xff] %vm2534, %v4051
        %4094 = vst.msk [vmem:[#allocation3 + $0x98] sm:$0xff] %vm2534, %v4053
        %4095 = vst.msk [vmem:[#allocation3 + $0xb0] sm:$0xff] %vm2534, %v4055
        %4096 = vst.msk [vmem:[#allocation3 + $0xc8] sm:$0xff] %vm2534, %v4057
        %4097 = vst.msk [vmem:[#allocation3 + $0xe0] sm:$0xff] %vm2534, %v4059
        %4098 = vst.msk [vmem:[#allocation3 + $0xf8] sm:$0xff] %vm2534, %v4061
        %4099 = vst.msk [vmem:[#allocation3 + $0x110] sm:$0xff] %vm2534, %v4063
        %4100 = vst.msk [vmem:[#allocation3 + $0x128] sm:$0xff] %vm2534, %v4065
        %4101 = vst.msk [vmem:[#allocation3 + $0x140] sm:$0xff] %vm2534, %v4067
        %4102 = vst.msk [vmem:[#allocation3 + $0x158] sm:$0xff] %vm2534, %v4069
        %4103 = vst.msk [vmem:[#allocation3 + $0x170] sm:$0xff] %vm2534, %v4071
        %v4104 = vld [vmem:[%s3383] sm:$0xe]
        %v4105 = vld [vmem:[%s3383 + $0x4] sm:$0xf]
        %v4106 = vld [vmem:[%s3383 + $0x8] sm:$0x1]
        %v4107 = vld [vmem:[%s3383 + $0xc] sm:$0xe]
        %v4108 = vld [vmem:[%s3383 + $0x10] sm:$0xf]
        %v4109 = vld [vmem:[%s3383 + $0x14] sm:$0x1]
        %v4110 = vld [vmem:[%s3383 + $0x18] sm:$0xe]
        %v4111 = vld [vmem:[%s3383 + $0x1c] sm:$0xf]
        %v4112 = vld [vmem:[%s3383 + $0x20] sm:$0x1]
        %v4113 = vld [vmem:[%s3383 + $0x24] sm:$0xe]
        %v4114 = vld [vmem:[%s3383 + $0x28] sm:$0xf]
        %v4115 = vld [vmem:[%s3383 + $0x2c] sm:$0x1]
        %v4116 = vld [vmem:[%s3383 + $0x30] sm:$0xe]
        %v4117 = vld [vmem:[%s3383 + $0x34] sm:$0xf]
        %v4118 = vld [vmem:[%s3383 + $0x38] sm:$0x1]
        %v4119 = vld [vmem:[%s3383 + $0x3c] sm:$0xe]
        %v4120 = vld [vmem:[%s3383 + $0x40] sm:$0xf]
        %v4121 = vld [vmem:[%s3383 + $0x44] sm:$0x1]
        %v4122 = vld [vmem:[%s3383 + $0x48] sm:$0xe]
        %v4123 = vld [vmem:[%s3383 + $0x4c] sm:$0xf]
        %v4124 = vld [vmem:[%s3383 + $0x50] sm:$0x1]
        %v4125 = vld [vmem:[%s3383 + $0x54] sm:$0xe]
        %v4126 = vld [vmem:[%s3383 + $0x58] sm:$0xf]
        %v4127 = vld [vmem:[%s3383 + $0x5c] sm:$0x1]
        %v4128 = vld [vmem:[%s3383 + $0x60] sm:$0xe]
        %v4129 = vld [vmem:[%s3383 + $0x64] sm:$0xf]
        %v4130 = vld [vmem:[%s3383 + $0x68] sm:$0x1]
        %v4131 = vld [vmem:[%s3383 + $0x6c] sm:$0xe]
        %v4132 = vld [vmem:[%s3383 + $0x70] sm:$0xf]
        %v4133 = vld [vmem:[%s3383 + $0x74] sm:$0x1]
        %v4134 = vld [vmem:[%s3383 + $0x78] sm:$0xe]
        %v4135 = vld [vmem:[%s3383 + $0x7c] sm:$0xf]
        %v4136 = vld [vmem:[%s3383 + $0x80] sm:$0x1]
        %v4137 = vld [vmem:[%s3383 + $0x84] sm:$0xe]
        %v4138 = vld [vmem:[%s3383 + $0x88] sm:$0xf]
        %v4139 = vld [vmem:[%s3383 + $0x8c] sm:$0x1]
        %v4140 = vld [vmem:[%s3383 + $0x90] sm:$0xe]
        %v4141 = vld [vmem:[%s3383 + $0x94] sm:$0xf]
        %v4142 = vld [vmem:[%s3383 + $0x98] sm:$0x1]
        %v4143 = vld [vmem:[%s3383 + $0x9c] sm:$0xe]
        %v4144 = vld [vmem:[%s3383 + $0xa0] sm:$0xf]
        %v4145 = vld [vmem:[%s3383 + $0xa4] sm:$0x1]
        %v4146 = vld [vmem:[%s3383 + $0xa8] sm:$0xe]
        %v4147 = vld [vmem:[%s3383 + $0xac] sm:$0xf]
        %v4148 = vld [vmem:[%s3383 + $0xb0] sm:$0x1]
        %v4149 = vld [vmem:[%s3383 + $0xb4] sm:$0xe]
        %v4150 = vld [vmem:[%s3383 + $0xb8] sm:$0xf]
        %v4151 = vld [vmem:[%s3383 + $0xbc] sm:$0x1]
        %v4200 = vrot.slane %v4104, 5
        %v4201 = vrot.slane %v4200, 4
        %v4202 = vrot.slane %v4105, 5
        %v4203 = vsel %vm2148, %v4201, %v4202
        %v4204 = vrot.slane %v4202, 4
        %v4205 = vrot.slane %v4106, 5
        %v4206 = vsel %vm2148, %v4204, %v4205
        %v4207 = vrot.slane %v4107, 5
        %v4208 = vrot.slane %v4207, 4
        %v4209 = vrot.slane %v4108, 5
        %v4210 = vsel %vm2148, %v4208, %v4209
        %v4211 = vrot.slane %v4209, 4
        %v4212 = vrot.slane %v4109, 5
        %v4213 = vsel %vm2148, %v4211, %v4212
        %v4214 = vrot.slane %v4110, 5
        %v4215 = vrot.slane %v4214, 4
        %v4216 = vrot.slane %v4111, 5
        %v4217 = vsel %vm2148, %v4215, %v4216
        %v4218 = vrot.slane %v4216, 4
        %v4219 = vrot.slane %v4112, 5
        %v4220 = vsel %vm2148, %v4218, %v4219
        %v4221 = vrot.slane %v4113, 5
        %v4222 = vrot.slane %v4221, 4
        %v4223 = vrot.slane %v4114, 5
        %v4224 = vsel %vm2148, %v4222, %v4223
        %v4225 = vrot.slane %v4223, 4
        %v4226 = vrot.slane %v4115, 5
        %v4227 = vsel %vm2148, %v4225, %v4226
        %v4228 = vrot.slane %v4116, 5
        %v4229 = vrot.slane %v4228, 4
        %v4230 = vrot.slane %v4117, 5
        %v4231 = vsel %vm2148, %v4229, %v4230
        %v4232 = vrot.slane %v4230, 4
        %v4233 = vrot.slane %v4118, 5
        %v4234 = vsel %vm2148, %v4232, %v4233
        %v4235 = vrot.slane %v4119, 5
        %v4236 = vrot.slane %v4235, 4
        %v4237 = vrot.slane %v4120, 5
        %v4238 = vsel %vm2148, %v4236, %v4237
        %v4239 = vrot.slane %v4237, 4
        %v4240 = vrot.slane %v4121, 5
        %v4241 = vsel %vm2148, %v4239, %v4240
        %v4242 = vrot.slane %v4122, 5
        %v4243 = vrot.slane %v4242, 4
        %v4244 = vrot.slane %v4123, 5
        %v4245 = vsel %vm2148, %v4243, %v4244
        %v4246 = vrot.slane %v4244, 4
        %v4247 = vrot.slane %v4124, 5
        %v4248 = vsel %vm2148, %v4246, %v4247
        %v4249 = vrot.slane %v4125, 5
        %v4250 = vrot.slane %v4249, 4
        %v4251 = vrot.slane %v4126, 5
        %v4252 = vsel %vm2148, %v4250, %v4251
        %v4253 = vrot.slane %v4251, 4
        %v4254 = vrot.slane %v4127, 5
        %v4255 = vsel %vm2148, %v4253, %v4254
        %v4256 = vrot.slane %v4128, 5
        %v4257 = vrot.slane %v4256, 4
        %v4258 = vrot.slane %v4129, 5
        %v4259 = vsel %vm2148, %v4257, %v4258
        %v4260 = vrot.slane %v4258, 4
        %v4261 = vrot.slane %v4130, 5
        %v4262 = vsel %vm2148, %v4260, %v4261
        %v4263 = vrot.slane %v4131, 5
        %v4264 = vrot.slane %v4263, 4
        %v4265 = vrot.slane %v4132, 5
        %v4266 = vsel %vm2148, %v4264, %v4265
        %v4267 = vrot.slane %v4265, 4
        %v4268 = vrot.slane %v4133, 5
        %v4269 = vsel %vm2148, %v4267, %v4268
        %v4270 = vrot.slane %v4134, 5
        %v4271 = vrot.slane %v4270, 4
        %v4272 = vrot.slane %v4135, 5
        %v4273 = vsel %vm2148, %v4271, %v4272
        %v4274 = vrot.slane %v4272, 4
        %v4275 = vrot.slane %v4136, 5
        %v4276 = vsel %vm2148, %v4274, %v4275
        %v4277 = vrot.slane %v4137, 5
        %v4278 = vrot.slane %v4277, 4
        %v4279 = vrot.slane %v4138, 5
        %v4280 = vsel %vm2148, %v4278, %v4279
        %v4281 = vrot.slane %v4279, 4
        %v4282 = vrot.slane %v4139, 5
        %v4283 = vsel %vm2148, %v4281, %v4282
        %v4284 = vrot.slane %v4140, 5
        %v4285 = vrot.slane %v4284, 4
        %v4286 = vrot.slane %v4141, 5
        %v4287 = vsel %vm2148, %v4285, %v4286
        %v4288 = vrot.slane %v4286, 4
        %v4289 = vrot.slane %v4142, 5
        %v4290 = vsel %vm2148, %v4288, %v4289
        %v4291 = vrot.slane %v4143, 5
        %v4292 = vrot.slane %v4291, 4
        %v4293 = vrot.slane %v4144, 5
        %v4294 = vsel %vm2148, %v4292, %v4293
        %v4295 = vrot.slane %v4293, 4
        %v4296 = vrot.slane %v4145, 5
        %v4297 = vsel %vm2148, %v4295, %v4296
        %v4298 = vrot.slane %v4146, 5
        %v4299 = vrot.slane %v4298, 4
        %v4300 = vrot.slane %v4147, 5
        %v4301 = vsel %vm2148, %v4299, %v4300
        %v4302 = vrot.slane %v4300, 4
        %v4303 = vrot.slane %v4148, 5
        %v4304 = vsel %vm2148, %v4302, %v4303
        %v4305 = vrot.slane %v4149, 5
        %v4306 = vrot.slane %v4305, 4
        %v4307 = vrot.slane %v4150, 5
        %v4308 = vsel %vm2148, %v4306, %v4307
        %v4309 = vrot.slane %v4307, 4
        %v4310 = vrot.slane %v4151, 5
        %v4311 = vsel %vm2148, %v4309, %v4310
        %v4312 = vunpack.c.l.b16 %v4203
        %v4313 = vunpack.c.l.b16 %v4206
        %v4314 = vunpack.c.l.b16 %v4210
        %v4315 = vunpack.c.l.b16 %v4213
        %v4316 = vunpack.c.l.b16 %v4217
        %v4317 = vunpack.c.l.b16 %v4220
        %v4318 = vunpack.c.l.b16 %v4224
        %v4319 = vunpack.c.l.b16 %v4227
        %v4320 = vunpack.c.l.b16 %v4231
        %v4321 = vunpack.c.l.b16 %v4234
        %v4322 = vunpack.c.l.b16 %v4238
        %v4323 = vunpack.c.l.b16 %v4241
        %v4324 = vunpack.c.l.b16 %v4245
        %v4325 = vunpack.c.l.b16 %v4248
        %v4326 = vunpack.c.l.b16 %v4252
        %v4327 = vunpack.c.l.b16 %v4255
        %v4328 = vunpack.c.l.b16 %v4259
        %v4329 = vunpack.c.l.b16 %v4262
        %v4330 = vunpack.c.l.b16 %v4266
        %v4331 = vunpack.c.l.b16 %v4269
        %v4332 = vunpack.c.l.b16 %v4273
        %v4333 = vunpack.c.l.b16 %v4276
        %v4334 = vunpack.c.l.b16 %v4280
        %v4335 = vunpack.c.l.b16 %v4283
        %v4336 = vunpack.c.l.b16 %v4287
        %v4337 = vunpack.c.l.b16 %v4290
        %v4338 = vunpack.c.l.b16 %v4294
        %v4339 = vunpack.c.l.b16 %v4297
        %v4340 = vunpack.c.l.b16 %v4301
        %v4341 = vunpack.c.l.b16 %v4304
        %v4342 = vunpack.c.l.b16 %v4308
        %v4343 = vunpack.c.l.b16 %v4311
        %v4344 = vpack.c.b16 %v4313, %v4312
        %v4345 = vpack.c.b16 %v4315, %v4314
        %v4346 = vpack.c.b16 %v4317, %v4316
        %v4347 = vpack.c.b16 %v4319, %v4318
        %v4348 = vpack.c.b16 %v4321, %v4320
        %v4349 = vpack.c.b16 %v4323, %v4322
        %v4350 = vpack.c.b16 %v4325, %v4324
        %v4351 = vpack.c.b16 %v4327, %v4326
        %v4352 = vpack.c.b16 %v4329, %v4328
        %v4353 = vpack.c.b16 %v4331, %v4330
        %v4354 = vpack.c.b16 %v4333, %v4332
        %v4355 = vpack.c.b16 %v4335, %v4334
        %v4356 = vpack.c.b16 %v4337, %v4336
        %v4357 = vpack.c.b16 %v4339, %v4338
        %v4358 = vpack.c.b16 %v4341, %v4340
        %v4359 = vpack.c.b16 %v4343, %v4342
        %4376 = vst.msk [vmem:[#allocation3 + $0x10] sm:$0xff] %vm1485, %v4344
        %4377 = vst.msk [vmem:[#allocation3 + $0x28] sm:$0xff] %vm1485, %v4345
        %4378 = vst.msk [vmem:[#allocation3 + $0x40] sm:$0xff] %vm1485, %v4346
        %4379 = vst.msk [vmem:[#allocation3 + $0x58] sm:$0xff] %vm1485, %v4347
        %4380 = vst.msk [vmem:[#allocation3 + $0x70] sm:$0xff] %vm1485, %v4348
        %4381 = vst.msk [vmem:[#allocation3 + $0x88] sm:$0xff] %vm1485, %v4349
        %4382 = vst.msk [vmem:[#allocation3 + $0xa0] sm:$0xff] %vm1485, %v4350
        %4383 = vst.msk [vmem:[#allocation3 + $0xb8] sm:$0xff] %vm1485, %v4351
        %4384 = vst.msk [vmem:[#allocation3 + $0xd0] sm:$0xff] %vm1485, %v4352
        %4385 = vst.msk [vmem:[#allocation3 + $0xe8] sm:$0xff] %vm1485, %v4353
        %4386 = vst.msk [vmem:[#allocation3 + $0x100] sm:$0xff] %vm1485, %v4354
        %4387 = vst.msk [vmem:[#allocation3 + $0x118] sm:$0xff] %vm1485, %v4355
        %4388 = vst.msk [vmem:[#allocation3 + $0x130] sm:$0xff] %vm1485, %v4356
        %4389 = vst.msk [vmem:[#allocation3 + $0x148] sm:$0xff] %vm1485, %v4357
        %4390 = vst.msk [vmem:[#allocation3 + $0x160] sm:$0xff] %vm1485, %v4358
        %4391 = vst.msk [vmem:[#allocation3 + $0x178] sm:$0xff] %vm1485, %v4359
        %v4392 = vld [vmem:[#allocation3] sm:$0xff]
        %v4393 = vld [vmem:[#allocation3 + $0x8] sm:$0xff]
        %v4394 = vld [vmem:[#allocation3 + $0x10] sm:$0xff]
        %v4395 = vld [vmem:[#allocation3 + $0x18] sm:$0xff]
        %v4396 = vld [vmem:[#allocation3 + $0x20] sm:$0xff]
        %v4397 = vld [vmem:[#allocation3 + $0x28] sm:$0xff]
        %v4398 = vld [vmem:[#allocation3 + $0x30] sm:$0xff]
        %v4399 = vld [vmem:[#allocation3 + $0x38] sm:$0xff]
        %v4400 = vld [vmem:[#allocation3 + $0x40] sm:$0xff]
        %v4401 = vld [vmem:[#allocation3 + $0x48] sm:$0xff]
        %v4402 = vld [vmem:[#allocation3 + $0x50] sm:$0xff]
        %v4403 = vld [vmem:[#allocation3 + $0x58] sm:$0xff]
        %v4404 = vld [vmem:[#allocation3 + $0x60] sm:$0xff]
        %v4405 = vld [vmem:[#allocation3 + $0x68] sm:$0xff]
        %v4406 = vld [vmem:[#allocation3 + $0x70] sm:$0xff]
        %v4407 = vld [vmem:[#allocation3 + $0x78] sm:$0xff]
        %v4408 = vld [vmem:[#allocation3 + $0x80] sm:$0xff]
        %v4409 = vld [vmem:[#allocation3 + $0x88] sm:$0xff]
        %v4410 = vld [vmem:[#allocation3 + $0x90] sm:$0xff]
        %v4411 = vld [vmem:[#allocation3 + $0x98] sm:$0xff]
        %v4412 = vld [vmem:[#allocation3 + $0xa0] sm:$0xff]
        %v4413 = vld [vmem:[#allocation3 + $0xa8] sm:$0xff]
        %v4414 = vld [vmem:[#allocation3 + $0xb0] sm:$0xff]
        %v4415 = vld [vmem:[#allocation3 + $0xb8] sm:$0xff]
        %v4416 = vld [vmem:[#allocation3 + $0xc0] sm:$0xff]
        %v4417 = vld [vmem:[#allocation3 + $0xc8] sm:$0xff]
        %v4418 = vld [vmem:[#allocation3 + $0xd0] sm:$0xff]
        %v4419 = vld [vmem:[#allocation3 + $0xd8] sm:$0xff]
        %v4420 = vld [vmem:[#allocation3 + $0xe0] sm:$0xff]
        %v4421 = vld [vmem:[#allocation3 + $0xe8] sm:$0xff]
        %v4422 = vld [vmem:[#allocation3 + $0xf0] sm:$0xff]
        %v4423 = vld [vmem:[#allocation3 + $0xf8] sm:$0xff]
        %v4424 = vld [vmem:[#allocation3 + $0x100] sm:$0xff]
        %v4425 = vld [vmem:[#allocation3 + $0x108] sm:$0xff]
        %v4426 = vld [vmem:[#allocation3 + $0x110] sm:$0xff]
        %v4427 = vld [vmem:[#allocation3 + $0x118] sm:$0xff]
        %v4428 = vld [vmem:[#allocation3 + $0x120] sm:$0xff]
        %v4429 = vld [vmem:[#allocation3 + $0x128] sm:$0xff]
        %v4430 = vld [vmem:[#allocation3 + $0x130] sm:$0xff]
        %v4431 = vld [vmem:[#allocation3 + $0x138] sm:$0xff]
        %v4432 = vld [vmem:[#allocation3 + $0x140] sm:$0xff]
        %v4433 = vld [vmem:[#allocation3 + $0x148] sm:$0xff]
        %v4434 = vld [vmem:[#allocation3 + $0x150] sm:$0xff]
        %v4435 = vld [vmem:[#allocation3 + $0x158] sm:$0xff]
        %v4436 = vld [vmem:[#allocation3 + $0x160] sm:$0xff]
        %v4437 = vld [vmem:[#allocation3 + $0x168] sm:$0xff]
        %v4438 = vld [vmem:[#allocation3 + $0x170] sm:$0xff]
        %v4439 = vld [vmem:[#allocation3 + $0x178] sm:$0xff]
        %v4440 = vld [vmem:[%s3] sm:$0xf]
        %v4441 = vld [vmem:[%s3 + $0x4] sm:$0xf]
        %v4442 = vld [vmem:[%s3 + $0x8] sm:$0xf]
        %v4443 = vld [vmem:[%s3 + $0xc] sm:$0xf]
        %v4444 = vld [vmem:[%s3 + $0x10] sm:$0xf]
        %v4445 = vld [vmem:[%s3 + $0x14] sm:$0xf]
        %v4446 = vld [vmem:[%s3 + $0x18] sm:$0xf]
        %v4447 = vld [vmem:[%s3 + $0x1c] sm:$0xf]
        %v4448 = vld [vmem:[%s3 + $0x20] sm:$0xf]
        %v4449 = vld [vmem:[%s3 + $0x24] sm:$0xf]
        %v4450 = vld [vmem:[%s3 + $0x28] sm:$0xf]
        %v4451 = vld [vmem:[%s3 + $0x2c] sm:$0xf]
        %v4452 = vld [vmem:[%s3 + $0x30] sm:$0xf]
        %v4453 = vld [vmem:[%s3 + $0x34] sm:$0xf]
        %v4454 = vld [vmem:[%s3 + $0x38] sm:$0xf]
        %v4455 = vld [vmem:[%s3 + $0x3c] sm:$0xf]
        %v4456 = vld [vmem:[%s3 + $0x40] sm:$0xf]
        %v4457 = vld [vmem:[%s3 + $0x44] sm:$0xf]
        %v4458 = vld [vmem:[%s3 + $0x48] sm:$0xf]
        %v4459 = vld [vmem:[%s3 + $0x4c] sm:$0xf]
        %v4460 = vld [vmem:[%s3 + $0x50] sm:$0xf]
        %v4461 = vld [vmem:[%s3 + $0x54] sm:$0xf]
        %v4462 = vld [vmem:[%s3 + $0x58] sm:$0xf]
        %v4463 = vld [vmem:[%s3 + $0x5c] sm:$0xf]
        %v4464 = vld [vmem:[%s3 + $0x60] sm:$0xf]
        %v4465 = vld [vmem:[%s3 + $0x64] sm:$0xf]
        %v4466 = vld [vmem:[%s3 + $0x68] sm:$0xf]
        %v4467 = vld [vmem:[%s3 + $0x6c] sm:$0xf]
        %v4468 = vld [vmem:[%s3 + $0x70] sm:$0xf]
        %v4469 = vld [vmem:[%s3 + $0x74] sm:$0xf]
        %v4470 = vld [vmem:[%s3 + $0x78] sm:$0xf]
        %v4471 = vld [vmem:[%s3 + $0x7c] sm:$0xf]
        %v4472 = vld [vmem:[%s3 + $0x80] sm:$0xf]
        %v4473 = vld [vmem:[%s3 + $0x84] sm:$0xf]
        %v4474 = vld [vmem:[%s3 + $0x88] sm:$0xf]
        %v4475 = vld [vmem:[%s3 + $0x8c] sm:$0xf]
        %v4476 = vld [vmem:[%s4] sm:$0x1]
        %v4478 = vlaneseq
        %v4479 = vshrl.u32 %v4478, 7
        %v4480 = vsub.s32 0, %v4479
        %v4481 = vrot.slane %v4476, %v4480
        %v4519 = vunpack.c.l.b16 %v4440
        %v4520 = vunpack.c.l.b16 %v4441
        %v4521 = vunpack.c.l.b16 %v4442
        %v4522 = vunpack.c.l.b16 %v4443
        %v4523 = vunpack.c.l.b16 %v4444
        %v4524 = vunpack.c.l.b16 %v4445
        %v4525 = vunpack.c.l.b16 %v4446
        %v4526 = vunpack.c.l.b16 %v4447
        %v4527 = vunpack.c.l.b16 %v4448
        %v4528 = vunpack.c.l.b16 %v4449
        %v4529 = vunpack.c.l.b16 %v4450
        %v4530 = vunpack.c.l.b16 %v4451
        %v4531 = vunpack.c.l.b16 %v4452
        %v4532 = vunpack.c.l.b16 %v4453
        %v4533 = vunpack.c.l.b16 %v4454
        %v4534 = vunpack.c.l.b16 %v4455
        %v4535 = vunpack.c.l.b16 %v4456
        %v4536 = vunpack.c.l.b16 %v4457
        %v4537 = vunpack.c.l.b16 %v4458
        %v4538 = vunpack.c.l.b16 %v4459
        %v4539 = vunpack.c.l.b16 %v4460
        %v4540 = vunpack.c.l.b16 %v4461
        %v4541 = vunpack.c.l.b16 %v4462
        %v4542 = vunpack.c.l.b16 %v4463
        %v4543 = vunpack.c.l.b16 %v4464
        %v4544 = vunpack.c.l.b16 %v4465
        %v4545 = vunpack.c.l.b16 %v4466
        %v4546 = vunpack.c.l.b16 %v4467
        %v4547 = vunpack.c.l.b16 %v4468
        %v4548 = vunpack.c.l.b16 %v4469
        %v4549 = vunpack.c.l.b16 %v4470
        %v4550 = vunpack.c.l.b16 %v4471
        %v4551 = vunpack.c.l.b16 %v4472
        %v4552 = vunpack.c.l.b16 %v4473
        %v4553 = vunpack.c.l.b16 %v4474
        %v4554 = vunpack.c.l.b16 %v4475
        %v4555 = vpack.c.b16 %v4520, %v4519
        %v4556 = vpack.c.b16 %v4522, %v4521
        %v4557 = vpack.c.b16 %v4524, %v4523
        %v4558 = vpack.c.b16 %v4526, %v4525
        %v4559 = vpack.c.b16 %v4528, %v4527
        %v4560 = vpack.c.b16 %v4530, %v4529
        %v4561 = vpack.c.b16 %v4532, %v4531
        %v4562 = vpack.c.b16 %v4534, %v4533
        %v4563 = vpack.c.b16 %v4536, %v4535
        %v4564 = vpack.c.b16 %v4538, %v4537
        %v4565 = vpack.c.b16 %v4540, %v4539
        %v4566 = vpack.c.b16 %v4542, %v4541
        %v4567 = vpack.c.b16 %v4544, %v4543
        %v4568 = vpack.c.b16 %v4546, %v4545
        %v4569 = vpack.c.b16 %v4548, %v4547
        %v4570 = vpack.c.b16 %v4550, %v4549
        %v4571 = vpack.c.b16 %v4552, %v4551
        %v4572 = vpack.c.b16 %v4554, %v4553
        %v4592 = vsel %vm1485, %v4394, 0
        %v4595 = vsel %vm1485, %v4397, 0
        %v4598 = vsel %vm1485, %v4400, 0
        %v4601 = vsel %vm1485, %v4403, 0
        %v4604 = vsel %vm1485, %v4406, 0
        %v4607 = vsel %vm1485, %v4409, 0
        %v4610 = vsel %vm1485, %v4412, 0
        %v4613 = vsel %vm1485, %v4415, 0
        %v4616 = vsel %vm1485, %v4418, 0
        %v4619 = vsel %vm1485, %v4421, 0
        %v4622 = vsel %vm1485, %v4424, 0
        %v4625 = vsel %vm1485, %v4427, 0
        %v4628 = vsel %vm1485, %v4430, 0
        %v4631 = vsel %vm1485, %v4433, 0
        %v4634 = vsel %vm1485, %v4436, 0
        %v4637 = vsel %vm1485, %v4439, 0
        %4639 = vmatprep.subr.bf16.mxu0 0
        %4640 = vmatpush1.bf16.msra.mxu0 %v4555
        %4641 = vmatprep.subr.bf16.mxu0 0
        %4642 = vmatpush1.bf16.msra.mxu0 %v4556
        %4643 = vmatprep.subr.bf16.mxu0 0
        %4644 = vmatpush1.bf16.msra.mxu0 %v4557
        %4645 = vmatprep.subr.bf16.mxu0 0
        %4646 = vmatpush1.bf16.msra.mxu0 %v4558
        %4647 = vmatprep.subr.bf16.mxu0 0
        %4648 = vmatpush1.bf16.msra.mxu0 %v4559
        %4649 = vmatprep.subr.bf16.mxu0 0
        %4650 = vmatpush1.bf16.msra.mxu0 %v4560
        %4651 = vmatprep.subr.bf16.mxu0 0
        %4652 = vmatpush1.bf16.msra.mxu0 %v4561
        %4653 = vmatprep.subr.bf16.mxu0 0
        %4654 = vmatpush1.bf16.msra.mxu0 %v4562
        %4655 = vmatprep.subr.bf16.mxu0 0
        %4656 = vmatpush1.bf16.msra.mxu0 %v4563
        %4657 = vmatprep.subr.bf16.mxu0 0
        %4658 = vmatpush1.bf16.msra.mxu0 %v4564
        %4659 = vmatprep.subr.bf16.mxu0 0
        %4660 = vmatpush1.bf16.msra.mxu0 %v4565
        %4661 = vmatprep.subr.bf16.mxu0 0
        %4662 = vmatpush1.bf16.msra.mxu0 %v4566
        %4663 = vmatprep.subr.bf16.mxu0 0
        %4664 = vmatpush1.bf16.msra.mxu0 %v4567
        %4665 = vmatprep.subr.bf16.mxu0 0
        %4666 = vmatpush1.bf16.msra.mxu0 %v4568
        %4667 = vmatprep.subr.bf16.mxu0 0
        %4668 = vmatpush1.bf16.msra.mxu0 %v4569
        %4669 = vmatprep.subr.bf16.mxu0 0
        %4670 = vmatpush1.bf16.msra.mxu0 %v4570
        %4671 = vmatprep.mubr.bf16.mxu0 %v4393
        %4672 = vmatmul.mubr.bf16.gmra.mrb[0].mxu0 %v4392
        %v4673 = vpop.f32.mrb[0].mxu0
        %v4674 = vadd.f32 %v4481, %v4673
        %v4675 = vpop.f32.mrb[0].mxu0
        %v4676 = vpop.f32.mrb[0].mxu0
        %v4677 = vadd.f32 %v4481, %v4676
        %v4678 = vpop.f32.mrb[0].mxu0
        %4679 = vmatprep.mubr.bf16.mxu0 %v4396
        %4680 = vmatmul.mubr.bf16.gmra.mrb[0].mxu0 %v4395
        %v4681 = vpop.f32.mrb[0].mxu0
        %v4682 = vadd.f32 %v4481, %v4681
        %v4683 = vpop.f32.mrb[0].mxu0
        %v4684 = vpop.f32.mrb[0].mxu0
        %v4685 = vadd.f32 %v4481, %v4684
        %v4686 = vpop.f32.mrb[0].mxu0
        %4687 = vmatprep.mubr.bf16.mxu0 %v4399
        %4688 = vmatmul.mubr.bf16.gmra.mrb[0].mxu0 %v4398
        %v4689 = vpop.f32.mrb[0].mxu0
        %v4690 = vadd.f32 %v4481, %v4689
        %v4691 = vpop.f32.mrb[0].mxu0
        %v4692 = vpop.f32.mrb[0].mxu0
        %v4693 = vadd.f32 %v4481, %v4692
        %v4694 = vpop.f32.mrb[0].mxu0
        %4695 = vmatprep.mubr.bf16.mxu0 %v4402
        %4696 = vmatmul.mubr.bf16.gmra.mrb[0].mxu0 %v4401
        %v4697 = vpop.f32.mrb[0].mxu0
        %v4698 = vadd.f32 %v4481, %v4697
        %v4699 = vpop.f32.mrb[0].mxu0
        %v4700 = vpop.f32.mrb[0].mxu0
        %v4701 = vadd.f32 %v4481, %v4700
        %v4702 = vpop.f32.mrb[0].mxu0
        %4703 = vmatprep.mubr.bf16.mxu0 %v4405
        %4704 = vmatmul.mubr.bf16.gmra.mrb[0].mxu0 %v4404
        %v4705 = vpop.f32.mrb[0].mxu0
        %v4706 = vadd.f32 %v4481, %v4705
        %v4707 = vpop.f32.mrb[0].mxu0
        %v4708 = vpop.f32.mrb[0].mxu0
        %v4709 = vadd.f32 %v4481, %v4708
        %v4710 = vpop.f32.mrb[0].mxu0
        %4711 = vmatprep.mubr.bf16.mxu0 %v4408
        %4712 = vmatmul.mubr.bf16.gmra.mrb[0].mxu0 %v4407
        %v4713 = vpop.f32.mrb[0].mxu0
        %v4714 = vadd.f32 %v4481, %v4713
        %v4715 = vpop.f32.mrb[0].mxu0
        %v4716 = vpop.f32.mrb[0].mxu0
        %v4717 = vadd.f32 %v4481, %v4716
        %v4718 = vpop.f32.mrb[0].mxu0
        %4719 = vmatprep.mubr.bf16.mxu0 %v4411
        %4720 = vmatmul.mubr.bf16.gmra.mrb[0].mxu0 %v4410
        %v4721 = vpop.f32.mrb[0].mxu0
        %v4722 = vadd.f32 %v4481, %v4721
        %v4723 = vpop.f32.mrb[0].mxu0
        %v4724 = vpop.f32.mrb[0].mxu0
        %v4725 = vadd.f32 %v4481, %v4724
        %v4726 = vpop.f32.mrb[0].mxu0
        %4727 = vmatprep.mubr.bf16.mxu0 %v4414
        %4728 = vmatmul.mubr.bf16.gmra.mrb[0].mxu0 %v4413
        %v4729 = vpop.f32.mrb[0].mxu0
        %v4730 = vadd.f32 %v4481, %v4729
        %v4731 = vpop.f32.mrb[0].mxu0
        %v4732 = vpop.f32.mrb[0].mxu0
        %v4733 = vadd.f32 %v4481, %v4732
        %v4734 = vpop.f32.mrb[0].mxu0
        %4735 = vmatprep.mubr.bf16.mxu0 %v4417
        %4736 = vmatmul.mubr.bf16.gmra.mrb[0].mxu0 %v4416
        %v4737 = vpop.f32.mrb[0].mxu0
        %v4738 = vadd.f32 %v4481, %v4737
        %v4739 = vpop.f32.mrb[0].mxu0
        %v4740 = vpop.f32.mrb[0].mxu0
        %v4741 = vadd.f32 %v4481, %v4740
        %v4742 = vpop.f32.mrb[0].mxu0
        %4743 = vmatprep.mubr.bf16.mxu0 %v4420
        %4744 = vmatmul.mubr.bf16.gmra.mrb[0].mxu0 %v4419
        %v4745 = vpop.f32.mrb[0].mxu0
        %v4746 = vadd.f32 %v4481, %v4745
        %v4747 = vpop.f32.mrb[0].mxu0
        %v4748 = vpop.f32.mrb[0].mxu0
        %v4749 = vadd.f32 %v4481, %v4748
        %v4750 = vpop.f32.mrb[0].mxu0
        %4751 = vmatprep.mubr.bf16.mxu0 %v4423
        %4752 = vmatmul.mubr.bf16.gmra.mrb[0].mxu0 %v4422
        %v4753 = vpop.f32.mrb[0].mxu0
        %v4754 = vadd.f32 %v4481, %v4753
        %v4755 = vpop.f32.mrb[0].mxu0
        %v4756 = vpop.f32.mrb[0].mxu0
        %v4757 = vadd.f32 %v4481, %v4756
        %v4758 = vpop.f32.mrb[0].mxu0
        %4759 = vmatprep.mubr.bf16.mxu0 %v4426
        %4760 = vmatmul.mubr.bf16.gmra.mrb[0].mxu0 %v4425
        %v4761 = vpop.f32.mrb[0].mxu0
        %v4762 = vadd.f32 %v4481, %v4761
        %v4763 = vpop.f32.mrb[0].mxu0
        %v4764 = vpop.f32.mrb[0].mxu0
        %v4765 = vadd.f32 %v4481, %v4764
        %v4766 = vpop.f32.mrb[0].mxu0
        %4767 = vmatprep.mubr.bf16.mxu0 %v4429
        %4768 = vmatmul.mubr.bf16.gmra.mrb[0].mxu0 %v4428
        %v4769 = vpop.f32.mrb[0].mxu0
        %v4770 = vadd.f32 %v4481, %v4769
        %v4771 = vpop.f32.mrb[0].mxu0
        %v4772 = vpop.f32.mrb[0].mxu0
        %v4773 = vadd.f32 %v4481, %v4772
        %v4774 = vpop.f32.mrb[0].mxu0
        %4775 = vmatprep.mubr.bf16.mxu0 %v4432
        %4776 = vmatmul.mubr.bf16.gmra.mrb[0].mxu0 %v4431
        %v4777 = vpop.f32.mrb[0].mxu0
        %v4778 = vadd.f32 %v4481, %v4777
        %v4779 = vpop.f32.mrb[0].mxu0
        %v4780 = vpop.f32.mrb[0].mxu0
        %v4781 = vadd.f32 %v4481, %v4780
        %v4782 = vpop.f32.mrb[0].mxu0
        %4783 = vmatprep.mubr.bf16.mxu0 %v4435
        %4784 = vmatmul.mubr.bf16.gmra.mrb[0].mxu0 %v4434
        %v4785 = vpop.f32.mrb[0].mxu0
        %v4786 = vadd.f32 %v4481, %v4785
        %v4787 = vpop.f32.mrb[0].mxu0
        %v4788 = vpop.f32.mrb[0].mxu0
        %v4789 = vadd.f32 %v4481, %v4788
        %v4790 = vpop.f32.mrb[0].mxu0
        %4791 = vmatprep.mubr.bf16.mxu0 %v4438
        %4792 = vmatmul.mubr.bf16.gmra.mrb[0].mxu0 %v4437
        %v4793 = vpop.f32.mrb[0].mxu0
        %v4794 = vadd.f32 %v4481, %v4793
        %v4795 = vpop.f32.mrb[0].mxu0
        %v4796 = vpop.f32.mrb[0].mxu0
        %v4797 = vadd.f32 %v4481, %v4796
        %v4798 = vpop.f32.mrb[0].mxu0
        %4799 = vdwg.mxu0
        %4800 = vmatprep.subr.bf16.mxu0 0
        %4801 = vmatpush1.bf16.msra.mxu0 %v4571
        %4802 = vmatprep.subr.bf16.mxu0 0
        %4803 = vmatpush1.bf16.msra.mxu0 %v4572
        %4804 = vmatprep.subr.bf16.mxu0 0
        %4805 = vmatpush1.bf16.msra.mxu0 0
        %4806 = vmatprep.subr.bf16.mxu0 0
        %4807 = vmatpush1.bf16.msra.mxu0 0
        %4808 = vmatprep.subr.bf16.mxu0 0
        %4809 = vmatpush1.bf16.msra.mxu0 0
        %4810 = vmatprep.subr.bf16.mxu0 0
        %4811 = vmatpush1.bf16.msra.mxu0 0
        %4812 = vmatprep.subr.bf16.mxu0 0
        %4813 = vmatpush1.bf16.msra.mxu0 0
        %4814 = vmatprep.subr.bf16.mxu0 0
        %4815 = vmatpush1.bf16.msra.mxu0 0
        %4816 = vmatprep.subr.bf16.mxu0 0
        %4817 = vmatpush1.bf16.msra.mxu0 0
        %4818 = vmatprep.subr.bf16.mxu0 0
        %4819 = vmatpush1.bf16.msra.mxu0 0
        %4820 = vmatprep.subr.bf16.mxu0 0
        %4821 = vmatpush1.bf16.msra.mxu0 0
        %4822 = vmatprep.subr.bf16.mxu0 0
        %4823 = vmatpush1.bf16.msra.mxu0 0
        %4824 = vmatprep.subr.bf16.mxu0 0
        %4825 = vmatpush1.bf16.msra.mxu0 0
        %4826 = vmatprep.subr.bf16.mxu0 0
        %4827 = vmatpush1.bf16.msra.mxu0 0
        %4828 = vmatprep.subr.bf16.mxu0 0
        %4829 = vmatpush1.bf16.msra.mxu0 0
        %4830 = vmatprep.subr.bf16.mxu0 0
        %4831 = vmatpush1.bf16.msra.mxu0 0
        %4832 = vmatprep.mubr.bf16.mxu0 0
        %4833 = vmatmul.mubr.bf16.gmra.mrb[0].mxu0 %v4592
        %v4834 = vpop.f32.mrb[0].mxu0
        %v4835 = vadd.f32 %v4674, %v4834
        %v4836 = vpop.f32.mrb[0].mxu0
        %v4837 = vpop.f32.mrb[0].mxu0
        %v4838 = vadd.f32 %v4677, %v4837
        %v4839 = vpop.f32.mrb[0].mxu0
        %4840 = vmatprep.mubr.bf16.mxu0 0
        %4841 = vmatmul.mubr.bf16.gmra.mrb[0].mxu0 %v4595
        %v4842 = vpop.f32.mrb[0].mxu0
        %v4843 = vadd.f32 %v4682, %v4842
        %v4844 = vpop.f32.mrb[0].mxu0
        %v4845 = vpop.f32.mrb[0].mxu0
        %v4846 = vadd.f32 %v4685, %v4845
        %v4847 = vpop.f32.mrb[0].mxu0
        %4848 = vmatprep.mubr.bf16.mxu0 0
        %4849 = vmatmul.mubr.bf16.gmra.mrb[0].mxu0 %v4598
        %v4850 = vpop.f32.mrb[0].mxu0
        %v4851 = vadd.f32 %v4690, %v4850
        %v4852 = vpop.f32.mrb[0].mxu0
        %v4853 = vpop.f32.mrb[0].mxu0
        %v4854 = vadd.f32 %v4693, %v4853
        %v4855 = vpop.f32.mrb[0].mxu0
        %4856 = vmatprep.mubr.bf16.mxu0 0
        %4857 = vmatmul.mubr.bf16.gmra.mrb[0].mxu0 %v4601
        %v4858 = vpop.f32.mrb[0].mxu0
        %v4859 = vadd.f32 %v4698, %v4858
        %v4860 = vpop.f32.mrb[0].mxu0
        %v4861 = vpop.f32.mrb[0].mxu0
        %v4862 = vadd.f32 %v4701, %v4861
        %v4863 = vpop.f32.mrb[0].mxu0
        %4864 = vmatprep.mubr.bf16.mxu0 0
        %4865 = vmatmul.mubr.bf16.gmra.mrb[0].mxu0 %v4604
        %v4866 = vpop.f32.mrb[0].mxu0
        %v4867 = vadd.f32 %v4706, %v4866
        %v4868 = vpop.f32.mrb[0].mxu0
        %v4869 = vpop.f32.mrb[0].mxu0
        %v4870 = vadd.f32 %v4709, %v4869
        %v4871 = vpop.f32.mrb[0].mxu0
        %4872 = vmatprep.mubr.bf16.mxu0 0
        %4873 = vmatmul.mubr.bf16.gmra.mrb[0].mxu0 %v4607
        %v4874 = vpop.f32.mrb[0].mxu0
        %v4875 = vadd.f32 %v4714, %v4874
        %v4876 = vpop.f32.mrb[0].mxu0
        %v4877 = vpop.f32.mrb[0].mxu0
        %v4878 = vadd.f32 %v4717, %v4877
        %v4879 = vpop.f32.mrb[0].mxu0
        %4880 = vmatprep.mubr.bf16.mxu0 0
        %4881 = vmatmul.mubr.bf16.gmra.mrb[0].mxu0 %v4610
        %v4882 = vpop.f32.mrb[0].mxu0
        %v4883 = vadd.f32 %v4722, %v4882
        %v4884 = vpop.f32.mrb[0].mxu0
        %v4885 = vpop.f32.mrb[0].mxu0
        %v4886 = vadd.f32 %v4725, %v4885
        %v4887 = vpop.f32.mrb[0].mxu0
        %4888 = vmatprep.mubr.bf16.mxu0 0
        %4889 = vmatmul.mubr.bf16.gmra.mrb[0].mxu0 %v4613
        %v4890 = vpop.f32.mrb[0].mxu0
        %v4891 = vadd.f32 %v4730, %v4890
        %v4892 = vpop.f32.mrb[0].mxu0
        %v4893 = vpop.f32.mrb[0].mxu0
        %v4894 = vadd.f32 %v4733, %v4893
        %v4895 = vpop.f32.mrb[0].mxu0
        %4896 = vmatprep.mubr.bf16.mxu0 0
        %4897 = vmatmul.mubr.bf16.gmra.mrb[0].mxu0 %v4616
        %v4898 = vpop.f32.mrb[0].mxu0
        %v4899 = vadd.f32 %v4738, %v4898
        %v4900 = vpop.f32.mrb[0].mxu0
        %v4901 = vpop.f32.mrb[0].mxu0
        %v4902 = vadd.f32 %v4741, %v4901
        %v4903 = vpop.f32.mrb[0].mxu0
        %4904 = vmatprep.mubr.bf16.mxu0 0
        %4905 = vmatmul.mubr.bf16.gmra.mrb[0].mxu0 %v4619
        %v4906 = vpop.f32.mrb[0].mxu0
        %v4907 = vadd.f32 %v4746, %v4906
        %v4908 = vpop.f32.mrb[0].mxu0
        %v4909 = vpop.f32.mrb[0].mxu0
        %v4910 = vadd.f32 %v4749, %v4909
        %v4911 = vpop.f32.mrb[0].mxu0
        %4912 = vmatprep.mubr.bf16.mxu0 0
        %4913 = vmatmul.mubr.bf16.gmra.mrb[0].mxu0 %v4622
        %v4914 = vpop.f32.mrb[0].mxu0
        %v4915 = vadd.f32 %v4754, %v4914
        %v4916 = vpop.f32.mrb[0].mxu0
        %v4917 = vpop.f32.mrb[0].mxu0
        %v4918 = vadd.f32 %v4757, %v4917
        %v4919 = vpop.f32.mrb[0].mxu0
        %4920 = vmatprep.mubr.bf16.mxu0 0
        %4921 = vmatmul.mubr.bf16.gmra.mrb[0].mxu0 %v4625
        %v4922 = vpop.f32.mrb[0].mxu0
        %v4923 = vadd.f32 %v4762, %v4922
        %v4924 = vpop.f32.mrb[0].mxu0
        %v4925 = vpop.f32.mrb[0].mxu0
        %v4926 = vadd.f32 %v4765, %v4925
        %v4927 = vpop.f32.mrb[0].mxu0
        %4928 = vmatprep.mubr.bf16.mxu0 0
        %4929 = vmatmul.mubr.bf16.gmra.mrb[0].mxu0 %v4628
        %v4930 = vpop.f32.mrb[0].mxu0
        %v4931 = vadd.f32 %v4770, %v4930
        %v4932 = vpop.f32.mrb[0].mxu0
        %v4933 = vpop.f32.mrb[0].mxu0
        %v4934 = vadd.f32 %v4773, %v4933
        %v4935 = vpop.f32.mrb[0].mxu0
        %4936 = vmatprep.mubr.bf16.mxu0 0
        %4937 = vmatmul.mubr.bf16.gmra.mrb[0].mxu0 %v4631
        %v4938 = vpop.f32.mrb[0].mxu0
        %v4939 = vadd.f32 %v4778, %v4938
        %v4940 = vpop.f32.mrb[0].mxu0
        %v4941 = vpop.f32.mrb[0].mxu0
        %v4942 = vadd.f32 %v4781, %v4941
        %v4943 = vpop.f32.mrb[0].mxu0
        %4944 = vmatprep.mubr.bf16.mxu0 0
        %4945 = vmatmul.mubr.bf16.gmra.mrb[0].mxu0 %v4634
        %v4946 = vpop.f32.mrb[0].mxu0
        %v4947 = vadd.f32 %v4786, %v4946
        %v4948 = vpop.f32.mrb[0].mxu0
        %v4949 = vpop.f32.mrb[0].mxu0
        %v4950 = vadd.f32 %v4789, %v4949
        %v4951 = vpop.f32.mrb[0].mxu0
        %4952 = vmatprep.mubr.bf16.mxu0 0
        %4953 = vmatmul.mubr.bf16.gmra.mrb[0].mxu0 %v4637
        %v4954 = vpop.f32.mrb[0].mxu0
        %v4955 = vadd.f32 %v4794, %v4954
        %v4956 = vpop.f32.mrb[0].mxu0
        %v4957 = vpop.f32.mrb[0].mxu0
        %v4958 = vadd.f32 %v4797, %v4957
        %v4959 = vpop.f32.mrb[0].mxu0
        %4960 = vdwg.mxu0
        %v4961 = vmax.f32 %v4835, 0.0
        %v4962 = vmax.f32 %v4838, 0.0
        %v4963 = vmax.f32 %v4843, 0.0
        %v4964 = vmax.f32 %v4846, 0.0
        %v4965 = vmax.f32 %v4851, 0.0
        %v4966 = vmax.f32 %v4854, 0.0
        %v4967 = vmax.f32 %v4859, 0.0
        %v4968 = vmax.f32 %v4862, 0.0
        %v4969 = vmax.f32 %v4867, 0.0
        %v4970 = vmax.f32 %v4870, 0.0
        %v4971 = vmax.f32 %v4875, 0.0
        %v4972 = vmax.f32 %v4878, 0.0
        %v4973 = vmax.f32 %v4883, 0.0
        %v4974 = vmax.f32 %v4886, 0.0
        %v4975 = vmax.f32 %v4891, 0.0
        %v4976 = vmax.f32 %v4894, 0.0
        %v4977 = vmax.f32 %v4899, 0.0
        %v4978 = vmax.f32 %v4902, 0.0
        %v4979 = vmax.f32 %v4907, 0.0
        %v4980 = vmax.f32 %v4910, 0.0
        %v4981 = vmax.f32 %v4915, 0.0
        %v4982 = vmax.f32 %v4918, 0.0
        %v4983 = vmax.f32 %v4923, 0.0
        %v4984 = vmax.f32 %v4926, 0.0
        %v4985 = vmax.f32 %v4931, 0.0
        %v4986 = vmax.f32 %v4934, 0.0
        %v4987 = vmax.f32 %v4939, 0.0
        %v4988 = vmax.f32 %v4942, 0.0
        %v4989 = vmax.f32 %v4947, 0.0
        %v4990 = vmax.f32 %v4950, 0.0
        %v4991 = vmax.f32 %v4955, 0.0
        %v4992 = vmax.f32 %v4958, 0.0
        %v4993 = vpack.c.bf16 %v4962, %v4961
        %v4994 = vpack.c.bf16 %v4964, %v4963
        %v4995 = vpack.c.bf16 %v4966, %v4965
        %v4996 = vpack.c.bf16 %v4968, %v4967
        %v4997 = vpack.c.bf16 %v4970, %v4969
        %v4998 = vpack.c.bf16 %v4972, %v4971
        %v4999 = vpack.c.bf16 %v4974, %v4973
        %v5000 = vpack.c.bf16 %v4976, %v4975
        %v5001 = vpack.c.bf16 %v4978, %v4977
        %v5002 = vpack.c.bf16 %v4980, %v4979
        %v5003 = vpack.c.bf16 %v4982, %v4981
        %v5004 = vpack.c.bf16 %v4984, %v4983
        %v5005 = vpack.c.bf16 %v4986, %v4985
        %v5006 = vpack.c.bf16 %v4988, %v4987
        %v5007 = vpack.c.bf16 %v4990, %v4989
        %v5008 = vpack.c.bf16 %v4992, %v4991
        %v5009 = vld [vmem:[%s5] sm:$0xf]
        %v5010 = vld [vmem:[%s5 + $0x4] sm:$0xf]
        %v5011 = vld [vmem:[%s5 + $0x8] sm:$0xf]
        %v5012 = vld [vmem:[%s5 + $0xc] sm:$0xf]
        %v5013 = vld [vmem:[%s6] sm:$0x1]
        %v5015 = vlaneseq
        %v5016 = vshrl.u32 %v5015, 7
        %v5017 = vsub.s32 0, %v5016
        %v5018 = vrot.slane %v5013, %v5017
        %v5024 = vunpack.c.l.b16 %v5009
        %v5025 = vunpack.c.l.b16 %v5010
        %v5026 = vunpack.c.l.b16 %v5011
        %v5027 = vunpack.c.l.b16 %v5012
        %v5028 = vpack.c.b16 %v5025, %v5024
        %v5029 = vpack.c.b16 %v5027, %v5026
        %v5033 = vsel %vm1485, %v4993, 0
        %v5036 = vsel %vm1485, %v4994, 0
        %v5039 = vsel %vm1485, %v4995, 0
        %v5042 = vsel %vm1485, %v4996, 0
        %v5045 = vsel %vm1485, %v4997, 0
        %v5048 = vsel %vm1485, %v4998, 0
        %v5051 = vsel %vm1485, %v4999, 0
        %v5054 = vsel %vm1485, %v5000, 0
        %v5057 = vsel %vm1485, %v5001, 0
        %v5060 = vsel %vm1485, %v5002, 0
        %v5063 = vsel %vm1485, %v5003, 0
        %v5066 = vsel %vm1485, %v5004, 0
        %v5069 = vsel %vm1485, %v5005, 0
        %v5072 = vsel %vm1485, %v5006, 0
        %v5075 = vsel %vm1485, %v5007, 0
        %v5078 = vsel %vm1485, %v5008, 0
        %5080 = vmatprep.subr.bf16.mxu0 0
        %5081 = vmatpush1.bf16.msra.mxu0 %v5028
        %5082 = vmatprep.subr.bf16.mxu0 0
        %5083 = vmatpush1.bf16.msra.mxu0 %v5029
        %5084 = vmatprep.subr.bf16.mxu0 0
        %5085 = vmatpush1.bf16.msra.mxu0 0
        %5086 = vmatprep.subr.bf16.mxu0 0
        %5087 = vmatpush1.bf16.msra.mxu0 0
        %5088 = vmatprep.subr.bf16.mxu0 0
        %5089 = vmatpush1.bf16.msra.mxu0 0
        %5090 = vmatprep.subr.bf16.mxu0 0
        %5091 = vmatpush1.bf16.msra.mxu0 0
        %5092 = vmatprep.subr.bf16.mxu0 0
        %5093 = vmatpush1.bf16.msra.mxu0 0
        %5094 = vmatprep.subr.bf16.mxu0 0
        %5095 = vmatpush1.bf16.msra.mxu0 0
        %5096 = vmatprep.subr.bf16.mxu0 0
        %5097 = vmatpush1.bf16.msra.mxu0 0
        %5098 = vmatprep.subr.bf16.mxu0 0
        %5099 = vmatpush1.bf16.msra.mxu0 0
        %5100 = vmatprep.subr.bf16.mxu0 0
        %5101 = vmatpush1.bf16.msra.mxu0 0
        %5102 = vmatprep.subr.bf16.mxu0 0
        %5103 = vmatpush1.bf16.msra.mxu0 0
        %5104 = vmatprep.subr.bf16.mxu0 0
        %5105 = vmatpush1.bf16.msra.mxu0 0
        %5106 = vmatprep.subr.bf16.mxu0 0
        %5107 = vmatpush1.bf16.msra.mxu0 0
        %5108 = vmatprep.subr.bf16.mxu0 0
        %5109 = vmatpush1.bf16.msra.mxu0 0
        %5110 = vmatprep.subr.bf16.mxu0 0
        %5111 = vmatpush1.bf16.msra.mxu0 0
        %5112 = vmatprep.mubr.bf16.mxu0 0
        %5113 = vmatmul.mubr.bf16.gmra.mrb[0].mxu0 %v5033
        %v5114 = vpop.f32.mrb[0].mxu0
        %v5115 = vadd.f32 %v5018, %v5114
        %v5116 = vpop.f32.mrb[0].mxu0
        %v5117 = vpop.f32.mrb[0].mxu0
        %v5118 = vadd.f32 %v5018, %v5117
        %v5119 = vpop.f32.mrb[0].mxu0
        %5120 = vmatprep.mubr.bf16.mxu0 0
        %5121 = vmatmul.mubr.bf16.gmra.mrb[0].mxu0 %v5036
        %v5122 = vpop.f32.mrb[0].mxu0
        %v5123 = vadd.f32 %v5018, %v5122
        %v5124 = vpop.f32.mrb[0].mxu0
        %v5125 = vpop.f32.mrb[0].mxu0
        %v5126 = vadd.f32 %v5018, %v5125
        %v5127 = vpop.f32.mrb[0].mxu0
        %5128 = vmatprep.mubr.bf16.mxu0 0
        %5129 = vmatmul.mubr.bf16.gmra.mrb[0].mxu0 %v5039
        %v5130 = vpop.f32.mrb[0].mxu0
        %v5131 = vadd.f32 %v5018, %v5130
        %v5132 = vpop.f32.mrb[0].mxu0
        %v5133 = vpop.f32.mrb[0].mxu0
        %v5134 = vadd.f32 %v5018, %v5133
        %v5135 = vpop.f32.mrb[0].mxu0
        %5136 = vmatprep.mubr.bf16.mxu0 0
        %5137 = vmatmul.mubr.bf16.gmra.mrb[0].mxu0 %v5042
        %v5138 = vpop.f32.mrb[0].mxu0
        %v5139 = vadd.f32 %v5018, %v5138
        %v5140 = vpop.f32.mrb[0].mxu0
        %v5141 = vpop.f32.mrb[0].mxu0
        %v5142 = vadd.f32 %v5018, %v5141
        %v5143 = vpop.f32.mrb[0].mxu0
        %5144 = vmatprep.mubr.bf16.mxu0 0
        %5145 = vmatmul.mubr.bf16.gmra.mrb[0].mxu0 %v5045
        %v5146 = vpop.f32.mrb[0].mxu0
        %v5147 = vadd.f32 %v5018, %v5146
        %v5148 = vpop.f32.mrb[0].mxu0
        %v5149 = vpop.f32.mrb[0].mxu0
        %v5150 = vadd.f32 %v5018, %v5149
        %v5151 = vpop.f32.mrb[0].mxu0
        %5152 = vmatprep.mubr.bf16.mxu0 0
        %5153 = vmatmul.mubr.bf16.gmra.mrb[0].mxu0 %v5048
        %v5154 = vpop.f32.mrb[0].mxu0
        %v5155 = vadd.f32 %v5018, %v5154
        %v5156 = vpop.f32.mrb[0].mxu0
        %v5157 = vpop.f32.mrb[0].mxu0
        %v5158 = vadd.f32 %v5018, %v5157
        %v5159 = vpop.f32.mrb[0].mxu0
        %5160 = vmatprep.mubr.bf16.mxu0 0
        %5161 = vmatmul.mubr.bf16.gmra.mrb[0].mxu0 %v5051
        %v5162 = vpop.f32.mrb[0].mxu0
        %v5163 = vadd.f32 %v5018, %v5162
        %v5164 = vpop.f32.mrb[0].mxu0
        %v5165 = vpop.f32.mrb[0].mxu0
        %v5166 = vadd.f32 %v5018, %v5165
        %v5167 = vpop.f32.mrb[0].mxu0
        %5168 = vmatprep.mubr.bf16.mxu0 0
        %5169 = vmatmul.mubr.bf16.gmra.mrb[0].mxu0 %v5054
        %v5170 = vpop.f32.mrb[0].mxu0
        %v5171 = vadd.f32 %v5018, %v5170
        %v5172 = vpop.f32.mrb[0].mxu0
        %v5173 = vpop.f32.mrb[0].mxu0
        %v5174 = vadd.f32 %v5018, %v5173
        %v5175 = vpop.f32.mrb[0].mxu0
        %5176 = vmatprep.mubr.bf16.mxu0 0
        %5177 = vmatmul.mubr.bf16.gmra.mrb[0].mxu0 %v5057
        %v5178 = vpop.f32.mrb[0].mxu0
        %v5179 = vadd.f32 %v5018, %v5178
        %v5180 = vpop.f32.mrb[0].mxu0
        %v5181 = vpop.f32.mrb[0].mxu0
        %v5182 = vadd.f32 %v5018, %v5181
        %v5183 = vpop.f32.mrb[0].mxu0
        %5184 = vmatprep.mubr.bf16.mxu0 0
        %5185 = vmatmul.mubr.bf16.gmra.mrb[0].mxu0 %v5060
        %v5186 = vpop.f32.mrb[0].mxu0
        %v5187 = vadd.f32 %v5018, %v5186
        %v5188 = vpop.f32.mrb[0].mxu0
        %v5189 = vpop.f32.mrb[0].mxu0
        %v5190 = vadd.f32 %v5018, %v5189
        %v5191 = vpop.f32.mrb[0].mxu0
        %5192 = vmatprep.mubr.bf16.mxu0 0
        %5193 = vmatmul.mubr.bf16.gmra.mrb[0].mxu0 %v5063
        %v5194 = vpop.f32.mrb[0].mxu0
        %v5195 = vadd.f32 %v5018, %v5194
        %v5196 = vpop.f32.mrb[0].mxu0
        %v5197 = vpop.f32.mrb[0].mxu0
        %v5198 = vadd.f32 %v5018, %v5197
        %v5199 = vpop.f32.mrb[0].mxu0
        %5200 = vmatprep.mubr.bf16.mxu0 0
        %5201 = vmatmul.mubr.bf16.gmra.mrb[0].mxu0 %v5066
        %v5202 = vpop.f32.mrb[0].mxu0
        %v5203 = vadd.f32 %v5018, %v5202
        %v5204 = vpop.f32.mrb[0].mxu0
        %v5205 = vpop.f32.mrb[0].mxu0
        %v5206 = vadd.f32 %v5018, %v5205
        %v5207 = vpop.f32.mrb[0].mxu0
        %5208 = vmatprep.mubr.bf16.mxu0 0
        %5209 = vmatmul.mubr.bf16.gmra.mrb[0].mxu0 %v5069
        %v5210 = vpop.f32.mrb[0].mxu0
        %v5211 = vadd.f32 %v5018, %v5210
        %v5212 = vpop.f32.mrb[0].mxu0
        %v5213 = vpop.f32.mrb[0].mxu0
        %v5214 = vadd.f32 %v5018, %v5213
        %v5215 = vpop.f32.mrb[0].mxu0
        %5216 = vmatprep.mubr.bf16.mxu0 0
        %5217 = vmatmul.mubr.bf16.gmra.mrb[0].mxu0 %v5072
        %v5218 = vpop.f32.mrb[0].mxu0
        %v5219 = vadd.f32 %v5018, %v5218
        %v5220 = vpop.f32.mrb[0].mxu0
        %v5221 = vpop.f32.mrb[0].mxu0
        %v5222 = vadd.f32 %v5018, %v5221
        %v5223 = vpop.f32.mrb[0].mxu0
        %5224 = vmatprep.mubr.bf16.mxu0 0
        %5225 = vmatmul.mubr.bf16.gmra.mrb[0].mxu0 %v5075
        %v5226 = vpop.f32.mrb[0].mxu0
        %v5227 = vadd.f32 %v5018, %v5226
        %v5228 = vpop.f32.mrb[0].mxu0
        %v5229 = vpop.f32.mrb[0].mxu0
        %v5230 = vadd.f32 %v5018, %v5229
        %v5231 = vpop.f32.mrb[0].mxu0
        %5232 = vmatprep.mubr.bf16.mxu0 0
        %5233 = vmatmul.mubr.bf16.gmra.mrb[0].mxu0 %v5078
        %v5234 = vpop.f32.mrb[0].mxu0
        %v5235 = vadd.f32 %v5018, %v5234
        %v5236 = vpop.f32.mrb[0].mxu0
        %v5237 = vpop.f32.mrb[0].mxu0
        %v5238 = vadd.f32 %v5018, %v5237
        %v5239 = vpop.f32.mrb[0].mxu0
        %5240 = vdwg.mxu0
        %v5241 = vadd.f32 %v5115, %v310
        %v5242 = vadd.f32 %v5118, %v311
        %v5243 = vadd.f32 %v5123, %v312
        %v5244 = vadd.f32 %v5126, %v313
        %v5245 = vadd.f32 %v5131, %v314
        %v5246 = vadd.f32 %v5134, %v315
        %v5247 = vadd.f32 %v5139, %v316
        %v5248 = vadd.f32 %v5142, %v317
        %v5249 = vadd.f32 %v5147, %v318
        %v5250 = vadd.f32 %v5150, %v319
        %v5251 = vadd.f32 %v5155, %v320
        %v5252 = vadd.f32 %v5158, %v321
        %v5253 = vadd.f32 %v5163, %v322
        %v5254 = vadd.f32 %v5166, %v323
        %v5255 = vadd.f32 %v5171, %v324
        %v5256 = vadd.f32 %v5174, %v325
        %v5257 = vadd.f32 %v5179, %v326
        %v5258 = vadd.f32 %v5182, %v327
        %v5259 = vadd.f32 %v5187, %v328
        %v5260 = vadd.f32 %v5190, %v329
        %v5261 = vadd.f32 %v5195, %v330
        %v5262 = vadd.f32 %v5198, %v331
        %v5263 = vadd.f32 %v5203, %v332
        %v5264 = vadd.f32 %v5206, %v333
        %v5265 = vadd.f32 %v5211, %v334
        %v5266 = vadd.f32 %v5214, %v335
        %v5267 = vadd.f32 %v5219, %v336
        %v5268 = vadd.f32 %v5222, %v337
        %v5269 = vadd.f32 %v5227, %v338
        %v5270 = vadd.f32 %v5230, %v339
        %v5271 = vadd.f32 %v5235, %v340
        %v5272 = vadd.f32 %v5238, %v341
        %v5273 = vmax.f32 %v5241, 0.0
        %v5274 = vmax.f32 %v5242, 0.0
        %v5275 = vmax.f32 %v5243, 0.0
        %v5276 = vmax.f32 %v5244, 0.0
        %v5277 = vmax.f32 %v5245, 0.0
        %v5278 = vmax.f32 %v5246, 0.0
        %v5279 = vmax.f32 %v5247, 0.0
        %v5280 = vmax.f32 %v5248, 0.0
        %v5281 = vmax.f32 %v5249, 0.0
        %v5282 = vmax.f32 %v5250, 0.0
        %v5283 = vmax.f32 %v5251, 0.0
        %v5284 = vmax.f32 %v5252, 0.0
        %v5285 = vmax.f32 %v5253, 0.0
        %v5286 = vmax.f32 %v5254, 0.0
        %v5287 = vmax.f32 %v5255, 0.0
        %v5288 = vmax.f32 %v5256, 0.0
        %v5289 = vmax.f32 %v5257, 0.0
        %v5290 = vmax.f32 %v5258, 0.0
        %v5291 = vmax.f32 %v5259, 0.0
        %v5292 = vmax.f32 %v5260, 0.0
        %v5293 = vmax.f32 %v5261, 0.0
        %v5294 = vmax.f32 %v5262, 0.0
        %v5295 = vmax.f32 %v5263, 0.0
        %v5296 = vmax.f32 %v5264, 0.0
        %v5297 = vmax.f32 %v5265, 0.0
        %v5298 = vmax.f32 %v5266, 0.0
        %v5299 = vmax.f32 %v5267, 0.0
        %v5300 = vmax.f32 %v5268, 0.0
        %v5301 = vmax.f32 %v5269, 0.0
        %v5302 = vmax.f32 %v5270, 0.0
        %v5303 = vmax.f32 %v5271, 0.0
        %v5304 = vmax.f32 %v5272, 0.0
        %v5305 = vpack.c.bf16 %v5274, %v5273
        %v5306 = vpack.c.bf16 %v5276, %v5275
        %v5307 = vpack.c.bf16 %v5278, %v5277
        %v5308 = vpack.c.bf16 %v5280, %v5279
        %v5309 = vpack.c.bf16 %v5282, %v5281
        %v5310 = vpack.c.bf16 %v5284, %v5283
        %v5311 = vpack.c.bf16 %v5286, %v5285
        %v5312 = vpack.c.bf16 %v5288, %v5287
        %v5313 = vpack.c.bf16 %v5290, %v5289
        %v5314 = vpack.c.bf16 %v5292, %v5291
        %v5315 = vpack.c.bf16 %v5294, %v5293
        %v5316 = vpack.c.bf16 %v5296, %v5295
        %v5317 = vpack.c.bf16 %v5298, %v5297
        %v5318 = vpack.c.bf16 %v5300, %v5299
        %v5319 = vpack.c.bf16 %v5302, %v5301
        %v5320 = vpack.c.bf16 %v5304, %v5303
        %v5337 = vunpack.c.l.b16 %v5305
        %v5338 = vunpack.c.h.b16 %v5305
        %v5339 = vunpack.c.l.b16 %v5306
        %v5340 = vunpack.c.h.b16 %v5306
        %v5341 = vunpack.c.l.b16 %v5307
        %v5342 = vunpack.c.h.b16 %v5307
        %v5343 = vunpack.c.l.b16 %v5308
        %v5344 = vunpack.c.h.b16 %v5308
        %v5345 = vunpack.c.l.b16 %v5309
        %v5346 = vunpack.c.h.b16 %v5309
        %v5347 = vunpack.c.l.b16 %v5310
        %v5348 = vunpack.c.h.b16 %v5310
        %v5349 = vunpack.c.l.b16 %v5311
        %v5350 = vunpack.c.h.b16 %v5311
        %v5351 = vunpack.c.l.b16 %v5312
        %v5352 = vunpack.c.h.b16 %v5312
        %v5353 = vunpack.c.l.b16 %v5313
        %v5354 = vunpack.c.h.b16 %v5313
        %v5355 = vunpack.c.l.b16 %v5314
        %v5356 = vunpack.c.h.b16 %v5314
        %v5357 = vunpack.c.l.b16 %v5315
        %v5358 = vunpack.c.h.b16 %v5315
        %v5359 = vunpack.c.l.b16 %v5316
        %v5360 = vunpack.c.h.b16 %v5316
        %v5361 = vunpack.c.l.b16 %v5317
        %v5362 = vunpack.c.h.b16 %v5317
        %v5363 = vunpack.c.l.b16 %v5318
        %v5364 = vunpack.c.h.b16 %v5318
        %v5365 = vunpack.c.l.b16 %v5319
        %v5366 = vunpack.c.h.b16 %v5319
        %v5367 = vunpack.c.l.b16 %v5320
        %v5368 = vunpack.c.h.b16 %v5320
        %v5369 = vpack.c.b16 %v5337, %v5337
        %v5370 = vpack.c.b16 %v5338, %v5338
        %v5371 = vpack.c.b16 %v5339, %v5339
        %v5372 = vpack.c.b16 %v5340, %v5340
        %v5373 = vpack.c.b16 %v5341, %v5341
        %v5374 = vpack.c.b16 %v5342, %v5342
        %v5375 = vpack.c.b16 %v5343, %v5343
        %v5376 = vpack.c.b16 %v5344, %v5344
        %v5377 = vpack.c.b16 %v5345, %v5345
        %v5378 = vpack.c.b16 %v5346, %v5346
        %v5379 = vpack.c.b16 %v5347, %v5347
        %v5380 = vpack.c.b16 %v5348, %v5348
        %v5381 = vpack.c.b16 %v5349, %v5349
        %v5382 = vpack.c.b16 %v5350, %v5350
        %v5383 = vpack.c.b16 %v5351, %v5351
        %v5384 = vpack.c.b16 %v5352, %v5352
        %v5385 = vpack.c.b16 %v5353, %v5353
        %v5386 = vpack.c.b16 %v5354, %v5354
        %v5387 = vpack.c.b16 %v5355, %v5355
        %v5388 = vpack.c.b16 %v5356, %v5356
        %v5389 = vpack.c.b16 %v5357, %v5357
        %v5390 = vpack.c.b16 %v5358, %v5358
        %v5391 = vpack.c.b16 %v5359, %v5359
        %v5392 = vpack.c.b16 %v5360, %v5360
        %v5393 = vpack.c.b16 %v5361, %v5361
        %v5394 = vpack.c.b16 %v5362, %v5362
        %v5395 = vpack.c.b16 %v5363, %v5363
        %v5396 = vpack.c.b16 %v5364, %v5364
        %v5397 = vpack.c.b16 %v5365, %v5365
        %v5398 = vpack.c.b16 %v5366, %v5366
        %v5399 = vpack.c.b16 %v5367, %v5367
        %v5400 = vpack.c.b16 %v5368, %v5368
        %5433 = vst [vmem:[%s271] sm:$0xf] %v5369
        %5434 = vst [vmem:[%s271 + $0x4] sm:$0xf] %v5370
        %5435 = vst [vmem:[%s271 + $0x8] sm:$0xf] %v5371
        %5436 = vst [vmem:[%s271 + $0xc] sm:$0xf] %v5372
        %5437 = vst [vmem:[%s271 + $0x10] sm:$0xf] %v5373
        %5438 = vst [vmem:[%s271 + $0x14] sm:$0xf] %v5374
        %5439 = vst [vmem:[%s271 + $0x18] sm:$0xf] %v5375
        %5440 = vst [vmem:[%s271 + $0x1c] sm:$0xf] %v5376
        %5441 = vst [vmem:[%s271 + $0x20] sm:$0xf] %v5377
        %5442 = vst [vmem:[%s271 + $0x24] sm:$0xf] %v5378
        %5443 = vst [vmem:[%s271 + $0x28] sm:$0xf] %v5379
        %5444 = vst [vmem:[%s271 + $0x2c] sm:$0xf] %v5380
        %5445 = vst [vmem:[%s271 + $0x30] sm:$0xf] %v5381
        %5446 = vst [vmem:[%s271 + $0x34] sm:$0xf] %v5382
        %5447 = vst [vmem:[%s271 + $0x38] sm:$0xf] %v5383
        %5448 = vst [vmem:[%s271 + $0x3c] sm:$0xf] %v5384
        %5449 = vst [vmem:[%s271 + $0x40] sm:$0xf] %v5385
        %5450 = vst [vmem:[%s271 + $0x44] sm:$0xf] %v5386
        %5451 = vst [vmem:[%s271 + $0x48] sm:$0xf] %v5387
        %5452 = vst [vmem:[%s271 + $0x4c] sm:$0xf] %v5388
        %5453 = vst [vmem:[%s271 + $0x50] sm:$0xf] %v5389
        %5454 = vst [vmem:[%s271 + $0x54] sm:$0xf] %v5390
        %5455 = vst [vmem:[%s271 + $0x58] sm:$0xf] %v5391
        %5456 = vst [vmem:[%s271 + $0x5c] sm:$0xf] %v5392
        %5457 = vst [vmem:[%s271 + $0x60] sm:$0xf] %v5393
        %5458 = vst [vmem:[%s271 + $0x64] sm:$0xf] %v5394
        %5459 = vst [vmem:[%s271 + $0x68] sm:$0xf] %v5395
        %5460 = vst [vmem:[%s271 + $0x6c] sm:$0xf] %v5396
        %5461 = vst [vmem:[%s271 + $0x70] sm:$0xf] %v5397
        %5462 = vst [vmem:[%s271 + $0x74] sm:$0xf] %v5398
        %5463 = vst [vmem:[%s271 + $0x78] sm:$0xf] %v5399
        %5464 = vst [vmem:[%s271 + $0x7c] sm:$0xf] %v5400
        %s5465 = sand.u32 %s181, 1
        %s5466 = scalar_lea.sflag [#allocation5], %s5465
        %s5467 = sand.u32 %s181, 1
        %s5468 = smul.addr %s5467, 128
        %s5469 = scalar_lea.vmem [#allocation4], %s5468
        // Predicated region
        $region49: #{tpu_custom_call.1} parent=47 // pred_check
          %p5470 = pneg %p191
        $region50: #{tpu_custom_call.1} parent=47 // pred_check_branch
          %5472 = sbr.rel (%p5470) target = $region52
        $region51: #{tpu_custom_call.1} parent=47 // pred_region
          %s5474 = ssub.s32 2048, 2048
          %5475 = vsyncadd %s5466, %s5474
          %s5476 = smul.addr %s21, 32
          %s5477 = smul.addr %s5476, 64
          %s5478 = scalar_lea.hbm %s7, %s5477
          %s5479 = sshll.u32 %s5469, 4
          %s5480 = int_to_ptr.vmem [resolvable:$true] %s5479
          %5485 = dma.vmem_to_hbm [thread:$0]  %s5480, 2048, %s5478, %s5466, 64, 64, 4
        $region52: #{tpu_custom_call.1} parent=47 // pred_fallthru
          _
      $region48: #{tpu_custom_call.1} parent=5 // pred_fallthru
        _
      %p5486 = scmp.le.s32.totalorder 2, %s16
      // Predicated region
      $region53: #{tpu_custom_call.1} parent=5 // pred_check
        %p5487 = pneg %p5486
      $region54: #{tpu_custom_call.1} parent=5 // pred_check_branch
        %5489 = sbr.rel (%p5487) target = $region56
      $region55: #{tpu_custom_call.1} parent=5 // pred_region
        %s5490 = ssub.s32 %s16, 2
        // Predicated region
        $region57: #{tpu_custom_call.1} parent=55 // pred_check
          %p5491 = pneg %p197
        $region58: #{tpu_custom_call.1} parent=55 // pred_check_branch
          %5493 = sbr.rel (%p5491) target = $region60
        $region59: #{tpu_custom_call.1} parent=55 // pred_region
          %s5494 = sand.u32 %s182, 1
          %s5495 = scalar_lea.sflag [#allocation5], %s5494
          %s5496 = sand.u32 %s182, 1
          %s5497 = smul.addr %s5496, 128
          %s5498 = scalar_lea.vmem [#allocation4], %s5497
          %5499 = dma.done %s5495, 2048
        $region60: #{tpu_custom_call.1} parent=55 // pred_fallthru
          _
      $region56: #{tpu_custom_call.1} parent=5 // pred_fallthru
        _
    $region6: #{tpu_custom_call.1} parent=1 // loop_footer
      %s20 = sadd.s32 1, %s16
    $region7: #{tpu_custom_call.1} parent=1 // loop_footer_branch
      %15 = sbr.rel target = $region3
    $region8: #{tpu_custom_call.1} parent=1 // loop_exit
      _
    %5500 = vsyncpa [#allocation5], 1
    %s5501 = scalar_lea.sflag [#allocation5], 1
    %5502 = vsyncpa %s5501, 1

</llo_original>
